<compile_context>
chip_gen: v6e
topology: v6e:2x2x1
jax: 0.10.0
libtpu: 0.0.40
codegen_flags: <defaults>
</compile_context>

<pallas_src>
import jax
import jax.numpy as jnp
from jax.experimental import pallas as pl
from jax.experimental.pallas import tpu as pltpu


# ----------------------------------------------------------------------------
# Fused Pallas kernel: whole GCN forward for one batch block per grid step.
# ----------------------------------------------------------------------------
def gcn_fused_kernel(lk1_ref, lkm_ref, x_ref,
                     w1_ref, b1_ref, w2_ref, b2_ref, w3_ref, b3_ref,
                     w4_ref, b4_ref, w5_ref, b5_ref,
                     fc1w_ref, fc1b_ref, fc2w_ref, fc2b_ref,
                     fc3w_ref, fc3b_ref, o_ref):
    """
    lk1_ref : (N*Cin1, N*Cin1)  bf16  kron(L_hat^T, I_Cin1)   (layer-1 input dim)
    lkm_ref : (N*Cm,  N*Cm)     bf16  kron(L_hat^T, I_Cm)     (layers 2-5 input dim)
    x_ref   : (Bt, N*Cin1)      f32   batch block, node-major flattened features
    w*_ref  : (K, N*Cin, N*Cout) bf16 block-diagonal kron(I_N, W_k) per filter k
    b*_ref  : (1, N*Cout)       f32   bias tiled over nodes
    fc*w    : (In, Out) bf16, fc*b : (1, Out) f32
    o_ref   : (Bt, n_classes)   f32
    """
    def mm(a, w):   # bf16 MXU inputs, f32 accumulation
        return jnp.dot(a.astype(jnp.bfloat16), w,
                       preferred_element_type=jnp.float32)

    def cheb_layer(h, lk, w_ref, b_ref):
        # h : (Bt, N*Cin) f32 ; one full-batch dot per Chebyshev term.
        k_total = w_ref.shape[0]
        acc = mm(h, w_ref[0])                      # Z_0 = X
        z_prev2 = h
        if k_total > 1:
            z_prev1 = mm(h, lk)                    # Z_1 = L_hat X   (folded)
            acc = acc + mm(z_prev1, w_ref[1])
            for k in range(2, k_total):            # Z_k = 2 L Z_{k-1} - Z_{k-2}
                z_new = 2.0 * mm(z_prev1, lk) - z_prev2
                acc = acc + mm(z_new, w_ref[k])
                z_prev2, z_prev1 = z_prev1, z_new
        # bias + ReLU in f32 (dropout == identity)
        return jnp.maximum(acc + b_ref[...], 0.0)

    lk1 = lk1_ref[...]
    lkm = lkm_ref[...]

    h = x_ref[...]                                  # (Bt, N*Cin1)
    h = cheb_layer(h, lk1, w1_ref, b1_ref)
    h = cheb_layer(h, lkm, w2_ref, b2_ref)
    h = cheb_layer(h, lkm, w3_ref, b3_ref)
    h = cheb_layer(h, lkm, w4_ref, b4_ref)
    h = cheb_layer(h, lkm, w5_ref, b5_ref)          # (Bt, N*C5) == flattened fc1 input

    # Fully-connected head: single (Bt, F) matmuls (flatten is already done).
    y = mm(h, fc1w_ref[...]) + fc1b_ref[...]
    y = mm(y, fc2w_ref[...]) + fc2b_ref[...]
    y = mm(y, fc3w_ref[...]) + fc3b_ref[...]
    o_ref[...] = y                                  # one dense (Bt, n_classes) store


# ----------------------------------------------------------------------------
# Host-side parameter packing (done ONCE): Kronecker / block-diag folding,
# node-tiled biases, bf16 casts for all MXU operands.
# ----------------------------------------------------------------------------
def pack_gcn_params(params, L_hat, n_roi):
    n = n_roi
    lt = L_hat.T.astype(jnp.float32)
    eye_n = jnp.eye(n, dtype=jnp.float32)

    def kron_l(c):        # (N*c, N*c) so (B, N*c) @ kron == per-graph L_hat @ Z
        return jnp.kron(lt, jnp.eye(c, dtype=jnp.float32)).astype(jnp.bfloat16)

    def blk_w(w):         # (K, Cin, Cout) -> (K, N*Cin, N*Cout) block-diagonal
        return jnp.stack([jnp.kron(eye_n, w[k]) for k in range(w.shape[0])]
                         ).astype(jnp.bfloat16)

    def tile_b(b):        # (Cout,) -> (1, N*Cout)
        return jnp.tile(b, n).reshape(1, -1).astype(jnp.float32)

    cin1 = params["w1"].shape[1]
    cmid = params["w2"].shape[1]
    return {
        "Lk1": kron_l(cin1),
        "Lkm": kron_l(cmid),
        "cw": [blk_w(params["w%d" % l]) for l in range(1, 6)],
        "cb": [tile_b(params["b%d" % l]) for l in range(1, 6)],
        "fc_w": [params["fc1_w"].astype(jnp.bfloat16),
                 params["fc2_w"].astype(jnp.bfloat16),
                 params["fc3_w"].astype(jnp.bfloat16)],
        "fc_b": [params["fc1_b"].reshape(1, -1).astype(jnp.float32),
                 params["fc2_b"].reshape(1, -1).astype(jnp.float32),
                 params["fc3_b"].reshape(1, -1).astype(jnp.float32)],
    }


# ----------------------------------------------------------------------------
# Wrapper: one pallas_call for the whole forward pass, batch-blocked grid.
# ----------------------------------------------------------------------------
@jax.jit
def gcn_forward(packed, x):
    B, N, Cin = x.shape
    n_classes = packed["fc_b"][2].shape[-1]

    # Fold batch features: (B, N, Cin) -> (B, N*Cin), node-major on lanes.
    xf = x.reshape(B, N * Cin).astype(jnp.float32)

    # Batch block per grid step: >= 2 blocks keeps both v7x TCs busy.
    bt = 8 if (B % 8 == 0) else B
    assert B % bt == 0
    grid = (B // bt,)

    def shared(arr):      # batch-invariant, VMEM-resident operand
        nd = arr.ndim
        return pl.BlockSpec(arr.shape, lambda i, _nd=nd: (0,) * _nd)

    operands = [packed["Lk1"], packed["Lkm"], xf]
    in_specs = [shared(packed["Lk1"]), shared(packed["Lkm"]),
                pl.BlockSpec((bt, N * Cin), lambda i: (i, 0))]
    for w, b in zip(packed["cw"], packed["cb"]):
        operands += [w, b]
        in_specs += [shared(w), shared(b)]
    for w, b in zip(packed["fc_w"], packed["fc_b"]):
        operands += [w, b]
        in_specs += [shared(w), shared(b)]

    out = pl.pallas_call(
        gcn_fused_kernel,
        out_shape=jax.ShapeDtypeStruct((B, n_classes), jnp.float32),
        grid=grid,
        in_specs=in_specs,
        out_specs=pl.BlockSpec((bt, n_classes), lambda i: (i, 0)),
        compiler_params=pltpu.CompilerParams(
            dimension_semantics=("parallel",),
            vmem_limit_bytes=32 * 1024 * 1024),
    )(*operands)
    return out


# ----------------------------------------------------------------------------
# Graph / raw parameter setup (plain JAX glue)
# ----------------------------------------------------------------------------
def build_scaled_laplacian(edge_index, edge_weight, n, lambda_max=2.0):
    """Dense L_hat = (2/lambda_max) * (I - D^{-1/2} A D^{-1/2}) - I,
    matching torch_geometric ChebConv.__norm__ with normalization='sym'."""
    A = jnp.zeros((n, n), jnp.float32).at[
        edge_index[0], edge_index[1]].add(edge_weight)
    deg = A.sum(axis=1)
    d_inv_sqrt = jnp.where(deg > 0, 1.0 / jnp.sqrt(deg), 0.0)
    A_norm = A * d_inv_sqrt[:, None] * d_inv_sqrt[None, :]
    eye = jnp.eye(n, dtype=jnp.float32)
    L = eye - A_norm
    return (2.0 / lambda_max) * L - eye


def init_params(key, n_roi, n_timepoints, cheb_channels, cheb_k,
                last_out_channels, fc_neurons, n_classes):
    ks = jax.random.split(key, 16)

    def u(k, shape, fan_in):
        s = 1.0 / jnp.sqrt(jnp.float32(fan_in))
        return jax.random.uniform(k, shape, jnp.float32, -s, s)

    p = {}
    # ChebConv weights stored as (K, Cin, Cout); biases as (Cout,)
    p["w1"] = u(ks[0], (cheb_k, n_timepoints, cheb_channels), n_timepoints)
    p["b1"] = u(ks[1], (cheb_channels,), n_timepoints)
    p["w2"] = u(ks[2], (cheb_k, cheb_channels, cheb_channels), cheb_channels)
    p["b2"] = u(ks[3], (cheb_channels,), cheb_channels)
    p["w3"] = u(ks[4], (cheb_k, cheb_channels, cheb_channels), cheb_channels)
    p["b3"] = u(ks[5], (cheb_channels,), cheb_channels)
    p["w4"] = u(ks[6], (cheb_k, cheb_channels, cheb_channels), cheb_channels)
    p["b4"] = u(ks[7], (cheb_channels,), cheb_channels)
    p["w5"] = u(ks[8], (cheb_k, cheb_channels, last_out_channels), cheb_channels)
    p["b5"] = u(ks[9], (last_out_channels,), cheb_channels)
    # Linear layers stored as (In, Out); biases (Out,)
    fc_in = n_roi * last_out_channels
    p["fc1_w"] = u(ks[10], (fc_in, fc_neurons), fc_in)
    p["fc1_b"] = u(ks[11], (fc_neurons,), fc_in)
    p["fc2_w"] = u(ks[12], (fc_neurons, fc_neurons), fc_neurons)
    p["fc2_b"] = u(ks[13], (fc_neurons,), fc_neurons)
    p["fc3_w"] = u(ks[14], (fc_neurons, n_classes), fc_neurons)
    p["fc3_b"] = u(ks[15], (n_classes,), fc_neurons)
    return p


# ----------------------------------------------------------------------------
# Main
# ----------------------------------------------------------------------------
if __name__ == "__main__":
    key = jax.random.PRNGKey(0)
    k_graph, k_param, k_x = jax.random.split(key, 3)

    # Small, forward-consistent shapes.
    B = 16                # batch of graphs (2 blocks of 8 -> 2 grid steps)
    n_roi = 16            # nodes per graph
    n_timepoints = 32     # input node-feature dim
    cheb_channels = 16
    cheb_k = 3
    last_out_channels = 4
    fc_neurons = 32
    n_classes = 4

    # Deterministic symmetric ring graph over n_roi nodes.
    src = jnp.arange(n_roi)
    dst = (src + 1) % n_roi
    edge_index = jnp.stack([jnp.concatenate([src, dst]),
                            jnp.concatenate([dst, src])]).astype(jnp.int32)
    ew_half = jax.random.uniform(k_graph, (n_roi,), jnp.float32, 0.5, 1.5)
    edge_weight = jnp.concatenate([ew_half, ew_half])

    L_hat = build_scaled_laplacian(edge_index, edge_weight, n_roi)

    params = init_params(k_param, n_roi, n_timepoints, cheb_channels, cheb_k,
                         last_out_channels, fc_neurons, n_classes)
    packed = pack_gcn_params(params, L_hat, n_roi)

    x = jax.random.normal(k_x, (B, n_roi, n_timepoints), jnp.float32)

    out = gcn_forward(packed, x)
    jax.block_until_ready(out)
    assert out.shape == (B, n_classes), out.shape
    print("KERNEL_OK")
</pallas_src>

<mosaic_0001>
module attributes {stable_mosaic.version = 11 : i64} {
  func.func @gcn_fused_kernel(%arg0: i32, %arg1: memref<512x512xbf16, #tpu.memory_space<vmem>>, %arg2: memref<256x256xbf16, #tpu.memory_space<vmem>>, %arg3: memref<8x512xf32, #tpu.memory_space<vmem>>, %arg4: memref<3x512x256xbf16, #tpu.memory_space<vmem>>, %arg5: memref<1x256xf32, #tpu.memory_space<vmem>>, %arg6: memref<3x256x256xbf16, #tpu.memory_space<vmem>>, %arg7: memref<1x256xf32, #tpu.memory_space<vmem>>, %arg8: memref<3x256x256xbf16, #tpu.memory_space<vmem>>, %arg9: memref<1x256xf32, #tpu.memory_space<vmem>>, %arg10: memref<3x256x256xbf16, #tpu.memory_space<vmem>>, %arg11: memref<1x256xf32, #tpu.memory_space<vmem>>, %arg12: memref<3x256x64xbf16, #tpu.memory_space<vmem>>, %arg13: memref<1x64xf32, #tpu.memory_space<vmem>>, %arg14: memref<64x32xbf16, #tpu.memory_space<vmem>>, %arg15: memref<1x32xf32, #tpu.memory_space<vmem>>, %arg16: memref<32x32xbf16, #tpu.memory_space<vmem>>, %arg17: memref<1x32xf32, #tpu.memory_space<vmem>>, %arg18: memref<32x4xbf16, #tpu.memory_space<vmem>>, %arg19: memref<1x4xf32, #tpu.memory_space<vmem>>, %arg20: memref<8x4xf32, #tpu.memory_space<vmem>>) attributes {dimension_semantics = [#tpu.dimension_semantics<parallel>], iteration_bounds = array<i64: 2>, scalar_prefetch = 0 : i64, scratch_operands = 0 : i64, tpu.core_type = #tpu.core_type<tc>, window_params = [{pipeline_mode = #tpu.pipeline_mode<synchronous>, transform_indices = @transform_0, window_bounds = array<i64: 512, 512>}, {pipeline_mode = #tpu.pipeline_mode<synchronous>, transform_indices = @transform_1, window_bounds = array<i64: 256, 256>}, {transform_indices = @transform_2, window_bounds = array<i64: 8, 512>}, {pipeline_mode = #tpu.pipeline_mode<synchronous>, transform_indices = @transform_3, window_bounds = array<i64: 3, 512, 256>}, {pipeline_mode = #tpu.pipeline_mode<synchronous>, transform_indices = @transform_4, window_bounds = array<i64: 1, 256>}, {pipeline_mode = #tpu.pipeline_mode<synchronous>, transform_indices = @transform_5, window_bounds = array<i64: 3, 256, 256>}, {pipeline_mode = #tpu.pipeline_mode<synchronous>, transform_indices = @transform_6, window_bounds = array<i64: 1, 256>}, {pipeline_mode = #tpu.pipeline_mode<synchronous>, transform_indices = @transform_7, window_bounds = array<i64: 3, 256, 256>}, {pipeline_mode = #tpu.pipeline_mode<synchronous>, transform_indices = @transform_8, window_bounds = array<i64: 1, 256>}, {pipeline_mode = #tpu.pipeline_mode<synchronous>, transform_indices = @transform_9, window_bounds = array<i64: 3, 256, 256>}, {pipeline_mode = #tpu.pipeline_mode<synchronous>, transform_indices = @transform_10, window_bounds = array<i64: 1, 256>}, {pipeline_mode = #tpu.pipeline_mode<synchronous>, transform_indices = @transform_11, window_bounds = array<i64: 3, 256, 64>}, {pipeline_mode = #tpu.pipeline_mode<synchronous>, transform_indices = @transform_12, window_bounds = array<i64: 1, 64>}, {pipeline_mode = #tpu.pipeline_mode<synchronous>, transform_indices = @transform_13, window_bounds = array<i64: 64, 32>}, {pipeline_mode = #tpu.pipeline_mode<synchronous>, transform_indices = @transform_14, window_bounds = array<i64: 1, 32>}, {pipeline_mode = #tpu.pipeline_mode<synchronous>, transform_indices = @transform_15, window_bounds = array<i64: 32, 32>}, {pipeline_mode = #tpu.pipeline_mode<synchronous>, transform_indices = @transform_16, window_bounds = array<i64: 1, 32>}, {pipeline_mode = #tpu.pipeline_mode<synchronous>, transform_indices = @transform_17, window_bounds = array<i64: 32, 4>}, {pipeline_mode = #tpu.pipeline_mode<synchronous>, transform_indices = @transform_18, window_bounds = array<i64: 1, 4>}, {transform_indices = @transform_19, window_bounds = array<i64: 8, 4>}]} {
    %c0 = arith.constant 0 : index
    %c0_0 = arith.constant 0 : index
    %0 = vector.load %arg1[%c0, %c0_0] : memref<512x512xbf16, #tpu.memory_space<vmem>>, vector<512x512xbf16>
    %c0_1 = arith.constant 0 : index
    %c0_2 = arith.constant 0 : index
    %1 = vector.load %arg2[%c0_1, %c0_2] : memref<256x256xbf16, #tpu.memory_space<vmem>>, vector<256x256xbf16>
    %c0_3 = arith.constant 0 : index
    %c0_4 = arith.constant 0 : index
    %2 = vector.load %arg3[%c0_3, %c0_4] : memref<8x512xf32, #tpu.memory_space<vmem>>, vector<8x512xf32>
    %c0_5 = arith.constant 0 : index
    %c0_6 = arith.constant 0 : index
    %c0_7 = arith.constant 0 : index
    %3 = vector.load %arg4[%c0_5, %c0_6, %c0_7] : memref<3x512x256xbf16, #tpu.memory_space<vmem>>, vector<1x512x256xbf16>
    %4 = vector.shape_cast %3 : vector<1x512x256xbf16> to vector<512x256xbf16>
    %5 = arith.truncf %2 : vector<8x512xf32> to vector<8x512xbf16>
    %cst = arith.constant dense<0.000000e+00> : vector<8x256xf32>
    %6 = tpu.matmul %5, %4, %cst {dimension_numbers = #tpu.dot_dimension_numbers<[1], [0], [0], [1], [0, 0, 1, 1], [], []>} : vector<8x512xbf16>, vector<512x256xbf16>, vector<8x256xf32> -> vector<8x256xf32>
    %7 = arith.truncf %2 : vector<8x512xf32> to vector<8x512xbf16>
    %cst_8 = arith.constant dense<0.000000e+00> : vector<8x512xf32>
    %8 = tpu.matmul %7, %0, %cst_8 {dimension_numbers = #tpu.dot_dimension_numbers<[1], [0], [0], [1], [0, 0, 1, 1], [], []>} : vector<8x512xbf16>, vector<512x512xbf16>, vector<8x512xf32> -> vector<8x512xf32>
    %c1 = arith.constant 1 : index
    %c0_9 = arith.constant 0 : index
    %c0_10 = arith.constant 0 : index
    %9 = vector.load %arg4[%c1, %c0_9, %c0_10] : memref<3x512x256xbf16, #tpu.memory_space<vmem>>, vector<1x512x256xbf16>
    %10 = vector.shape_cast %9 : vector<1x512x256xbf16> to vector<512x256xbf16>
    %11 = arith.truncf %8 : vector<8x512xf32> to vector<8x512xbf16>
    %cst_11 = arith.constant dense<0.000000e+00> : vector<8x256xf32>
    %12 = tpu.matmul %11, %10, %cst_11 {dimension_numbers = #tpu.dot_dimension_numbers<[1], [0], [0], [1], [0, 0, 1, 1], [], []>} : vector<8x512xbf16>, vector<512x256xbf16>, vector<8x256xf32> -> vector<8x256xf32>
    %13 = arith.addf %6, %12 : vector<8x256xf32>
    %14 = arith.truncf %8 : vector<8x512xf32> to vector<8x512xbf16>
    %cst_12 = arith.constant dense<0.000000e+00> : vector<8x512xf32>
    %15 = tpu.matmul %14, %0, %cst_12 {dimension_numbers = #tpu.dot_dimension_numbers<[1], [0], [0], [1], [0, 0, 1, 1], [], []>} : vector<8x512xbf16>, vector<512x512xbf16>, vector<8x512xf32> -> vector<8x512xf32>
    %cst_13 = arith.constant 2.000000e+00 : f32
    %16 = vector.broadcast %cst_13 : f32 to vector<8x512xf32>
    %17 = arith.mulf %16, %15 : vector<8x512xf32>
    %18 = arith.subf %17, %2 : vector<8x512xf32>
    %c2 = arith.constant 2 : index
    %c0_14 = arith.constant 0 : index
    %c0_15 = arith.constant 0 : index
    %19 = vector.load %arg4[%c2, %c0_14, %c0_15] : memref<3x512x256xbf16, #tpu.memory_space<vmem>>, vector<1x512x256xbf16>
    %20 = vector.shape_cast %19 : vector<1x512x256xbf16> to vector<512x256xbf16>
    %21 = arith.truncf %18 : vector<8x512xf32> to vector<8x512xbf16>
    %cst_16 = arith.constant dense<0.000000e+00> : vector<8x256xf32>
    %22 = tpu.matmul %21, %20, %cst_16 {dimension_numbers = #tpu.dot_dimension_numbers<[1], [0], [0], [1], [0, 0, 1, 1], [], []>} : vector<8x512xbf16>, vector<512x256xbf16>, vector<8x256xf32> -> vector<8x256xf32>
    %23 = arith.addf %13, %22 : vector<8x256xf32>
    %c0_17 = arith.constant 0 : index
    %c0_18 = arith.constant 0 : index
    %24 = vector.load %arg5[%c0_17, %c0_18] : memref<1x256xf32, #tpu.memory_space<vmem>>, vector<1x256xf32>
    %25 = vector.broadcast %24 : vector<1x256xf32> to vector<8x256xf32>
    %26 = arith.addf %23, %25 : vector<8x256xf32>
    %cst_19 = arith.constant 0.000000e+00 : f32
    %27 = vector.broadcast %cst_19 : f32 to vector<8x256xf32>
    %28 = arith.maximumf %26, %27 : vector<8x256xf32>
    %c0_20 = arith.constant 0 : index
    %c0_21 = arith.constant 0 : index
    %c0_22 = arith.constant 0 : index
    %29 = vector.load %arg6[%c0_20, %c0_21, %c0_22] : memref<3x256x256xbf16, #tpu.memory_space<vmem>>, vector<1x256x256xbf16>
    %30 = vector.shape_cast %29 : vector<1x256x256xbf16> to vector<256x256xbf16>
    %31 = arith.truncf %28 : vector<8x256xf32> to vector<8x256xbf16>
    %cst_23 = arith.constant dense<0.000000e+00> : vector<8x256xf32>
    %32 = tpu.matmul %31, %30, %cst_23 {dimension_numbers = #tpu.dot_dimension_numbers<[1], [0], [0], [1], [0, 0, 1, 1], [], []>} : vector<8x256xbf16>, vector<256x256xbf16>, vector<8x256xf32> -> vector<8x256xf32>
    %33 = arith.truncf %28 : vector<8x256xf32> to vector<8x256xbf16>
    %cst_24 = arith.constant dense<0.000000e+00> : vector<8x256xf32>
    %34 = tpu.matmul %33, %1, %cst_24 {dimension_numbers = #tpu.dot_dimension_numbers<[1], [0], [0], [1], [0, 0, 1, 1], [], []>} : vector<8x256xbf16>, vector<256x256xbf16>, vector<8x256xf32> -> vector<8x256xf32>
    %c1_25 = arith.constant 1 : index
    %c0_26 = arith.constant 0 : index
    %c0_27 = arith.constant 0 : index
    %35 = vector.load %arg6[%c1_25, %c0_26, %c0_27] : memref<3x256x256xbf16, #tpu.memory_space<vmem>>, vector<1x256x256xbf16>
    %36 = vector.shape_cast %35 : vector<1x256x256xbf16> to vector<256x256xbf16>
    %37 = arith.truncf %34 : vector<8x256xf32> to vector<8x256xbf16>
    %cst_28 = arith.constant dense<0.000000e+00> : vector<8x256xf32>
    %38 = tpu.matmul %37, %36, %cst_28 {dimension_numbers = #tpu.dot_dimension_numbers<[1], [0], [0], [1], [0, 0, 1, 1], [], []>} : vector<8x256xbf16>, vector<256x256xbf16>, vector<8x256xf32> -> vector<8x256xf32>
    %39 = arith.addf %32, %38 : vector<8x256xf32>
    %40 = arith.truncf %34 : vector<8x256xf32> to vector<8x256xbf16>
    %cst_29 = arith.constant dense<0.000000e+00> : vector<8x256xf32>
    %41 = tpu.matmul %40, %1, %cst_29 {dimension_numbers = #tpu.dot_dimension_numbers<[1], [0], [0], [1], [0, 0, 1, 1], [], []>} : vector<8x256xbf16>, vector<256x256xbf16>, vector<8x256xf32> -> vector<8x256xf32>
    %cst_30 = arith.constant 2.000000e+00 : f32
    %42 = vector.broadcast %cst_30 : f32 to vector<8x256xf32>
    %43 = arith.mulf %42, %41 : vector<8x256xf32>
    %44 = arith.subf %43, %28 : vector<8x256xf32>
    %c2_31 = arith.constant 2 : index
    %c0_32 = arith.constant 0 : index
    %c0_33 = arith.constant 0 : index
    %45 = vector.load %arg6[%c2_31, %c0_32, %c0_33] : memref<3x256x256xbf16, #tpu.memory_space<vmem>>, vector<1x256x256xbf16>
    %46 = vector.shape_cast %45 : vector<1x256x256xbf16> to vector<256x256xbf16>
    %47 = arith.truncf %44 : vector<8x256xf32> to vector<8x256xbf16>
    %cst_34 = arith.constant dense<0.000000e+00> : vector<8x256xf32>
    %48 = tpu.matmul %47, %46, %cst_34 {dimension_numbers = #tpu.dot_dimension_numbers<[1], [0], [0], [1], [0, 0, 1, 1], [], []>} : vector<8x256xbf16>, vector<256x256xbf16>, vector<8x256xf32> -> vector<8x256xf32>
    %49 = arith.addf %39, %48 : vector<8x256xf32>
    %c0_35 = arith.constant 0 : index
    %c0_36 = arith.constant 0 : index
    %50 = vector.load %arg7[%c0_35, %c0_36] : memref<1x256xf32, #tpu.memory_space<vmem>>, vector<1x256xf32>
    %51 = vector.broadcast %50 : vector<1x256xf32> to vector<8x256xf32>
    %52 = arith.addf %49, %51 : vector<8x256xf32>
    %cst_37 = arith.constant 0.000000e+00 : f32
    %53 = vector.broadcast %cst_37 : f32 to vector<8x256xf32>
    %54 = arith.maximumf %52, %53 : vector<8x256xf32>
    %c0_38 = arith.constant 0 : index
    %c0_39 = arith.constant 0 : index
    %c0_40 = arith.constant 0 : index
    %55 = vector.load %arg8[%c0_38, %c0_39, %c0_40] : memref<3x256x256xbf16, #tpu.memory_space<vmem>>, vector<1x256x256xbf16>
    %56 = vector.shape_cast %55 : vector<1x256x256xbf16> to vector<256x256xbf16>
    %57 = arith.truncf %54 : vector<8x256xf32> to vector<8x256xbf16>
    %cst_41 = arith.constant dense<0.000000e+00> : vector<8x256xf32>
    %58 = tpu.matmul %57, %56, %cst_41 {dimension_numbers = #tpu.dot_dimension_numbers<[1], [0], [0], [1], [0, 0, 1, 1], [], []>} : vector<8x256xbf16>, vector<256x256xbf16>, vector<8x256xf32> -> vector<8x256xf32>
    %59 = arith.truncf %54 : vector<8x256xf32> to vector<8x256xbf16>
    %cst_42 = arith.constant dense<0.000000e+00> : vector<8x256xf32>
    %60 = tpu.matmul %59, %1, %cst_42 {dimension_numbers = #tpu.dot_dimension_numbers<[1], [0], [0], [1], [0, 0, 1, 1], [], []>} : vector<8x256xbf16>, vector<256x256xbf16>, vector<8x256xf32> -> vector<8x256xf32>
    %c1_43 = arith.constant 1 : index
    %c0_44 = arith.constant 0 : index
    %c0_45 = arith.constant 0 : index
    %61 = vector.load %arg8[%c1_43, %c0_44, %c0_45] : memref<3x256x256xbf16, #tpu.memory_space<vmem>>, vector<1x256x256xbf16>
    %62 = vector.shape_cast %61 : vector<1x256x256xbf16> to vector<256x256xbf16>
    %63 = arith.truncf %60 : vector<8x256xf32> to vector<8x256xbf16>
    %cst_46 = arith.constant dense<0.000000e+00> : vector<8x256xf32>
    %64 = tpu.matmul %63, %62, %cst_46 {dimension_numbers = #tpu.dot_dimension_numbers<[1], [0], [0], [1], [0, 0, 1, 1], [], []>} : vector<8x256xbf16>, vector<256x256xbf16>, vector<8x256xf32> -> vector<8x256xf32>
    %65 = arith.addf %58, %64 : vector<8x256xf32>
    %66 = arith.truncf %60 : vector<8x256xf32> to vector<8x256xbf16>
    %cst_47 = arith.constant dense<0.000000e+00> : vector<8x256xf32>
    %67 = tpu.matmul %66, %1, %cst_47 {dimension_numbers = #tpu.dot_dimension_numbers<[1], [0], [0], [1], [0, 0, 1, 1], [], []>} : vector<8x256xbf16>, vector<256x256xbf16>, vector<8x256xf32> -> vector<8x256xf32>
    %cst_48 = arith.constant 2.000000e+00 : f32
    %68 = vector.broadcast %cst_48 : f32 to vector<8x256xf32>
    %69 = arith.mulf %68, %67 : vector<8x256xf32>
    %70 = arith.subf %69, %54 : vector<8x256xf32>
    %c2_49 = arith.constant 2 : index
    %c0_50 = arith.constant 0 : index
    %c0_51 = arith.constant 0 : index
    %71 = vector.load %arg8[%c2_49, %c0_50, %c0_51] : memref<3x256x256xbf16, #tpu.memory_space<vmem>>, vector<1x256x256xbf16>
    %72 = vector.shape_cast %71 : vector<1x256x256xbf16> to vector<256x256xbf16>
    %73 = arith.truncf %70 : vector<8x256xf32> to vector<8x256xbf16>
    %cst_52 = arith.constant dense<0.000000e+00> : vector<8x256xf32>
    %74 = tpu.matmul %73, %72, %cst_52 {dimension_numbers = #tpu.dot_dimension_numbers<[1], [0], [0], [1], [0, 0, 1, 1], [], []>} : vector<8x256xbf16>, vector<256x256xbf16>, vector<8x256xf32> -> vector<8x256xf32>
    %75 = arith.addf %65, %74 : vector<8x256xf32>
    %c0_53 = arith.constant 0 : index
    %c0_54 = arith.constant 0 : index
    %76 = vector.load %arg9[%c0_53, %c0_54] : memref<1x256xf32, #tpu.memory_space<vmem>>, vector<1x256xf32>
    %77 = vector.broadcast %76 : vector<1x256xf32> to vector<8x256xf32>
    %78 = arith.addf %75, %77 : vector<8x256xf32>
    %cst_55 = arith.constant 0.000000e+00 : f32
    %79 = vector.broadcast %cst_55 : f32 to vector<8x256xf32>
    %80 = arith.maximumf %78, %79 : vector<8x256xf32>
    %c0_56 = arith.constant 0 : index
    %c0_57 = arith.constant 0 : index
    %c0_58 = arith.constant 0 : index
    %81 = vector.load %arg10[%c0_56, %c0_57, %c0_58] : memref<3x256x256xbf16, #tpu.memory_space<vmem>>, vector<1x256x256xbf16>
    %82 = vector.shape_cast %81 : vector<1x256x256xbf16> to vector<256x256xbf16>
    %83 = arith.truncf %80 : vector<8x256xf32> to vector<8x256xbf16>
    %cst_59 = arith.constant dense<0.000000e+00> : vector<8x256xf32>
    %84 = tpu.matmul %83, %82, %cst_59 {dimension_numbers = #tpu.dot_dimension_numbers<[1], [0], [0], [1], [0, 0, 1, 1], [], []>} : vector<8x256xbf16>, vector<256x256xbf16>, vector<8x256xf32> -> vector<8x256xf32>
    %85 = arith.truncf %80 : vector<8x256xf32> to vector<8x256xbf16>
    %cst_60 = arith.constant dense<0.000000e+00> : vector<8x256xf32>
    %86 = tpu.matmul %85, %1, %cst_60 {dimension_numbers = #tpu.dot_dimension_numbers<[1], [0], [0], [1], [0, 0, 1, 1], [], []>} : vector<8x256xbf16>, vector<256x256xbf16>, vector<8x256xf32> -> vector<8x256xf32>
    %c1_61 = arith.constant 1 : index
    %c0_62 = arith.constant 0 : index
    %c0_63 = arith.constant 0 : index
    %87 = vector.load %arg10[%c1_61, %c0_62, %c0_63] : memref<3x256x256xbf16, #tpu.memory_space<vmem>>, vector<1x256x256xbf16>
    %88 = vector.shape_cast %87 : vector<1x256x256xbf16> to vector<256x256xbf16>
    %89 = arith.truncf %86 : vector<8x256xf32> to vector<8x256xbf16>
    %cst_64 = arith.constant dense<0.000000e+00> : vector<8x256xf32>
    %90 = tpu.matmul %89, %88, %cst_64 {dimension_numbers = #tpu.dot_dimension_numbers<[1], [0], [0], [1], [0, 0, 1, 1], [], []>} : vector<8x256xbf16>, vector<256x256xbf16>, vector<8x256xf32> -> vector<8x256xf32>
    %91 = arith.addf %84, %90 : vector<8x256xf32>
    %92 = arith.truncf %86 : vector<8x256xf32> to vector<8x256xbf16>
    %cst_65 = arith.constant dense<0.000000e+00> : vector<8x256xf32>
    %93 = tpu.matmul %92, %1, %cst_65 {dimension_numbers = #tpu.dot_dimension_numbers<[1], [0], [0], [1], [0, 0, 1, 1], [], []>} : vector<8x256xbf16>, vector<256x256xbf16>, vector<8x256xf32> -> vector<8x256xf32>
    %cst_66 = arith.constant 2.000000e+00 : f32
    %94 = vector.broadcast %cst_66 : f32 to vector<8x256xf32>
    %95 = arith.mulf %94, %93 : vector<8x256xf32>
    %96 = arith.subf %95, %80 : vector<8x256xf32>
    %c2_67 = arith.constant 2 : index
    %c0_68 = arith.constant 0 : index
    %c0_69 = arith.constant 0 : index
    %97 = vector.load %arg10[%c2_67, %c0_68, %c0_69] : memref<3x256x256xbf16, #tpu.memory_space<vmem>>, vector<1x256x256xbf16>
    %98 = vector.shape_cast %97 : vector<1x256x256xbf16> to vector<256x256xbf16>
    %99 = arith.truncf %96 : vector<8x256xf32> to vector<8x256xbf16>
    %cst_70 = arith.constant dense<0.000000e+00> : vector<8x256xf32>
    %100 = tpu.matmul %99, %98, %cst_70 {dimension_numbers = #tpu.dot_dimension_numbers<[1], [0], [0], [1], [0, 0, 1, 1], [], []>} : vector<8x256xbf16>, vector<256x256xbf16>, vector<8x256xf32> -> vector<8x256xf32>
    %101 = arith.addf %91, %100 : vector<8x256xf32>
    %c0_71 = arith.constant 0 : index
    %c0_72 = arith.constant 0 : index
    %102 = vector.load %arg11[%c0_71, %c0_72] : memref<1x256xf32, #tpu.memory_space<vmem>>, vector<1x256xf32>
    %103 = vector.broadcast %102 : vector<1x256xf32> to vector<8x256xf32>
    %104 = arith.addf %101, %103 : vector<8x256xf32>
    %cst_73 = arith.constant 0.000000e+00 : f32
    %105 = vector.broadcast %cst_73 : f32 to vector<8x256xf32>
    %106 = arith.maximumf %104, %105 : vector<8x256xf32>
    %c0_74 = arith.constant 0 : index
    %c0_75 = arith.constant 0 : index
    %c0_76 = arith.constant 0 : index
    %107 = vector.load %arg12[%c0_74, %c0_75, %c0_76] : memref<3x256x64xbf16, #tpu.memory_space<vmem>>, vector<1x256x64xbf16>
    %108 = vector.shape_cast %107 : vector<1x256x64xbf16> to vector<256x64xbf16>
    %109 = arith.truncf %106 : vector<8x256xf32> to vector<8x256xbf16>
    %cst_77 = arith.constant dense<0.000000e+00> : vector<8x64xf32>
    %110 = tpu.matmul %109, %108, %cst_77 {dimension_numbers = #tpu.dot_dimension_numbers<[1], [0], [0], [1], [0, 0, 1, 1], [], []>} : vector<8x256xbf16>, vector<256x64xbf16>, vector<8x64xf32> -> vector<8x64xf32>
    %111 = arith.truncf %106 : vector<8x256xf32> to vector<8x256xbf16>
    %cst_78 = arith.constant dense<0.000000e+00> : vector<8x256xf32>
    %112 = tpu.matmul %111, %1, %cst_78 {dimension_numbers = #tpu.dot_dimension_numbers<[1], [0], [0], [1], [0, 0, 1, 1], [], []>} : vector<8x256xbf16>, vector<256x256xbf16>, vector<8x256xf32> -> vector<8x256xf32>
    %c1_79 = arith.constant 1 : index
    %c0_80 = arith.constant 0 : index
    %c0_81 = arith.constant 0 : index
    %113 = vector.load %arg12[%c1_79, %c0_80, %c0_81] : memref<3x256x64xbf16, #tpu.memory_space<vmem>>, vector<1x256x64xbf16>
    %114 = vector.shape_cast %113 : vector<1x256x64xbf16> to vector<256x64xbf16>
    %115 = arith.truncf %112 : vector<8x256xf32> to vector<8x256xbf16>
    %cst_82 = arith.constant dense<0.000000e+00> : vector<8x64xf32>
    %116 = tpu.matmul %115, %114, %cst_82 {dimension_numbers = #tpu.dot_dimension_numbers<[1], [0], [0], [1], [0, 0, 1, 1], [], []>} : vector<8x256xbf16>, vector<256x64xbf16>, vector<8x64xf32> -> vector<8x64xf32>
    %117 = arith.addf %110, %116 : vector<8x64xf32>
    %118 = arith.truncf %112 : vector<8x256xf32> to vector<8x256xbf16>
    %cst_83 = arith.constant dense<0.000000e+00> : vector<8x256xf32>
    %119 = tpu.matmul %118, %1, %cst_83 {dimension_numbers = #tpu.dot_dimension_numbers<[1], [0], [0], [1], [0, 0, 1, 1], [], []>} : vector<8x256xbf16>, vector<256x256xbf16>, vector<8x256xf32> -> vector<8x256xf32>
    %cst_84 = arith.constant 2.000000e+00 : f32
    %120 = vector.broadcast %cst_84 : f32 to vector<8x256xf32>
    %121 = arith.mulf %120, %119 : vector<8x256xf32>
    %122 = arith.subf %121, %106 : vector<8x256xf32>
    %c2_85 = arith.constant 2 : index
    %c0_86 = arith.constant 0 : index
    %c0_87 = arith.constant 0 : index
    %123 = vector.load %arg12[%c2_85, %c0_86, %c0_87] : memref<3x256x64xbf16, #tpu.memory_space<vmem>>, vector<1x256x64xbf16>
    %124 = vector.shape_cast %123 : vector<1x256x64xbf16> to vector<256x64xbf16>
    %125 = arith.truncf %122 : vector<8x256xf32> to vector<8x256xbf16>
    %cst_88 = arith.constant dense<0.000000e+00> : vector<8x64xf32>
    %126 = tpu.matmul %125, %124, %cst_88 {dimension_numbers = #tpu.dot_dimension_numbers<[1], [0], [0], [1], [0, 0, 1, 1], [], []>} : vector<8x256xbf16>, vector<256x64xbf16>, vector<8x64xf32> -> vector<8x64xf32>
    %127 = arith.addf %117, %126 : vector<8x64xf32>
    %c0_89 = arith.constant 0 : index
    %c0_90 = arith.constant 0 : index
    %128 = vector.load %arg13[%c0_89, %c0_90] : memref<1x64xf32, #tpu.memory_space<vmem>>, vector<1x64xf32>
    %129 = vector.broadcast %128 : vector<1x64xf32> to vector<8x64xf32>
    %130 = arith.addf %127, %129 : vector<8x64xf32>
    %cst_91 = arith.constant 0.000000e+00 : f32
    %131 = vector.broadcast %cst_91 : f32 to vector<8x64xf32>
    %132 = arith.maximumf %130, %131 : vector<8x64xf32>
    %c0_92 = arith.constant 0 : index
    %c0_93 = arith.constant 0 : index
    %133 = vector.load %arg14[%c0_92, %c0_93] : memref<64x32xbf16, #tpu.memory_space<vmem>>, vector<64x32xbf16>
    %134 = arith.truncf %132 : vector<8x64xf32> to vector<8x64xbf16>
    %cst_94 = arith.constant dense<0.000000e+00> : vector<8x32xf32>
    %135 = tpu.matmul %134, %133, %cst_94 {dimension_numbers = #tpu.dot_dimension_numbers<[1], [0], [0], [1], [0, 0, 1, 1], [], []>} : vector<8x64xbf16>, vector<64x32xbf16>, vector<8x32xf32> -> vector<8x32xf32>
    %c0_95 = arith.constant 0 : index
    %c0_96 = arith.constant 0 : index
    %136 = vector.load %arg15[%c0_95, %c0_96] : memref<1x32xf32, #tpu.memory_space<vmem>>, vector<1x32xf32>
    %137 = vector.broadcast %136 : vector<1x32xf32> to vector<8x32xf32>
    %138 = arith.addf %135, %137 : vector<8x32xf32>
    %c0_97 = arith.constant 0 : index
    %c0_98 = arith.constant 0 : index
    %139 = vector.load %arg16[%c0_97, %c0_98] : memref<32x32xbf16, #tpu.memory_space<vmem>>, vector<32x32xbf16>
    %140 = arith.truncf %138 : vector<8x32xf32> to vector<8x32xbf16>
    %cst_99 = arith.constant dense<0.000000e+00> : vector<8x32xf32>
    %141 = tpu.matmul %140, %139, %cst_99 {dimension_numbers = #tpu.dot_dimension_numbers<[1], [0], [0], [1], [0, 0, 1, 1], [], []>} : vector<8x32xbf16>, vector<32x32xbf16>, vector<8x32xf32> -> vector<8x32xf32>
    %c0_100 = arith.constant 0 : index
    %c0_101 = arith.constant 0 : index
    %142 = vector.load %arg17[%c0_100, %c0_101] : memref<1x32xf32, #tpu.memory_space<vmem>>, vector<1x32xf32>
    %143 = vector.broadcast %142 : vector<1x32xf32> to vector<8x32xf32>
    %144 = arith.addf %141, %143 : vector<8x32xf32>
    %c0_102 = arith.constant 0 : index
    %c0_103 = arith.constant 0 : index
    %145 = vector.load %arg18[%c0_102, %c0_103] : memref<32x4xbf16, #tpu.memory_space<vmem>>, vector<32x4xbf16>
    %146 = arith.truncf %144 : vector<8x32xf32> to vector<8x32xbf16>
    %cst_104 = arith.constant dense<0.000000e+00> : vector<8x4xf32>
    %147 = tpu.matmul %146, %145, %cst_104 {dimension_numbers = #tpu.dot_dimension_numbers<[1], [0], [0], [1], [0, 0, 1, 1], [], []>} : vector<8x32xbf16>, vector<32x4xbf16>, vector<8x4xf32> -> vector<8x4xf32>
    %c0_105 = arith.constant 0 : index
    %c0_106 = arith.constant 0 : index
    %148 = vector.load %arg19[%c0_105, %c0_106] : memref<1x4xf32, #tpu.memory_space<vmem>>, vector<1x4xf32>
    %149 = vector.broadcast %148 : vector<1x4xf32> to vector<8x4xf32>
    %150 = arith.addf %147, %149 : vector<8x4xf32>
    %c0_107 = arith.constant 0 : index
    %c0_108 = arith.constant 0 : index
    %151 = vector.load %arg20[%c0_107, %c0_108] : memref<8x4xf32, #tpu.memory_space<vmem>>, vector<8x4xf32>
    tpu.vector_store %arg20[%c0_107, %c0_108], %150 {strides = array<i32>} : memref<8x4xf32, #tpu.memory_space<vmem>>, vector<8x4xf32>,
    return
  }
  func.func @transform_0(%arg0: i32) -> (i32, i32) {
    %c0_i32 = arith.constant 0 : i32
    %c0_i32_0 = arith.constant 0 : i32
    %c0_i32_1 = arith.constant 0 : i32
    return %c0_i32, %c0_i32_0 : i32, i32
  }
  func.func @transform_1(%arg0: i32) -> (i32, i32) {
    %c0_i32 = arith.constant 0 : i32
    %c0_i32_0 = arith.constant 0 : i32
    %c0_i32_1 = arith.constant 0 : i32
    return %c0_i32, %c0_i32_0 : i32, i32
  }
  func.func @transform_2(%arg0: i32) -> (i32, i32) {
    %c0_i32 = arith.constant 0 : i32
    %c0_i32_0 = arith.constant 0 : i32
    return %arg0, %c0_i32 : i32, i32
  }
  func.func @transform_3(%arg0: i32) -> (i32, i32, i32) {
    %c0_i32 = arith.constant 0 : i32
    %c0_i32_0 = arith.constant 0 : i32
    %c0_i32_1 = arith.constant 0 : i32
    %c0_i32_2 = arith.constant 0 : i32
    return %c0_i32, %c0_i32_0, %c0_i32_1 : i32, i32, i32
  }
  func.func @transform_4(%arg0: i32) -> (i32, i32) {
    %c0_i32 = arith.constant 0 : i32
    %c0_i32_0 = arith.constant 0 : i32
    %c0_i32_1 = arith.constant 0 : i32
    return %c0_i32, %c0_i32_0 : i32, i32
  }
  func.func @transform_5(%arg0: i32) -> (i32, i32, i32) {
    %c0_i32 = arith.constant 0 : i32
    %c0_i32_0 = arith.constant 0 : i32
    %c0_i32_1 = arith.constant 0 : i32
    %c0_i32_2 = arith.constant 0 : i32
    return %c0_i32, %c0_i32_0, %c0_i32_1 : i32, i32, i32
  }
  func.func @transform_6(%arg0: i32) -> (i32, i32) {
    %c0_i32 = arith.constant 0 : i32
    %c0_i32_0 = arith.constant 0 : i32
    %c0_i32_1 = arith.constant 0 : i32
    return %c0_i32, %c0_i32_0 : i32, i32
  }
  func.func @transform_7(%arg0: i32) -> (i32, i32, i32) {
    %c0_i32 = arith.constant 0 : i32
    %c0_i32_0 = arith.constant 0 : i32
    %c0_i32_1 = arith.constant 0 : i32
    %c0_i32_2 = arith.constant 0 : i32
    return %c0_i32, %c0_i32_0, %c0_i32_1 : i32, i32, i32
  }
  func.func @transform_8(%arg0: i32) -> (i32, i32) {
    %c0_i32 = arith.constant 0 : i32
    %c0_i32_0 = arith.constant 0 : i32
    %c0_i32_1 = arith.constant 0 : i32
    return %c0_i32, %c0_i32_0 : i32, i32
  }
  func.func @transform_9(%arg0: i32) -> (i32, i32, i32) {
    %c0_i32 = arith.constant 0 : i32
    %c0_i32_0 = arith.constant 0 : i32
    %c0_i32_1 = arith.constant 0 : i32
    %c0_i32_2 = arith.constant 0 : i32
    return %c0_i32, %c0_i32_0, %c0_i32_1 : i32, i32, i32
  }
  func.func @transform_10(%arg0: i32) -> (i32, i32) {
    %c0_i32 = arith.constant 0 : i32
    %c0_i32_0 = arith.constant 0 : i32
    %c0_i32_1 = arith.constant 0 : i32
    return %c0_i32, %c0_i32_0 : i32, i32
  }
  func.func @transform_11(%arg0: i32) -> (i32, i32, i32) {
    %c0_i32 = arith.constant 0 : i32
    %c0_i32_0 = arith.constant 0 : i32
    %c0_i32_1 = arith.constant 0 : i32
    %c0_i32_2 = arith.constant 0 : i32
    return %c0_i32, %c0_i32_0, %c0_i32_1 : i32, i32, i32
  }
  func.func @transform_12(%arg0: i32) -> (i32, i32) {
    %c0_i32 = arith.constant 0 : i32
    %c0_i32_0 = arith.constant 0 : i32
    %c0_i32_1 = arith.constant 0 : i32
    return %c0_i32, %c0_i32_0 : i32, i32
  }
  func.func @transform_13(%arg0: i32) -> (i32, i32) {
    %c0_i32 = arith.constant 0 : i32
    %c0_i32_0 = arith.constant 0 : i32
    %c0_i32_1 = arith.constant 0 : i32
    return %c0_i32, %c0_i32_0 : i32, i32
  }
  func.func @transform_14(%arg0: i32) -> (i32, i32) {
    %c0_i32 = arith.constant 0 : i32
    %c0_i32_0 = arith.constant 0 : i32
    %c0_i32_1 = arith.constant 0 : i32
    return %c0_i32, %c0_i32_0 : i32, i32
  }
  func.func @transform_15(%arg0: i32) -> (i32, i32) {
    %c0_i32 = arith.constant 0 : i32
    %c0_i32_0 = arith.constant 0 : i32
    %c0_i32_1 = arith.constant 0 : i32
    return %c0_i32, %c0_i32_0 : i32, i32
  }
  func.func @transform_16(%arg0: i32) -> (i32, i32) {
    %c0_i32 = arith.constant 0 : i32
    %c0_i32_0 = arith.constant 0 : i32
    %c0_i32_1 = arith.constant 0 : i32
    return %c0_i32, %c0_i32_0 : i32, i32
  }
  func.func @transform_17(%arg0: i32) -> (i32, i32) {
    %c0_i32 = arith.constant 0 : i32
    %c0_i32_0 = arith.constant 0 : i32
    %c0_i32_1 = arith.constant 0 : i32
    return %c0_i32, %c0_i32_0 : i32, i32
  }
  func.func @transform_18(%arg0: i32) -> (i32, i32) {
    %c0_i32 = arith.constant 0 : i32
    %c0_i32_0 = arith.constant 0 : i32
    %c0_i32_1 = arith.constant 0 : i32
    return %c0_i32, %c0_i32_0 : i32, i32
  }
  func.func @transform_19(%arg0: i32) -> (i32, i32) {
    %c0_i32 = arith.constant 0 : i32
    %c0_i32_0 = arith.constant 0 : i32
    return %arg0, %c0_i32 : i32, i32
  }
}

</mosaic_0001>

<llo_original>
// kernel: gcn_forward.1
$region0: #{gcn_forward.1}
  #allocation0 [shape = 'u32[]', space=smem, size = 0x4, offset = 0x4, fixed_abs, tag = 'smem constant byte address 0x4 - core index']
  #allocation1 [shape = 'u32[144,128]{1,0:T(1,128)}', space=vmem, size = 0x12000, scoped, tag = 'internal scratch']
  %s0 = inlined_call_operand.hbm [shape: bf16[512,512], index: 0, kind: input, shape index: {}]
  %s1 = inlined_call_operand.hbm [shape: bf16[256,256], index: 1, kind: input, shape index: {}]
  %s2 = inlined_call_operand.vmem [shape: f32[16,512], index: 2, kind: input, shape index: {}]
  %s3 = inlined_call_operand.hbm [shape: bf16[3,512,256], index: 3, kind: input, shape index: {}]
  %s4 = inlined_call_operand.vmem [shape: f32[1,256], index: 4, kind: input, shape index: {}]
  %s5 = inlined_call_operand.vmem [shape: bf16[3,256,256], index: 5, kind: input, shape index: {}]
  %s6 = inlined_call_operand.vmem [shape: f32[1,256], index: 6, kind: input, shape index: {}]
  %s7 = inlined_call_operand.hbm [shape: bf16[3,256,256], index: 7, kind: input, shape index: {}]
  %s8 = inlined_call_operand.vmem [shape: f32[1,256], index: 8, kind: input, shape index: {}]
  %s9 = inlined_call_operand.hbm [shape: bf16[3,256,256], index: 9, kind: input, shape index: {}]
  %s10 = inlined_call_operand.hbm [shape: f32[1,256], index: 10, kind: input, shape index: {}]
  %s11 = inlined_call_operand.vmem [shape: bf16[3,256,64], index: 11, kind: input, shape index: {}]
  %s12 = inlined_call_operand.vmem [shape: f32[1,64], index: 12, kind: input, shape index: {}]
  %s13 = inlined_call_operand.vmem [shape: bf16[64,32], index: 13, kind: input, shape index: {}]
  %s14 = inlined_call_operand.hbm [shape: f32[1,32], index: 14, kind: input, shape index: {}]
  %s15 = inlined_call_operand.hbm [shape: bf16[32,32], index: 15, kind: input, shape index: {}]
  %s16 = inlined_call_operand.hbm [shape: f32[1,32], index: 16, kind: input, shape index: {}]
  %s17 = inlined_call_operand.vmem [shape: bf16[32,4], index: 17, kind: input, shape index: {}]
  %s18 = inlined_call_operand.hbm [shape: f32[1,4], index: 18, kind: input, shape index: {}]
  %s19 = inlined_call_operand.vmem [shape: f32[16,4], index: 19, kind: output, shape index: {}]
  %s20 = sld [smem:[#allocation0]]
  $region149: #{gcn_forward.1} parent=0
    _
  %s22 = ssub.s32 1, %s20
  %s23 = scalar_select 0, %s22, %s20
  $region1: #{gcn_forward.1} parent=0
    #allocation2 [shape = 'u8[524288]{0}', space=vmem, size = 0x80000, scoped, tag = 'input window, operand 0, single buffered']
    #allocation3 [shape = 's32[2]{0}', space=sflag, size = 0x8, scoped, tag = 'scoped memory for gcn_forward.1']
    #allocation4 [shape = 'u8[131072]{0}', space=vmem, size = 0x20000, scoped, tag = 'input window, operand 1, single buffered']
    #allocation5 [shape = 's32[1]{0}', space=sflag, size = 0x4, scoped, tag = 'scoped memory for gcn_forward.1']
    #allocation6 [shape = 'u8[786432]{0}', space=vmem, size = 0xc0000, scoped, tag = 'input window, operand 3, single buffered']
    #allocation7 [shape = 'u8[393216]{0}', space=vmem, size = 0x60000, scoped, tag = 'input window, operand 7, single buffered']
    #allocation8 [shape = 's32[1]{0}', space=sflag, size = 0x4, scoped, tag = 'scoped memory for gcn_forward.1']
    #allocation9 [shape = 'u8[393216]{0}', space=vmem, size = 0x60000, scoped, tag = 'input window, operand 9, single buffered']
    #allocation10 [shape = 'u8[1024]{0}', space=vmem, size = 0x400, scoped, tag = 'input window, operand 10, single buffered']
    #allocation11 [shape = 's32[1]{0}', space=sflag, size = 0x4, scoped, tag = 'scoped memory for gcn_forward.1']
    #allocation12 [shape = 'u8[512]{0}', space=vmem, size = 0x400, scoped, tag = 'input window, operand 14, single buffered']
    #allocation13 [shape = 'u8[8192]{0}', space=vmem, size = 0x2000, scoped, tag = 'input window, operand 15, single buffered']
    #allocation14 [shape = 's32[1]{0}', space=sflag, size = 0x4, scoped, tag = 'scoped memory for gcn_forward.1']
    #allocation15 [shape = 'u8[512]{0}', space=vmem, size = 0x400, scoped, tag = 'input window, operand 16, single buffered']
    #allocation16 [shape = 'u8[512]{0}', space=vmem, size = 0x400, scoped, tag = 'input window, operand 18, single buffered']
    #allocation17 [shape = 's32[1]{0}', space=sflag, size = 0x4, scoped, tag = 'scoped memory for gcn_forward.1']
    %24 = vsyncpa [#allocation3], 0
    %25 = vsyncpa [#allocation5], 0
    %26 = vsyncpa [#allocation8], 0
    %27 = vsyncpa [#allocation11], 0
    %28 = vsyncpa [#allocation14], 0
    %29 = vsyncpa [#allocation17], 0
    loop: start=0, step=1, limit=4
    $region2: #{gcn_forward.1} parent=1 // loop_pre_header
      _
    $region3: #{gcn_forward.1} parent=1 // loop_header
      %s31 = sphi 0, %s35
      %p32 = scmp.ge.s32.totalorder %s31, 4
      %s39 = sphi 0, %s39
      %s41 = sphi 0, %s39
      %s42 = sphi 0, %s41
      %s56 = sphi 0, %s42
      %s60 = sphi 0, %s60
      %s62 = sphi 0, %s60
      %s63 = sphi 0, %s62
      %s77 = sphi 0, %s63
      %s83 = sphi 0, %s85
      %s86 = sphi 0, %s83
      %s87 = sphi 0, %s86
      %s103 = sphi 0, %s87
      %s107 = sphi 0, %s107
      %s109 = sphi 0, %s107
      %s110 = sphi 0, %s109
      %s124 = sphi 0, %s110
      %s128 = sphi 0, %s128
      %s130 = sphi 0, %s128
      %s131 = sphi 0, %s130
      %s145 = sphi 0, %s131
      %s149 = sphi 0, %s149
      %s151 = sphi 0, %s149
      %s152 = sphi 0, %s151
      %s166 = sphi 0, %s152
      %s170 = sphi 0, %s170
      %s172 = sphi 0, %s170
      %s173 = sphi 0, %s172
      %s187 = sphi 0, %s173
      %s191 = sphi 0, %s191
      %s193 = sphi 0, %s191
      %s194 = sphi 0, %s193
      %s208 = sphi 0, %s194
      %s212 = sphi 0, %s212
      %s214 = sphi 0, %s212
      %s215 = sphi 0, %s214
      %s229 = sphi 0, %s215
      %s233 = sphi 0, %s233
      %s235 = sphi 0, %s233
      %s236 = sphi 0, %s235
      %s250 = sphi 0, %s236
      %s254 = sphi 0, %s254
      %s256 = sphi 0, %s254
      %s257 = sphi 0, %s256
      %s271 = sphi 0, %s257
      %s275 = sphi 0, %s275
      %s277 = sphi 0, %s275
      %s278 = sphi 0, %s277
      %s292 = sphi 0, %s278
      %s296 = sphi 0, %s296
      %s298 = sphi 0, %s296
      %s299 = sphi 0, %s298
      %s313 = sphi 0, %s299
      %s317 = sphi 0, %s317
      %s319 = sphi 0, %s317
      %s320 = sphi 0, %s319
      %s334 = sphi 0, %s320
      %s338 = sphi 0, %s338
      %s340 = sphi 0, %s338
      %s341 = sphi 0, %s340
      %s355 = sphi 0, %s341
      %s359 = sphi 0, %s359
      %s361 = sphi 0, %s359
      %s362 = sphi 0, %s361
      %s376 = sphi 0, %s362
      %s380 = sphi 0, %s380
      %s382 = sphi 0, %s380
      %s383 = sphi 0, %s382
      %s397 = sphi 0, %s383
      %s401 = sphi 0, %s401
      %s403 = sphi 0, %s401
      %s404 = sphi 0, %s403
      %s418 = sphi 0, %s404
      %s422 = sphi 0, %s422
      %s424 = sphi 0, %s422
      %s425 = sphi 0, %s424
      %s439 = sphi 0, %s425
      %s445 = sphi 0, %s447
      %s448 = sphi 0, %s445
      %s449 = sphi 0, %s448
      %s465 = sphi 0, %s449
    $region4: #{gcn_forward.1} parent=1 // loop_header_branch
      %34 = sbr.rel (%p32) target = $region8
    $region5: #{gcn_forward.1} parent=1 // loop_body
      %s36 = ssub.s32 %s31, 1
      %s37 = ssub.s32 %s31, 2
      %s38 = sadd.s32 %s31, 1
      %s40 = sadd.s32 %s39, 1
      %p43 = scmp.eq.s32.totalorder %s31, 1
      %p44 = scmp.ne.s32.totalorder %s39, %s41
      %p45 = scmp.eq.s32.totalorder %s31, 0
      %p46 = por %p44, %p45
      %p47 = scmp.ne.s32.totalorder %s39, %s41
      %p48 = scmp.eq.s32.totalorder %s36, 1
      %p49 = por %p47, %p48
      %p50 = scmp.ne.s32.totalorder %s41, %s42
      %p51 = scmp.eq.s32.totalorder %s36, 0
      %p52 = por %p50, %p51
      %p53 = scmp.ne.s32.totalorder %s41, %s42
      %p54 = scmp.eq.s32.totalorder %s37, 1
      %p55 = por %p53, %p54
      %p57 = scmp.ne.s32.totalorder %s42, %s56
      %p58 = scmp.eq.s32.totalorder %s37, 0
      %p59 = por %p57, %p58
      %s61 = sadd.s32 %s60, 1
      %p64 = scmp.eq.s32.totalorder %s31, 1
      %p65 = scmp.ne.s32.totalorder %s60, %s62
      %p66 = scmp.eq.s32.totalorder %s31, 0
      %p67 = por %p65, %p66
      %p68 = scmp.ne.s32.totalorder %s60, %s62
      %p69 = scmp.eq.s32.totalorder %s36, 1
      %p70 = por %p68, %p69
      %p71 = scmp.ne.s32.totalorder %s62, %s63
      %p72 = scmp.eq.s32.totalorder %s36, 0
      %p73 = por %p71, %p72
      %p74 = scmp.ne.s32.totalorder %s62, %s63
      %p75 = scmp.eq.s32.totalorder %s37, 1
      %p76 = por %p74, %p75
      %p78 = scmp.ne.s32.totalorder %s63, %s77
      %p79 = scmp.eq.s32.totalorder %s37, 0
      %p80 = por %p78, %p79
      %s81 = ssub.s32 %s31, %s38
      %p82 = scmp.eq.s32.totalorder %s81, 0
      %s84 = sadd.s32 %s83, 1
      %s85 = scalar_select %p82, %s83, %s84
      %p88 = pneg %p82
      %p89 = scmp.eq.s32.totalorder %s31, 1
      %p90 = por %p88, %p89
      %p91 = scmp.ne.s32.totalorder %s83, %s86
      %p92 = scmp.eq.s32.totalorder %s31, 0
      %p93 = por %p91, %p92
      %p94 = scmp.ne.s32.totalorder %s83, %s86
      %p95 = scmp.eq.s32.totalorder %s36, 1
      %p96 = por %p94, %p95
      %p97 = scmp.ne.s32.totalorder %s86, %s87
      %p98 = scmp.eq.s32.totalorder %s36, 0
      %p99 = por %p97, %p98
      %p100 = scmp.ne.s32.totalorder %s86, %s87
      %p101 = scmp.eq.s32.totalorder %s37, 1
      %p102 = por %p100, %p101
      %p104 = scmp.ne.s32.totalorder %s87, %s103
      %p105 = scmp.eq.s32.totalorder %s37, 0
      %p106 = por %p104, %p105
      %s108 = sadd.s32 %s107, 1
      %p111 = scmp.eq.s32.totalorder %s31, 1
      %p112 = scmp.ne.s32.totalorder %s107, %s109
      %p113 = scmp.eq.s32.totalorder %s31, 0
      %p114 = por %p112, %p113
      %p115 = scmp.ne.s32.totalorder %s107, %s109
      %p116 = scmp.eq.s32.totalorder %s36, 1
      %p117 = por %p115, %p116
      %p118 = scmp.ne.s32.totalorder %s109, %s110
      %p119 = scmp.eq.s32.totalorder %s36, 0
      %p120 = por %p118, %p119
      %p121 = scmp.ne.s32.totalorder %s109, %s110
      %p122 = scmp.eq.s32.totalorder %s37, 1
      %p123 = por %p121, %p122
      %p125 = scmp.ne.s32.totalorder %s110, %s124
      %p126 = scmp.eq.s32.totalorder %s37, 0
      %p127 = por %p125, %p126
      %s129 = sadd.s32 %s128, 1
      %p132 = scmp.eq.s32.totalorder %s31, 1
      %p133 = scmp.ne.s32.totalorder %s128, %s130
      %p134 = scmp.eq.s32.totalorder %s31, 0
      %p135 = por %p133, %p134
      %p136 = scmp.ne.s32.totalorder %s128, %s130
      %p137 = scmp.eq.s32.totalorder %s36, 1
      %p138 = por %p136, %p137
      %p139 = scmp.ne.s32.totalorder %s130, %s131
      %p140 = scmp.eq.s32.totalorder %s36, 0
      %p141 = por %p139, %p140
      %p142 = scmp.ne.s32.totalorder %s130, %s131
      %p143 = scmp.eq.s32.totalorder %s37, 1
      %p144 = por %p142, %p143
      %p146 = scmp.ne.s32.totalorder %s131, %s145
      %p147 = scmp.eq.s32.totalorder %s37, 0
      %p148 = por %p146, %p147
      %s150 = sadd.s32 %s149, 1
      %p153 = scmp.eq.s32.totalorder %s31, 1
      %p154 = scmp.ne.s32.totalorder %s149, %s151
      %p155 = scmp.eq.s32.totalorder %s31, 0
      %p156 = por %p154, %p155
      %p157 = scmp.ne.s32.totalorder %s149, %s151
      %p158 = scmp.eq.s32.totalorder %s36, 1
      %p159 = por %p157, %p158
      %p160 = scmp.ne.s32.totalorder %s151, %s152
      %p161 = scmp.eq.s32.totalorder %s36, 0
      %p162 = por %p160, %p161
      %p163 = scmp.ne.s32.totalorder %s151, %s152
      %p164 = scmp.eq.s32.totalorder %s37, 1
      %p165 = por %p163, %p164
      %p167 = scmp.ne.s32.totalorder %s152, %s166
      %p168 = scmp.eq.s32.totalorder %s37, 0
      %p169 = por %p167, %p168
      %s171 = sadd.s32 %s170, 1
      %p174 = scmp.eq.s32.totalorder %s31, 1
      %p175 = scmp.ne.s32.totalorder %s170, %s172
      %p176 = scmp.eq.s32.totalorder %s31, 0
      %p177 = por %p175, %p176
      %p178 = scmp.ne.s32.totalorder %s170, %s172
      %p179 = scmp.eq.s32.totalorder %s36, 1
      %p180 = por %p178, %p179
      %p181 = scmp.ne.s32.totalorder %s172, %s173
      %p182 = scmp.eq.s32.totalorder %s36, 0
      %p183 = por %p181, %p182
      %p184 = scmp.ne.s32.totalorder %s172, %s173
      %p185 = scmp.eq.s32.totalorder %s37, 1
      %p186 = por %p184, %p185
      %p188 = scmp.ne.s32.totalorder %s173, %s187
      %p189 = scmp.eq.s32.totalorder %s37, 0
      %p190 = por %p188, %p189
      %s192 = sadd.s32 %s191, 1
      %p195 = scmp.eq.s32.totalorder %s31, 1
      %p196 = scmp.ne.s32.totalorder %s191, %s193
      %p197 = scmp.eq.s32.totalorder %s31, 0
      %p198 = por %p196, %p197
      %p199 = scmp.ne.s32.totalorder %s191, %s193
      %p200 = scmp.eq.s32.totalorder %s36, 1
      %p201 = por %p199, %p200
      %p202 = scmp.ne.s32.totalorder %s193, %s194
      %p203 = scmp.eq.s32.totalorder %s36, 0
      %p204 = por %p202, %p203
      %p205 = scmp.ne.s32.totalorder %s193, %s194
      %p206 = scmp.eq.s32.totalorder %s37, 1
      %p207 = por %p205, %p206
      %p209 = scmp.ne.s32.totalorder %s194, %s208
      %p210 = scmp.eq.s32.totalorder %s37, 0
      %p211 = por %p209, %p210
      %s213 = sadd.s32 %s212, 1
      %p216 = scmp.eq.s32.totalorder %s31, 1
      %p217 = scmp.ne.s32.totalorder %s212, %s214
      %p218 = scmp.eq.s32.totalorder %s31, 0
      %p219 = por %p217, %p218
      %p220 = scmp.ne.s32.totalorder %s212, %s214
      %p221 = scmp.eq.s32.totalorder %s36, 1
      %p222 = por %p220, %p221
      %p223 = scmp.ne.s32.totalorder %s214, %s215
      %p224 = scmp.eq.s32.totalorder %s36, 0
      %p225 = por %p223, %p224
      %p226 = scmp.ne.s32.totalorder %s214, %s215
      %p227 = scmp.eq.s32.totalorder %s37, 1
      %p228 = por %p226, %p227
      %p230 = scmp.ne.s32.totalorder %s215, %s229
      %p231 = scmp.eq.s32.totalorder %s37, 0
      %p232 = por %p230, %p231
      %s234 = sadd.s32 %s233, 1
      %p237 = scmp.eq.s32.totalorder %s31, 1
      %p238 = scmp.ne.s32.totalorder %s233, %s235
      %p239 = scmp.eq.s32.totalorder %s31, 0
      %p240 = por %p238, %p239
      %p241 = scmp.ne.s32.totalorder %s233, %s235
      %p242 = scmp.eq.s32.totalorder %s36, 1
      %p243 = por %p241, %p242
      %p244 = scmp.ne.s32.totalorder %s235, %s236
      %p245 = scmp.eq.s32.totalorder %s36, 0
      %p246 = por %p244, %p245
      %p247 = scmp.ne.s32.totalorder %s235, %s236
      %p248 = scmp.eq.s32.totalorder %s37, 1
      %p249 = por %p247, %p248
      %p251 = scmp.ne.s32.totalorder %s236, %s250
      %p252 = scmp.eq.s32.totalorder %s37, 0
      %p253 = por %p251, %p252
      %s255 = sadd.s32 %s254, 1
      %p258 = scmp.eq.s32.totalorder %s31, 1
      %p259 = scmp.ne.s32.totalorder %s254, %s256
      %p260 = scmp.eq.s32.totalorder %s31, 0
      %p261 = por %p259, %p260
      %p262 = scmp.ne.s32.totalorder %s254, %s256
      %p263 = scmp.eq.s32.totalorder %s36, 1
      %p264 = por %p262, %p263
      %p265 = scmp.ne.s32.totalorder %s256, %s257
      %p266 = scmp.eq.s32.totalorder %s36, 0
      %p267 = por %p265, %p266
      %p268 = scmp.ne.s32.totalorder %s256, %s257
      %p269 = scmp.eq.s32.totalorder %s37, 1
      %p270 = por %p268, %p269
      %p272 = scmp.ne.s32.totalorder %s257, %s271
      %p273 = scmp.eq.s32.totalorder %s37, 0
      %p274 = por %p272, %p273
      %s276 = sadd.s32 %s275, 1
      %p279 = scmp.eq.s32.totalorder %s31, 1
      %p280 = scmp.ne.s32.totalorder %s275, %s277
      %p281 = scmp.eq.s32.totalorder %s31, 0
      %p282 = por %p280, %p281
      %p283 = scmp.ne.s32.totalorder %s275, %s277
      %p284 = scmp.eq.s32.totalorder %s36, 1
      %p285 = por %p283, %p284
      %p286 = scmp.ne.s32.totalorder %s277, %s278
      %p287 = scmp.eq.s32.totalorder %s36, 0
      %p288 = por %p286, %p287
      %p289 = scmp.ne.s32.totalorder %s277, %s278
      %p290 = scmp.eq.s32.totalorder %s37, 1
      %p291 = por %p289, %p290
      %p293 = scmp.ne.s32.totalorder %s278, %s292
      %p294 = scmp.eq.s32.totalorder %s37, 0
      %p295 = por %p293, %p294
      %s297 = sadd.s32 %s296, 1
      %p300 = scmp.eq.s32.totalorder %s31, 1
      %p301 = scmp.ne.s32.totalorder %s296, %s298
      %p302 = scmp.eq.s32.totalorder %s31, 0
      %p303 = por %p301, %p302
      %p304 = scmp.ne.s32.totalorder %s296, %s298
      %p305 = scmp.eq.s32.totalorder %s36, 1
      %p306 = por %p304, %p305
      %p307 = scmp.ne.s32.totalorder %s298, %s299
      %p308 = scmp.eq.s32.totalorder %s36, 0
      %p309 = por %p307, %p308
      %p310 = scmp.ne.s32.totalorder %s298, %s299
      %p311 = scmp.eq.s32.totalorder %s37, 1
      %p312 = por %p310, %p311
      %p314 = scmp.ne.s32.totalorder %s299, %s313
      %p315 = scmp.eq.s32.totalorder %s37, 0
      %p316 = por %p314, %p315
      %s318 = sadd.s32 %s317, 1
      %p321 = scmp.eq.s32.totalorder %s31, 1
      %p322 = scmp.ne.s32.totalorder %s317, %s319
      %p323 = scmp.eq.s32.totalorder %s31, 0
      %p324 = por %p322, %p323
      %p325 = scmp.ne.s32.totalorder %s317, %s319
      %p326 = scmp.eq.s32.totalorder %s36, 1
      %p327 = por %p325, %p326
      %p328 = scmp.ne.s32.totalorder %s319, %s320
      %p329 = scmp.eq.s32.totalorder %s36, 0
      %p330 = por %p328, %p329
      %p331 = scmp.ne.s32.totalorder %s319, %s320
      %p332 = scmp.eq.s32.totalorder %s37, 1
      %p333 = por %p331, %p332
      %p335 = scmp.ne.s32.totalorder %s320, %s334
      %p336 = scmp.eq.s32.totalorder %s37, 0
      %p337 = por %p335, %p336
      %s339 = sadd.s32 %s338, 1
      %p342 = scmp.eq.s32.totalorder %s31, 1
      %p343 = scmp.ne.s32.totalorder %s338, %s340
      %p344 = scmp.eq.s32.totalorder %s31, 0
      %p345 = por %p343, %p344
      %p346 = scmp.ne.s32.totalorder %s338, %s340
      %p347 = scmp.eq.s32.totalorder %s36, 1
      %p348 = por %p346, %p347
      %p349 = scmp.ne.s32.totalorder %s340, %s341
      %p350 = scmp.eq.s32.totalorder %s36, 0
      %p351 = por %p349, %p350
      %p352 = scmp.ne.s32.totalorder %s340, %s341
      %p353 = scmp.eq.s32.totalorder %s37, 1
      %p354 = por %p352, %p353
      %p356 = scmp.ne.s32.totalorder %s341, %s355
      %p357 = scmp.eq.s32.totalorder %s37, 0
      %p358 = por %p356, %p357
      %s360 = sadd.s32 %s359, 1
      %p363 = scmp.eq.s32.totalorder %s31, 1
      %p364 = scmp.ne.s32.totalorder %s359, %s361
      %p365 = scmp.eq.s32.totalorder %s31, 0
      %p366 = por %p364, %p365
      %p367 = scmp.ne.s32.totalorder %s359, %s361
      %p368 = scmp.eq.s32.totalorder %s36, 1
      %p369 = por %p367, %p368
      %p370 = scmp.ne.s32.totalorder %s361, %s362
      %p371 = scmp.eq.s32.totalorder %s36, 0
      %p372 = por %p370, %p371
      %p373 = scmp.ne.s32.totalorder %s361, %s362
      %p374 = scmp.eq.s32.totalorder %s37, 1
      %p375 = por %p373, %p374
      %p377 = scmp.ne.s32.totalorder %s362, %s376
      %p378 = scmp.eq.s32.totalorder %s37, 0
      %p379 = por %p377, %p378
      %s381 = sadd.s32 %s380, 1
      %p384 = scmp.eq.s32.totalorder %s31, 1
      %p385 = scmp.ne.s32.totalorder %s380, %s382
      %p386 = scmp.eq.s32.totalorder %s31, 0
      %p387 = por %p385, %p386
      %p388 = scmp.ne.s32.totalorder %s380, %s382
      %p389 = scmp.eq.s32.totalorder %s36, 1
      %p390 = por %p388, %p389
      %p391 = scmp.ne.s32.totalorder %s382, %s383
      %p392 = scmp.eq.s32.totalorder %s36, 0
      %p393 = por %p391, %p392
      %p394 = scmp.ne.s32.totalorder %s382, %s383
      %p395 = scmp.eq.s32.totalorder %s37, 1
      %p396 = por %p394, %p395
      %p398 = scmp.ne.s32.totalorder %s383, %s397
      %p399 = scmp.eq.s32.totalorder %s37, 0
      %p400 = por %p398, %p399
      %s402 = sadd.s32 %s401, 1
      %p405 = scmp.eq.s32.totalorder %s31, 1
      %p406 = scmp.ne.s32.totalorder %s401, %s403
      %p407 = scmp.eq.s32.totalorder %s31, 0
      %p408 = por %p406, %p407
      %p409 = scmp.ne.s32.totalorder %s401, %s403
      %p410 = scmp.eq.s32.totalorder %s36, 1
      %p411 = por %p409, %p410
      %p412 = scmp.ne.s32.totalorder %s403, %s404
      %p413 = scmp.eq.s32.totalorder %s36, 0
      %p414 = por %p412, %p413
      %p415 = scmp.ne.s32.totalorder %s403, %s404
      %p416 = scmp.eq.s32.totalorder %s37, 1
      %p417 = por %p415, %p416
      %p419 = scmp.ne.s32.totalorder %s404, %s418
      %p420 = scmp.eq.s32.totalorder %s37, 0
      %p421 = por %p419, %p420
      %s423 = sadd.s32 %s422, 1
      %p426 = scmp.eq.s32.totalorder %s31, 1
      %p427 = scmp.ne.s32.totalorder %s422, %s424
      %p428 = scmp.eq.s32.totalorder %s31, 0
      %p429 = por %p427, %p428
      %p430 = scmp.ne.s32.totalorder %s422, %s424
      %p431 = scmp.eq.s32.totalorder %s36, 1
      %p432 = por %p430, %p431
      %p433 = scmp.ne.s32.totalorder %s424, %s425
      %p434 = scmp.eq.s32.totalorder %s36, 0
      %p435 = por %p433, %p434
      %p436 = scmp.ne.s32.totalorder %s424, %s425
      %p437 = scmp.eq.s32.totalorder %s37, 1
      %p438 = por %p436, %p437
      %p440 = scmp.ne.s32.totalorder %s425, %s439
      %p441 = scmp.eq.s32.totalorder %s37, 0
      %p442 = por %p440, %p441
      %s443 = ssub.s32 %s31, %s38
      %p444 = scmp.eq.s32.totalorder %s443, 0
      %s446 = sadd.s32 %s445, 1
      %s447 = scalar_select %p444, %s445, %s446
      %p450 = pneg %p444
      %p451 = scmp.eq.s32.totalorder %s31, 1
      %p452 = por %p450, %p451
      %p453 = scmp.ne.s32.totalorder %s445, %s448
      %p454 = scmp.eq.s32.totalorder %s31, 0
      %p455 = por %p453, %p454
      %p456 = scmp.ne.s32.totalorder %s445, %s448
      %p457 = scmp.eq.s32.totalorder %s36, 1
      %p458 = por %p456, %p457
      %p459 = scmp.ne.s32.totalorder %s448, %s449
      %p460 = scmp.eq.s32.totalorder %s36, 0
      %p461 = por %p459, %p460
      %p462 = scmp.ne.s32.totalorder %s448, %s449
      %p463 = scmp.eq.s32.totalorder %s37, 1
      %p464 = por %p462, %p463
      %p466 = scmp.ne.s32.totalorder %s449, %s465
      %p467 = scmp.eq.s32.totalorder %s37, 0
      %p468 = por %p466, %p467
      %p469 = scmp.le.s32.totalorder 1, %s31
      %p470 = scmp.lt.s32.totalorder %s31, 3
      %p471 = pnand %p469, %p470
      %p472 = pneg %p471
      // Predicated region
      $region9: #{gcn_forward.1} parent=5 // pred_check
        _
      $region10: #{gcn_forward.1} parent=5 // pred_check_branch
        %474 = sbr.rel (%p471) target = $region12
      $region11: #{gcn_forward.1} parent=5 // pred_region
        %s475 = ssub.s32 %s31, 1
        // Predicated region
        $region13: #{gcn_forward.1} parent=11 // pred_check
          %p476 = pneg %p52
        $region14: #{gcn_forward.1} parent=11 // pred_check_branch
          %478 = sbr.rel (%p476) target = $region16
        $region15: #{gcn_forward.1} parent=11 // pred_region
          %s480 = ssub.s32 16384, 16384
          %481 = vsyncadd [#allocation3], %s480
          %s482 = sshll.u32 [#allocation2], 4
          %s483 = int_to_ptr.vmem [resolvable:$true] %s482
          %488 = dma.hbm_to_vmem [thread:$0]  %s0, 16384, %s483, [#allocation3], 256, 256, 16
        $region16: #{gcn_forward.1} parent=11 // pred_fallthru
          _
        // Predicated region
        $region17: #{gcn_forward.1} parent=11 // pred_check
          %p489 = pneg %p73
        $region18: #{gcn_forward.1} parent=11 // pred_check_branch
          %491 = sbr.rel (%p489) target = $region20
        $region19: #{gcn_forward.1} parent=11 // pred_region
          %s493 = ssub.s32 4096, 4096
          %494 = vsyncadd [#allocation5], %s493
          %s495 = sshll.u32 [#allocation4], 4
          %s496 = int_to_ptr.vmem [resolvable:$true] %s495
          %501 = dma.hbm_to_vmem [thread:$0]  %s1, 4096, %s496, [#allocation5], 128, 128, 8
        $region20: #{gcn_forward.1} parent=11 // pred_fallthru
          _
        // Predicated region
        $region21: #{gcn_forward.1} parent=11 // pred_check
          %p502 = pneg %p120
        $region22: #{gcn_forward.1} parent=11 // pred_check_branch
          %504 = sbr.rel (%p502) target = $region24
        $region23: #{gcn_forward.1} parent=11 // pred_region
          %s506 = ssub.s32 24576, 24576
          %507 = vsyncadd [#allocation5], %s506
          %s508 = sshll.u32 [#allocation6], 4
          %s509 = int_to_ptr.vmem [resolvable:$true] %s508
          %514 = dma.hbm_to_vmem [thread:$0]  %s3, 24576, %s509, [#allocation5], 128, 128, 8
        $region24: #{gcn_forward.1} parent=11 // pred_fallthru
          _
        // Predicated region
        $region25: #{gcn_forward.1} parent=11 // pred_check
          %p515 = pneg %p141
        $region26: #{gcn_forward.1} parent=11 // pred_check_branch
          %517 = sbr.rel (%p515) target = $region28
        $region27: #{gcn_forward.1} parent=11 // pred_region
          _
        $region28: #{gcn_forward.1} parent=11 // pred_fallthru
          _
        // Predicated region
        $region29: #{gcn_forward.1} parent=11 // pred_check
          %p518 = pneg %p162
        $region30: #{gcn_forward.1} parent=11 // pred_check_branch
          %520 = sbr.rel (%p518) target = $region32
        $region31: #{gcn_forward.1} parent=11 // pred_region
          _
        $region32: #{gcn_forward.1} parent=11 // pred_fallthru
          _
        // Predicated region
        $region33: #{gcn_forward.1} parent=11 // pred_check
          %p521 = pneg %p183
        $region34: #{gcn_forward.1} parent=11 // pred_check_branch
          %523 = sbr.rel (%p521) target = $region36
        $region35: #{gcn_forward.1} parent=11 // pred_region
          _
        $region36: #{gcn_forward.1} parent=11 // pred_fallthru
          _
        // Predicated region
        $region37: #{gcn_forward.1} parent=11 // pred_check
          %p524 = pneg %p204
        $region38: #{gcn_forward.1} parent=11 // pred_check_branch
          %526 = sbr.rel (%p524) target = $region40
        $region39: #{gcn_forward.1} parent=11 // pred_region
          %s528 = ssub.s32 12288, 12288
          %529 = vsyncadd [#allocation8], %s528
          %s530 = sshll.u32 [#allocation7], 4
          %s531 = int_to_ptr.vmem [resolvable:$true] %s530
          %536 = dma.hbm_to_vmem [thread:$0]  %s7, 12288, %s531, [#allocation8], 128, 128, 8
        $region40: #{gcn_forward.1} parent=11 // pred_fallthru
          _
        // Predicated region
        $region41: #{gcn_forward.1} parent=11 // pred_check
          %p537 = pneg %p225
        $region42: #{gcn_forward.1} parent=11 // pred_check_branch
          %539 = sbr.rel (%p537) target = $region44
        $region43: #{gcn_forward.1} parent=11 // pred_region
          _
        $region44: #{gcn_forward.1} parent=11 // pred_fallthru
          _
        // Predicated region
        $region45: #{gcn_forward.1} parent=11 // pred_check
          %p540 = pneg %p246
        $region46: #{gcn_forward.1} parent=11 // pred_check_branch
          %542 = sbr.rel (%p540) target = $region48
        $region47: #{gcn_forward.1} parent=11 // pred_region
          %s544 = ssub.s32 12288, 12288
          %545 = vsyncadd [#allocation8], %s544
          %s546 = sshll.u32 [#allocation9], 4
          %s547 = int_to_ptr.vmem [resolvable:$true] %s546
          %552 = dma.hbm_to_vmem [thread:$0]  %s9, 12288, %s547, [#allocation8], 128, 128, 8
        $region48: #{gcn_forward.1} parent=11 // pred_fallthru
          _
        // Predicated region
        $region49: #{gcn_forward.1} parent=11 // pred_check
          %p553 = pneg %p267
        $region50: #{gcn_forward.1} parent=11 // pred_check_branch
          %555 = sbr.rel (%p553) target = $region52
        $region51: #{gcn_forward.1} parent=11 // pred_region
          %s557 = ssub.s32 32, 32
          %558 = vsyncadd [#allocation11], %s557
          %s560 = sshll.u32 [#allocation10], 4
          %s561 = int_to_ptr.vmem [resolvable:$true] %s560
          %563 = dma.hbm_to_vmem [thread:$0]  %s10, 32, %s561, [#allocation11]
        $region52: #{gcn_forward.1} parent=11 // pred_fallthru
          _
        // Predicated region
        $region53: #{gcn_forward.1} parent=11 // pred_check
          %p564 = pneg %p288
        $region54: #{gcn_forward.1} parent=11 // pred_check_branch
          %566 = sbr.rel (%p564) target = $region56
        $region55: #{gcn_forward.1} parent=11 // pred_region
          _
        $region56: #{gcn_forward.1} parent=11 // pred_fallthru
          _
        // Predicated region
        $region57: #{gcn_forward.1} parent=11 // pred_check
          %p567 = pneg %p309
        $region58: #{gcn_forward.1} parent=11 // pred_check_branch
          %569 = sbr.rel (%p567) target = $region60
        $region59: #{gcn_forward.1} parent=11 // pred_region
          _
        $region60: #{gcn_forward.1} parent=11 // pred_fallthru
          _
        // Predicated region
        $region61: #{gcn_forward.1} parent=11 // pred_check
          %p570 = pneg %p330
        $region62: #{gcn_forward.1} parent=11 // pred_check_branch
          %572 = sbr.rel (%p570) target = $region64
        $region63: #{gcn_forward.1} parent=11 // pred_region
          _
        $region64: #{gcn_forward.1} parent=11 // pred_fallthru
          _
        // Predicated region
        $region65: #{gcn_forward.1} parent=11 // pred_check
          %p573 = pneg %p351
        $region66: #{gcn_forward.1} parent=11 // pred_check_branch
          %575 = sbr.rel (%p573) target = $region68
        $region67: #{gcn_forward.1} parent=11 // pred_region
          %s577 = ssub.s32 16, 16
          %578 = vsyncadd [#allocation11], %s577
          %s580 = sshll.u32 [#allocation12], 4
          %s581 = int_to_ptr.vmem [resolvable:$true] %s580
          %583 = dma.hbm_to_vmem [thread:$0]  %s14, 16, %s581, [#allocation11]
        $region68: #{gcn_forward.1} parent=11 // pred_fallthru
          _
        // Predicated region
        $region69: #{gcn_forward.1} parent=11 // pred_check
          %p584 = pneg %p372
        $region70: #{gcn_forward.1} parent=11 // pred_check_branch
          %586 = sbr.rel (%p584) target = $region72
        $region71: #{gcn_forward.1} parent=11 // pred_region
          %s588 = ssub.s32 256, 256
          %589 = vsyncadd [#allocation14], %s588
          %s590 = sshll.u32 [#allocation13], 4
          %s591 = int_to_ptr.vmem [resolvable:$true] %s590
          %596 = dma.hbm_to_vmem [thread:$0]  %s15, 256, %s591, [#allocation14], 64, 64, 4
        $region72: #{gcn_forward.1} parent=11 // pred_fallthru
          _
        // Predicated region
        $region73: #{gcn_forward.1} parent=11 // pred_check
          %p597 = pneg %p393
        $region74: #{gcn_forward.1} parent=11 // pred_check_branch
          %599 = sbr.rel (%p597) target = $region76
        $region75: #{gcn_forward.1} parent=11 // pred_region
          %s601 = ssub.s32 16, 16
          %602 = vsyncadd [#allocation14], %s601
          %s604 = sshll.u32 [#allocation15], 4
          %s605 = int_to_ptr.vmem [resolvable:$true] %s604
          %607 = dma.hbm_to_vmem [thread:$0]  %s16, 16, %s605, [#allocation14]
        $region76: #{gcn_forward.1} parent=11 // pred_fallthru
          _
        // Predicated region
        $region77: #{gcn_forward.1} parent=11 // pred_check
          %p608 = pneg %p414
        $region78: #{gcn_forward.1} parent=11 // pred_check_branch
          %610 = sbr.rel (%p608) target = $region80
        $region79: #{gcn_forward.1} parent=11 // pred_region
          _
        $region80: #{gcn_forward.1} parent=11 // pred_fallthru
          _
        // Predicated region
        $region81: #{gcn_forward.1} parent=11 // pred_check
          %p611 = pneg %p435
        $region82: #{gcn_forward.1} parent=11 // pred_check_branch
          %613 = sbr.rel (%p611) target = $region84
        $region83: #{gcn_forward.1} parent=11 // pred_region
          %s615 = ssub.s32 16, 16
          %616 = vsyncadd [#allocation17], %s615
          %s618 = sshll.u32 [#allocation16], 4
          %s619 = int_to_ptr.vmem [resolvable:$true] %s618
          %621 = dma.hbm_to_vmem [thread:$0]  %s18, 16, %s619, [#allocation17]
        $region84: #{gcn_forward.1} parent=11 // pred_fallthru
          _
      $region12: #{gcn_forward.1} parent=5 // pred_fallthru
        _
      %p622 = scmp.lt.s32.totalorder %s31, 2
      // Predicated region
      $region85: #{gcn_forward.1} parent=5 // pred_check
        %p623 = pneg %p622
      $region86: #{gcn_forward.1} parent=5 // pred_check_branch
        %625 = sbr.rel (%p623) target = $region88
      $region87: #{gcn_forward.1} parent=5 // pred_region
        // Predicated region
        $region89: #{gcn_forward.1} parent=87 // pred_check
          %p626 = pneg %p93
        $region90: #{gcn_forward.1} parent=87 // pred_check_branch
          %628 = sbr.rel (%p626) target = $region92
        $region91: #{gcn_forward.1} parent=87 // pred_region
          %p629 = scmp.lt.s32.totalorder %s31, 1
          %s630 = scalar_select %p629, %s31, 1
          %s631 = smul.addr %s630, 4
          %s632 = smul.addr %s631, 8
          %s633 = scalar_lea.vmem %s2, %s632
        $region92: #{gcn_forward.1} parent=87 // pred_fallthru
          _
      $region88: #{gcn_forward.1} parent=5 // pred_fallthru
        _
      %p634 = scmp.le.s32.totalorder 1, %s31
      %p635 = scmp.lt.s32.totalorder %s31, 3
      %p636 = pnand %p634, %p635
      %p637 = pneg %p636
      // Predicated region
      $region93: #{gcn_forward.1} parent=5 // pred_check
        _
      $region94: #{gcn_forward.1} parent=5 // pred_check_branch
        %639 = sbr.rel (%p636) target = $region96
      $region95: #{gcn_forward.1} parent=5 // pred_region
        %s640 = ssub.s32 %s31, 1
        // Predicated region
        $region97: #{gcn_forward.1} parent=95 // pred_check
          %p641 = pneg %p52
        $region98: #{gcn_forward.1} parent=95 // pred_check_branch
          %643 = sbr.rel (%p641) target = $region100
        $region99: #{gcn_forward.1} parent=95 // pred_region
          %644 = dma.done [#allocation3], 16384
        $region100: #{gcn_forward.1} parent=95 // pred_fallthru
          _
        // Predicated region
        $region101: #{gcn_forward.1} parent=95 // pred_check
          %p645 = pneg %p73
        $region102: #{gcn_forward.1} parent=95 // pred_check_branch
          %647 = sbr.rel (%p645) target = $region104
        $region103: #{gcn_forward.1} parent=95 // pred_region
          %648 = dma.done [#allocation5], 4096
        $region104: #{gcn_forward.1} parent=95 // pred_fallthru
          _
        // Predicated region
        $region105: #{gcn_forward.1} parent=95 // pred_check
          %p649 = pneg %p120
        $region106: #{gcn_forward.1} parent=95 // pred_check_branch
          %651 = sbr.rel (%p649) target = $region108
        $region107: #{gcn_forward.1} parent=95 // pred_region
          %652 = dma.done [#allocation5], 24576
        $region108: #{gcn_forward.1} parent=95 // pred_fallthru
          _
        // Predicated region
        $region109: #{gcn_forward.1} parent=95 // pred_check
          %p653 = pneg %p204
        $region110: #{gcn_forward.1} parent=95 // pred_check_branch
          %655 = sbr.rel (%p653) target = $region112
        $region111: #{gcn_forward.1} parent=95 // pred_region
          %656 = dma.done [#allocation8], 12288
        $region112: #{gcn_forward.1} parent=95 // pred_fallthru
          _
        // Predicated region
        $region113: #{gcn_forward.1} parent=95 // pred_check
          %p657 = pneg %p246
        $region114: #{gcn_forward.1} parent=95 // pred_check_branch
          %659 = sbr.rel (%p657) target = $region116
        $region115: #{gcn_forward.1} parent=95 // pred_region
          %660 = dma.done [#allocation8], 12288
        $region116: #{gcn_forward.1} parent=95 // pred_fallthru
          _
        // Predicated region
        $region117: #{gcn_forward.1} parent=95 // pred_check
          %p661 = pneg %p267
        $region118: #{gcn_forward.1} parent=95 // pred_check_branch
          %663 = sbr.rel (%p661) target = $region120
        $region119: #{gcn_forward.1} parent=95 // pred_region
          %664 = dma.done [#allocation11], 32
        $region120: #{gcn_forward.1} parent=95 // pred_fallthru
          _
        // Predicated region
        $region121: #{gcn_forward.1} parent=95 // pred_check
          %p665 = pneg %p351
        $region122: #{gcn_forward.1} parent=95 // pred_check_branch
          %667 = sbr.rel (%p665) target = $region124
        $region123: #{gcn_forward.1} parent=95 // pred_region
          %668 = dma.done [#allocation11], 16
        $region124: #{gcn_forward.1} parent=95 // pred_fallthru
          _
        // Predicated region
        $region125: #{gcn_forward.1} parent=95 // pred_check
          %p669 = pneg %p372
        $region126: #{gcn_forward.1} parent=95 // pred_check_branch
          %671 = sbr.rel (%p669) target = $region128
        $region127: #{gcn_forward.1} parent=95 // pred_region
          %672 = dma.done [#allocation14], 256
        $region128: #{gcn_forward.1} parent=95 // pred_fallthru
          _
        // Predicated region
        $region129: #{gcn_forward.1} parent=95 // pred_check
          %p673 = pneg %p393
        $region130: #{gcn_forward.1} parent=95 // pred_check_branch
          %675 = sbr.rel (%p673) target = $region132
        $region131: #{gcn_forward.1} parent=95 // pred_region
          %676 = dma.done [#allocation14], 16
        $region132: #{gcn_forward.1} parent=95 // pred_fallthru
          _
        // Predicated region
        $region133: #{gcn_forward.1} parent=95 // pred_check
          %p677 = pneg %p435
        $region134: #{gcn_forward.1} parent=95 // pred_check_branch
          %679 = sbr.rel (%p677) target = $region136
        $region135: #{gcn_forward.1} parent=95 // pred_region
          %680 = dma.done [#allocation17], 16
        $region136: #{gcn_forward.1} parent=95 // pred_fallthru
          _
        %p681 = pneg %p52
        %p682 = pneg %p49
        %p683 = pneg %p73
        %p684 = pneg %p70
        %p685 = scmp.lt.s32.totalorder %s36, 1
        %s686 = scalar_select %p685, %s36, 1
        %s687 = smul.addr %s686, 4
        %s688 = smul.addr %s687, 8
        %s689 = scalar_lea.vmem %s2, %s688
        %p690 = pneg %p99
        %p691 = pneg %p96
        %p692 = pneg %p120
        %p693 = pneg %p117
        %p694 = pneg %p141
        %p695 = pneg %p138
        %p696 = pneg %p162
        %p697 = pneg %p159
        %p698 = pneg %p183
        %p699 = pneg %p180
        %p700 = pneg %p204
        %p701 = pneg %p201
        %p702 = pneg %p225
        %p703 = pneg %p222
        %p704 = pneg %p246
        %p705 = pneg %p243
        %p706 = pneg %p267
        %p707 = pneg %p264
        %p708 = pneg %p288
        %p709 = pneg %p285
        %p710 = pneg %p309
        %p711 = pneg %p306
        %p712 = pneg %p330
        %p713 = pneg %p327
        %p714 = pneg %p351
        %p715 = pneg %p348
        %p716 = pneg %p372
        %p717 = pneg %p369
        %p718 = pneg %p393
        %p719 = pneg %p390
        %p720 = pneg %p414
        %p721 = pneg %p411
        %p722 = pneg %p435
        %p723 = pneg %p432
        %p724 = pneg %p461
        %p725 = pneg %p458
        %p726 = scmp.lt.s32.totalorder %s36, 1
        %s727 = scalar_select %p726, %s36, 1
        %s728 = smul.addr %s727, 8
        %s729 = scalar_lea.vmem %s19, %s728
        %p730 = scmp.lt.s32.totalorder %s36, 1
        %s731 = scalar_select %p730, %s36, 1
        %s732 = smul.addr %s731, 4
        %s733 = smul.addr %s732, 8
        %s734 = scalar_lea.vmem %s2, %s733
        %p735 = scmp.lt.s32.totalorder %s36, 1
        %s736 = scalar_select %p735, %s36, 1
        %s737 = smul.addr %s736, 8
        %s738 = scalar_lea.vmem %s19, %s737
        %v740 = vld [vmem:[#allocation2] sm:$0xff]
        %v741 = vld [vmem:[#allocation2 + $0x8] sm:$0xff]
        %v742 = vld [vmem:[#allocation2 + $0x10] sm:$0xff]
        %v743 = vld [vmem:[#allocation2 + $0x18] sm:$0xff]
        %v744 = vld [vmem:[#allocation2 + $0x20] sm:$0xff]
        %v745 = vld [vmem:[#allocation2 + $0x28] sm:$0xff]
        %v746 = vld [vmem:[#allocation2 + $0x30] sm:$0xff]
        %v747 = vld [vmem:[#allocation2 + $0x38] sm:$0xff]
        %v748 = vld [vmem:[#allocation2 + $0x40] sm:$0xff]
        %v749 = vld [vmem:[#allocation2 + $0x48] sm:$0xff]
        %v750 = vld [vmem:[#allocation2 + $0x50] sm:$0xff]
        %v751 = vld [vmem:[#allocation2 + $0x58] sm:$0xff]
        %v752 = vld [vmem:[#allocation2 + $0x60] sm:$0xff]
        %v753 = vld [vmem:[#allocation2 + $0x68] sm:$0xff]
        %v754 = vld [vmem:[#allocation2 + $0x70] sm:$0xff]
        %v755 = vld [vmem:[#allocation2 + $0x78] sm:$0xff]
        %v756 = vld [vmem:[#allocation2 + $0x80] sm:$0xff]
        %v757 = vld [vmem:[#allocation2 + $0x88] sm:$0xff]
        %v758 = vld [vmem:[#allocation2 + $0x90] sm:$0xff]
        %v759 = vld [vmem:[#allocation2 + $0x98] sm:$0xff]
        %v760 = vld [vmem:[#allocation2 + $0xa0] sm:$0xff]
        %v761 = vld [vmem:[#allocation2 + $0xa8] sm:$0xff]
        %v762 = vld [vmem:[#allocation2 + $0xb0] sm:$0xff]
        %v763 = vld [vmem:[#allocation2 + $0xb8] sm:$0xff]
        %v764 = vld [vmem:[#allocation2 + $0xc0] sm:$0xff]
        %v765 = vld [vmem:[#allocation2 + $0xc8] sm:$0xff]
        %v766 = vld [vmem:[#allocation2 + $0xd0] sm:$0xff]
        %v767 = vld [vmem:[#allocation2 + $0xd8] sm:$0xff]
        %v768 = vld [vmem:[#allocation2 + $0xe0] sm:$0xff]
        %v769 = vld [vmem:[#allocation2 + $0xe8] sm:$0xff]
        %v770 = vld [vmem:[#allocation2 + $0xf0] sm:$0xff]
        %v771 = vld [vmem:[#allocation2 + $0xf8] sm:$0xff]
        %v772 = vld [vmem:[#allocation2 + $0x100] sm:$0xff]
        %v773 = vld [vmem:[#allocation2 + $0x108] sm:$0xff]
        %v774 = vld [vmem:[#allocation2 + $0x110] sm:$0xff]
        %v775 = vld [vmem:[#allocation2 + $0x118] sm:$0xff]
        %v776 = vld [vmem:[#allocation2 + $0x120] sm:$0xff]
        %v777 = vld [vmem:[#allocation2 + $0x128] sm:$0xff]
        %v778 = vld [vmem:[#allocation2 + $0x130] sm:$0xff]
        %v779 = vld [vmem:[#allocation2 + $0x138] sm:$0xff]
        %v780 = vld [vmem:[#allocation2 + $0x140] sm:$0xff]
        %v781 = vld [vmem:[#allocation2 + $0x148] sm:$0xff]
        %v782 = vld [vmem:[#allocation2 + $0x150] sm:$0xff]
        %v783 = vld [vmem:[#allocation2 + $0x158] sm:$0xff]
        %v784 = vld [vmem:[#allocation2 + $0x160] sm:$0xff]
        %v785 = vld [vmem:[#allocation2 + $0x168] sm:$0xff]
        %v786 = vld [vmem:[#allocation2 + $0x170] sm:$0xff]
        %v787 = vld [vmem:[#allocation2 + $0x178] sm:$0xff]
        %v788 = vld [vmem:[#allocation2 + $0x180] sm:$0xff]
        %v789 = vld [vmem:[#allocation2 + $0x188] sm:$0xff]
        %v790 = vld [vmem:[#allocation2 + $0x190] sm:$0xff]
        %v791 = vld [vmem:[#allocation2 + $0x198] sm:$0xff]
        %v792 = vld [vmem:[#allocation2 + $0x1a0] sm:$0xff]
        %v793 = vld [vmem:[#allocation2 + $0x1a8] sm:$0xff]
        %v794 = vld [vmem:[#allocation2 + $0x1b0] sm:$0xff]
        %v795 = vld [vmem:[#allocation2 + $0x1b8] sm:$0xff]
        %v796 = vld [vmem:[#allocation2 + $0x1c0] sm:$0xff]
        %v797 = vld [vmem:[#allocation2 + $0x1c8] sm:$0xff]
        %v798 = vld [vmem:[#allocation2 + $0x1d0] sm:$0xff]
        %v799 = vld [vmem:[#allocation2 + $0x1d8] sm:$0xff]
        %v800 = vld [vmem:[#allocation2 + $0x1e0] sm:$0xff]
        %v801 = vld [vmem:[#allocation2 + $0x1e8] sm:$0xff]
        %v802 = vld [vmem:[#allocation2 + $0x1f0] sm:$0xff]
        %v803 = vld [vmem:[#allocation2 + $0x1f8] sm:$0xff]
        %v804 = vld [vmem:[#allocation2 + $0x200] sm:$0xff]
        %v805 = vld [vmem:[#allocation2 + $0x208] sm:$0xff]
        %v806 = vld [vmem:[#allocation2 + $0x210] sm:$0xff]
        %v807 = vld [vmem:[#allocation2 + $0x218] sm:$0xff]
        %v808 = vld [vmem:[#allocation2 + $0x220] sm:$0xff]
        %v809 = vld [vmem:[#allocation2 + $0x228] sm:$0xff]
        %v810 = vld [vmem:[#allocation2 + $0x230] sm:$0xff]
        %v811 = vld [vmem:[#allocation2 + $0x238] sm:$0xff]
        %v812 = vld [vmem:[#allocation2 + $0x240] sm:$0xff]
        %v813 = vld [vmem:[#allocation2 + $0x248] sm:$0xff]
        %v814 = vld [vmem:[#allocation2 + $0x250] sm:$0xff]
        %v815 = vld [vmem:[#allocation2 + $0x258] sm:$0xff]
        %v816 = vld [vmem:[#allocation2 + $0x260] sm:$0xff]
        %v817 = vld [vmem:[#allocation2 + $0x268] sm:$0xff]
        %v818 = vld [vmem:[#allocation2 + $0x270] sm:$0xff]
        %v819 = vld [vmem:[#allocation2 + $0x278] sm:$0xff]
        %v820 = vld [vmem:[#allocation2 + $0x280] sm:$0xff]
        %v821 = vld [vmem:[#allocation2 + $0x288] sm:$0xff]
        %v822 = vld [vmem:[#allocation2 + $0x290] sm:$0xff]
        %v823 = vld [vmem:[#allocation2 + $0x298] sm:$0xff]
        %v824 = vld [vmem:[#allocation2 + $0x2a0] sm:$0xff]
        %v825 = vld [vmem:[#allocation2 + $0x2a8] sm:$0xff]
        %v826 = vld [vmem:[#allocation2 + $0x2b0] sm:$0xff]
        %v827 = vld [vmem:[#allocation2 + $0x2b8] sm:$0xff]
        %v828 = vld [vmem:[#allocation2 + $0x2c0] sm:$0xff]
        %v829 = vld [vmem:[#allocation2 + $0x2c8] sm:$0xff]
        %v830 = vld [vmem:[#allocation2 + $0x2d0] sm:$0xff]
        %v831 = vld [vmem:[#allocation2 + $0x2d8] sm:$0xff]
        %v832 = vld [vmem:[#allocation2 + $0x2e0] sm:$0xff]
        %v833 = vld [vmem:[#allocation2 + $0x2e8] sm:$0xff]
        %v834 = vld [vmem:[#allocation2 + $0x2f0] sm:$0xff]
        %v835 = vld [vmem:[#allocation2 + $0x2f8] sm:$0xff]
        %v836 = vld [vmem:[#allocation2 + $0x300] sm:$0xff]
        %v837 = vld [vmem:[#allocation2 + $0x308] sm:$0xff]
        %v838 = vld [vmem:[#allocation2 + $0x310] sm:$0xff]
        %v839 = vld [vmem:[#allocation2 + $0x318] sm:$0xff]
        %v840 = vld [vmem:[#allocation2 + $0x320] sm:$0xff]
        %v841 = vld [vmem:[#allocation2 + $0x328] sm:$0xff]
        %v842 = vld [vmem:[#allocation2 + $0x330] sm:$0xff]
        %v843 = vld [vmem:[#allocation2 + $0x338] sm:$0xff]
        %v844 = vld [vmem:[#allocation2 + $0x340] sm:$0xff]
        %v845 = vld [vmem:[#allocation2 + $0x348] sm:$0xff]
        %v846 = vld [vmem:[#allocation2 + $0x350] sm:$0xff]
        %v847 = vld [vmem:[#allocation2 + $0x358] sm:$0xff]
        %v848 = vld [vmem:[#allocation2 + $0x360] sm:$0xff]
        %v849 = vld [vmem:[#allocation2 + $0x368] sm:$0xff]
        %v850 = vld [vmem:[#allocation2 + $0x370] sm:$0xff]
        %v851 = vld [vmem:[#allocation2 + $0x378] sm:$0xff]
        %v852 = vld [vmem:[#allocation2 + $0x380] sm:$0xff]
        %v853 = vld [vmem:[#allocation2 + $0x388] sm:$0xff]
        %v854 = vld [vmem:[#allocation2 + $0x390] sm:$0xff]
        %v855 = vld [vmem:[#allocation2 + $0x398] sm:$0xff]
        %v856 = vld [vmem:[#allocation2 + $0x3a0] sm:$0xff]
        %v857 = vld [vmem:[#allocation2 + $0x3a8] sm:$0xff]
        %v858 = vld [vmem:[#allocation2 + $0x3b0] sm:$0xff]
        %v859 = vld [vmem:[#allocation2 + $0x3b8] sm:$0xff]
        %v860 = vld [vmem:[#allocation2 + $0x3c0] sm:$0xff]
        %v861 = vld [vmem:[#allocation2 + $0x3c8] sm:$0xff]
        %v862 = vld [vmem:[#allocation2 + $0x3d0] sm:$0xff]
        %v863 = vld [vmem:[#allocation2 + $0x3d8] sm:$0xff]
        %v864 = vld [vmem:[#allocation2 + $0x3e0] sm:$0xff]
        %v865 = vld [vmem:[#allocation2 + $0x3e8] sm:$0xff]
        %v866 = vld [vmem:[#allocation2 + $0x3f0] sm:$0xff]
        %v867 = vld [vmem:[#allocation2 + $0x3f8] sm:$0xff]
        %v868 = vld [vmem:[#allocation4] sm:$0xff]
        %v869 = vld [vmem:[#allocation4 + $0x8] sm:$0xff]
        %v870 = vld [vmem:[#allocation4 + $0x10] sm:$0xff]
        %v871 = vld [vmem:[#allocation4 + $0x18] sm:$0xff]
        %v872 = vld [vmem:[#allocation4 + $0x20] sm:$0xff]
        %v873 = vld [vmem:[#allocation4 + $0x28] sm:$0xff]
        %v874 = vld [vmem:[#allocation4 + $0x30] sm:$0xff]
        %v875 = vld [vmem:[#allocation4 + $0x38] sm:$0xff]
        %v876 = vld [vmem:[#allocation4 + $0x40] sm:$0xff]
        %v877 = vld [vmem:[#allocation4 + $0x48] sm:$0xff]
        %v878 = vld [vmem:[#allocation4 + $0x50] sm:$0xff]
        %v879 = vld [vmem:[#allocation4 + $0x58] sm:$0xff]
        %v880 = vld [vmem:[#allocation4 + $0x60] sm:$0xff]
        %v881 = vld [vmem:[#allocation4 + $0x68] sm:$0xff]
        %v882 = vld [vmem:[#allocation4 + $0x70] sm:$0xff]
        %v883 = vld [vmem:[#allocation4 + $0x78] sm:$0xff]
        %v884 = vld [vmem:[#allocation4 + $0x80] sm:$0xff]
        %v885 = vld [vmem:[#allocation4 + $0x88] sm:$0xff]
        %v886 = vld [vmem:[#allocation4 + $0x90] sm:$0xff]
        %v887 = vld [vmem:[#allocation4 + $0x98] sm:$0xff]
        %v888 = vld [vmem:[#allocation4 + $0xa0] sm:$0xff]
        %v889 = vld [vmem:[#allocation4 + $0xa8] sm:$0xff]
        %v890 = vld [vmem:[#allocation4 + $0xb0] sm:$0xff]
        %v891 = vld [vmem:[#allocation4 + $0xb8] sm:$0xff]
        %v892 = vld [vmem:[#allocation4 + $0xc0] sm:$0xff]
        %v893 = vld [vmem:[#allocation4 + $0xc8] sm:$0xff]
        %v894 = vld [vmem:[#allocation4 + $0xd0] sm:$0xff]
        %v895 = vld [vmem:[#allocation4 + $0xd8] sm:$0xff]
        %v896 = vld [vmem:[#allocation4 + $0xe0] sm:$0xff]
        %v897 = vld [vmem:[#allocation4 + $0xe8] sm:$0xff]
        %v898 = vld [vmem:[#allocation4 + $0xf0] sm:$0xff]
        %v899 = vld [vmem:[#allocation4 + $0xf8] sm:$0xff]
        %v900 = vld [vmem:[%s734] sm:$0xff]
        %v901 = vld [vmem:[%s734 + $0x8] sm:$0xff]
        %v902 = vld [vmem:[%s734 + $0x10] sm:$0xff]
        %v903 = vld [vmem:[%s734 + $0x18] sm:$0xff]
        %v904 = vld [vmem:[#allocation6] sm:$0xff]
        %v905 = vld [vmem:[#allocation6 + $0x8] sm:$0xff]
        %v906 = vld [vmem:[#allocation6 + $0x10] sm:$0xff]
        %v907 = vld [vmem:[#allocation6 + $0x18] sm:$0xff]
        %v908 = vld [vmem:[#allocation6 + $0x20] sm:$0xff]
        %v909 = vld [vmem:[#allocation6 + $0x28] sm:$0xff]
        %v910 = vld [vmem:[#allocation6 + $0x30] sm:$0xff]
        %v911 = vld [vmem:[#allocation6 + $0x38] sm:$0xff]
        %v912 = vld [vmem:[#allocation6 + $0x40] sm:$0xff]
        %v913 = vld [vmem:[#allocation6 + $0x48] sm:$0xff]
        %v914 = vld [vmem:[#allocation6 + $0x50] sm:$0xff]
        %v915 = vld [vmem:[#allocation6 + $0x58] sm:$0xff]
        %v916 = vld [vmem:[#allocation6 + $0x60] sm:$0xff]
        %v917 = vld [vmem:[#allocation6 + $0x68] sm:$0xff]
        %v918 = vld [vmem:[#allocation6 + $0x70] sm:$0xff]
        %v919 = vld [vmem:[#allocation6 + $0x78] sm:$0xff]
        %v920 = vld [vmem:[#allocation6 + $0x80] sm:$0xff]
        %v921 = vld [vmem:[#allocation6 + $0x88] sm:$0xff]
        %v922 = vld [vmem:[#allocation6 + $0x90] sm:$0xff]
        %v923 = vld [vmem:[#allocation6 + $0x98] sm:$0xff]
        %v924 = vld [vmem:[#allocation6 + $0xa0] sm:$0xff]
        %v925 = vld [vmem:[#allocation6 + $0xa8] sm:$0xff]
        %v926 = vld [vmem:[#allocation6 + $0xb0] sm:$0xff]
        %v927 = vld [vmem:[#allocation6 + $0xb8] sm:$0xff]
        %v928 = vld [vmem:[#allocation6 + $0xc0] sm:$0xff]
        %v929 = vld [vmem:[#allocation6 + $0xc8] sm:$0xff]
        %v930 = vld [vmem:[#allocation6 + $0xd0] sm:$0xff]
        %v931 = vld [vmem:[#allocation6 + $0xd8] sm:$0xff]
        %v932 = vld [vmem:[#allocation6 + $0xe0] sm:$0xff]
        %v933 = vld [vmem:[#allocation6 + $0xe8] sm:$0xff]
        %v934 = vld [vmem:[#allocation6 + $0xf0] sm:$0xff]
        %v935 = vld [vmem:[#allocation6 + $0xf8] sm:$0xff]
        %v936 = vld [vmem:[#allocation6 + $0x100] sm:$0xff]
        %v937 = vld [vmem:[#allocation6 + $0x108] sm:$0xff]
        %v938 = vld [vmem:[#allocation6 + $0x110] sm:$0xff]
        %v939 = vld [vmem:[#allocation6 + $0x118] sm:$0xff]
        %v940 = vld [vmem:[#allocation6 + $0x120] sm:$0xff]
        %v941 = vld [vmem:[#allocation6 + $0x128] sm:$0xff]
        %v942 = vld [vmem:[#allocation6 + $0x130] sm:$0xff]
        %v943 = vld [vmem:[#allocation6 + $0x138] sm:$0xff]
        %v944 = vld [vmem:[#allocation6 + $0x140] sm:$0xff]
        %v945 = vld [vmem:[#allocation6 + $0x148] sm:$0xff]
        %v946 = vld [vmem:[#allocation6 + $0x150] sm:$0xff]
        %v947 = vld [vmem:[#allocation6 + $0x158] sm:$0xff]
        %v948 = vld [vmem:[#allocation6 + $0x160] sm:$0xff]
        %v949 = vld [vmem:[#allocation6 + $0x168] sm:$0xff]
        %v950 = vld [vmem:[#allocation6 + $0x170] sm:$0xff]
        %v951 = vld [vmem:[#allocation6 + $0x178] sm:$0xff]
        %v952 = vld [vmem:[#allocation6 + $0x180] sm:$0xff]
        %v953 = vld [vmem:[#allocation6 + $0x188] sm:$0xff]
        %v954 = vld [vmem:[#allocation6 + $0x190] sm:$0xff]
        %v955 = vld [vmem:[#allocation6 + $0x198] sm:$0xff]
        %v956 = vld [vmem:[#allocation6 + $0x1a0] sm:$0xff]
        %v957 = vld [vmem:[#allocation6 + $0x1a8] sm:$0xff]
        %v958 = vld [vmem:[#allocation6 + $0x1b0] sm:$0xff]
        %v959 = vld [vmem:[#allocation6 + $0x1b8] sm:$0xff]
        %v960 = vld [vmem:[#allocation6 + $0x1c0] sm:$0xff]
        %v961 = vld [vmem:[#allocation6 + $0x1c8] sm:$0xff]
        %v962 = vld [vmem:[#allocation6 + $0x1d0] sm:$0xff]
        %v963 = vld [vmem:[#allocation6 + $0x1d8] sm:$0xff]
        %v964 = vld [vmem:[#allocation6 + $0x1e0] sm:$0xff]
        %v965 = vld [vmem:[#allocation6 + $0x1e8] sm:$0xff]
        %v966 = vld [vmem:[#allocation6 + $0x1f0] sm:$0xff]
        %v967 = vld [vmem:[#allocation6 + $0x1f8] sm:$0xff]
        %v968 = vpack.c.bf16 %v900, %v900
        %v969 = vpack.c.bf16 %v901, %v901
        %v970 = vpack.c.bf16 %v902, %v902
        %v971 = vpack.c.bf16 %v903, %v903
        %v1100 = vunpack.c.l.b16 %v740
        %v1101 = vunpack.c.h.b16 %v740
        %v1102 = vunpack.c.l.b16 %v741
        %v1103 = vunpack.c.h.b16 %v741
        %v1104 = vunpack.c.l.b16 %v742
        %v1105 = vunpack.c.h.b16 %v742
        %v1106 = vunpack.c.l.b16 %v743
        %v1107 = vunpack.c.h.b16 %v743
        %v1108 = vunpack.c.l.b16 %v744
        %v1109 = vunpack.c.h.b16 %v744
        %v1110 = vunpack.c.l.b16 %v745
        %v1111 = vunpack.c.h.b16 %v745
        %v1112 = vunpack.c.l.b16 %v746
        %v1113 = vunpack.c.h.b16 %v746
        %v1114 = vunpack.c.l.b16 %v747
        %v1115 = vunpack.c.h.b16 %v747
        %v1116 = vunpack.c.l.b16 %v748
        %v1117 = vunpack.c.h.b16 %v748
        %v1118 = vunpack.c.l.b16 %v749
        %v1119 = vunpack.c.h.b16 %v749
        %v1120 = vunpack.c.l.b16 %v750
        %v1121 = vunpack.c.h.b16 %v750
        %v1122 = vunpack.c.l.b16 %v751
        %v1123 = vunpack.c.h.b16 %v751
        %v1124 = vunpack.c.l.b16 %v752
        %v1125 = vunpack.c.h.b16 %v752
        %v1126 = vunpack.c.l.b16 %v753
        %v1127 = vunpack.c.h.b16 %v753
        %v1128 = vunpack.c.l.b16 %v754
        %v1129 = vunpack.c.h.b16 %v754
        %v1130 = vunpack.c.l.b16 %v755
        %v1131 = vunpack.c.h.b16 %v755
        %v1132 = vunpack.c.l.b16 %v756
        %v1133 = vunpack.c.h.b16 %v756
        %v1134 = vunpack.c.l.b16 %v757
        %v1135 = vunpack.c.h.b16 %v757
        %v1136 = vunpack.c.l.b16 %v758
        %v1137 = vunpack.c.h.b16 %v758
        %v1138 = vunpack.c.l.b16 %v759
        %v1139 = vunpack.c.h.b16 %v759
        %v1140 = vunpack.c.l.b16 %v760
        %v1141 = vunpack.c.h.b16 %v760
        %v1142 = vunpack.c.l.b16 %v761
        %v1143 = vunpack.c.h.b16 %v761
        %v1144 = vunpack.c.l.b16 %v762
        %v1145 = vunpack.c.h.b16 %v762
        %v1146 = vunpack.c.l.b16 %v763
        %v1147 = vunpack.c.h.b16 %v763
        %v1148 = vunpack.c.l.b16 %v764
        %v1149 = vunpack.c.h.b16 %v764
        %v1150 = vunpack.c.l.b16 %v765
        %v1151 = vunpack.c.h.b16 %v765
        %v1152 = vunpack.c.l.b16 %v766
        %v1153 = vunpack.c.h.b16 %v766
        %v1154 = vunpack.c.l.b16 %v767
        %v1155 = vunpack.c.h.b16 %v767
        %v1156 = vunpack.c.l.b16 %v768
        %v1157 = vunpack.c.h.b16 %v768
        %v1158 = vunpack.c.l.b16 %v769
        %v1159 = vunpack.c.h.b16 %v769
        %v1160 = vunpack.c.l.b16 %v770
        %v1161 = vunpack.c.h.b16 %v770
        %v1162 = vunpack.c.l.b16 %v771
        %v1163 = vunpack.c.h.b16 %v771
        %v1164 = vunpack.c.l.b16 %v772
        %v1165 = vunpack.c.h.b16 %v772
        %v1166 = vunpack.c.l.b16 %v773
        %v1167 = vunpack.c.h.b16 %v773
        %v1168 = vunpack.c.l.b16 %v774
        %v1169 = vunpack.c.h.b16 %v774
        %v1170 = vunpack.c.l.b16 %v775
        %v1171 = vunpack.c.h.b16 %v775
        %v1172 = vunpack.c.l.b16 %v776
        %v1173 = vunpack.c.h.b16 %v776
        %v1174 = vunpack.c.l.b16 %v777
        %v1175 = vunpack.c.h.b16 %v777
        %v1176 = vunpack.c.l.b16 %v778
        %v1177 = vunpack.c.h.b16 %v778
        %v1178 = vunpack.c.l.b16 %v779
        %v1179 = vunpack.c.h.b16 %v779
        %v1180 = vunpack.c.l.b16 %v780
        %v1181 = vunpack.c.h.b16 %v780
        %v1182 = vunpack.c.l.b16 %v781
        %v1183 = vunpack.c.h.b16 %v781
        %v1184 = vunpack.c.l.b16 %v782
        %v1185 = vunpack.c.h.b16 %v782
        %v1186 = vunpack.c.l.b16 %v783
        %v1187 = vunpack.c.h.b16 %v783
        %v1188 = vunpack.c.l.b16 %v784
        %v1189 = vunpack.c.h.b16 %v784
        %v1190 = vunpack.c.l.b16 %v785
        %v1191 = vunpack.c.h.b16 %v785
        %v1192 = vunpack.c.l.b16 %v786
        %v1193 = vunpack.c.h.b16 %v786
        %v1194 = vunpack.c.l.b16 %v787
        %v1195 = vunpack.c.h.b16 %v787
        %v1196 = vunpack.c.l.b16 %v788
        %v1197 = vunpack.c.h.b16 %v788
        %v1198 = vunpack.c.l.b16 %v789
        %v1199 = vunpack.c.h.b16 %v789
        %v1200 = vunpack.c.l.b16 %v790
        %v1201 = vunpack.c.h.b16 %v790
        %v1202 = vunpack.c.l.b16 %v791
        %v1203 = vunpack.c.h.b16 %v791
        %v1204 = vunpack.c.l.b16 %v792
        %v1205 = vunpack.c.h.b16 %v792
        %v1206 = vunpack.c.l.b16 %v793
        %v1207 = vunpack.c.h.b16 %v793
        %v1208 = vunpack.c.l.b16 %v794
        %v1209 = vunpack.c.h.b16 %v794
        %v1210 = vunpack.c.l.b16 %v795
        %v1211 = vunpack.c.h.b16 %v795
        %v1212 = vunpack.c.l.b16 %v796
        %v1213 = vunpack.c.h.b16 %v796
        %v1214 = vunpack.c.l.b16 %v797
        %v1215 = vunpack.c.h.b16 %v797
        %v1216 = vunpack.c.l.b16 %v798
        %v1217 = vunpack.c.h.b16 %v798
        %v1218 = vunpack.c.l.b16 %v799
        %v1219 = vunpack.c.h.b16 %v799
        %v1220 = vunpack.c.l.b16 %v800
        %v1221 = vunpack.c.h.b16 %v800
        %v1222 = vunpack.c.l.b16 %v801
        %v1223 = vunpack.c.h.b16 %v801
        %v1224 = vunpack.c.l.b16 %v802
        %v1225 = vunpack.c.h.b16 %v802
        %v1226 = vunpack.c.l.b16 %v803
        %v1227 = vunpack.c.h.b16 %v803
        %v1228 = vunpack.c.l.b16 %v804
        %v1229 = vunpack.c.h.b16 %v804
        %v1230 = vunpack.c.l.b16 %v805
        %v1231 = vunpack.c.h.b16 %v805
        %v1232 = vunpack.c.l.b16 %v806
        %v1233 = vunpack.c.h.b16 %v806
        %v1234 = vunpack.c.l.b16 %v807
        %v1235 = vunpack.c.h.b16 %v807
        %v1236 = vunpack.c.l.b16 %v808
        %v1237 = vunpack.c.h.b16 %v808
        %v1238 = vunpack.c.l.b16 %v809
        %v1239 = vunpack.c.h.b16 %v809
        %v1240 = vunpack.c.l.b16 %v810
        %v1241 = vunpack.c.h.b16 %v810
        %v1242 = vunpack.c.l.b16 %v811
        %v1243 = vunpack.c.h.b16 %v811
        %v1244 = vunpack.c.l.b16 %v812
        %v1245 = vunpack.c.h.b16 %v812
        %v1246 = vunpack.c.l.b16 %v813
        %v1247 = vunpack.c.h.b16 %v813
        %v1248 = vunpack.c.l.b16 %v814
        %v1249 = vunpack.c.h.b16 %v814
        %v1250 = vunpack.c.l.b16 %v815
        %v1251 = vunpack.c.h.b16 %v815
        %v1252 = vunpack.c.l.b16 %v816
        %v1253 = vunpack.c.h.b16 %v816
        %v1254 = vunpack.c.l.b16 %v817
        %v1255 = vunpack.c.h.b16 %v817
        %v1256 = vunpack.c.l.b16 %v818
        %v1257 = vunpack.c.h.b16 %v818
        %v1258 = vunpack.c.l.b16 %v819
        %v1259 = vunpack.c.h.b16 %v819
        %v1260 = vunpack.c.l.b16 %v820
        %v1261 = vunpack.c.h.b16 %v820
        %v1262 = vunpack.c.l.b16 %v821
        %v1263 = vunpack.c.h.b16 %v821
        %v1264 = vunpack.c.l.b16 %v822
        %v1265 = vunpack.c.h.b16 %v822
        %v1266 = vunpack.c.l.b16 %v823
        %v1267 = vunpack.c.h.b16 %v823
        %v1268 = vunpack.c.l.b16 %v824
        %v1269 = vunpack.c.h.b16 %v824
        %v1270 = vunpack.c.l.b16 %v825
        %v1271 = vunpack.c.h.b16 %v825
        %v1272 = vunpack.c.l.b16 %v826
        %v1273 = vunpack.c.h.b16 %v826
        %v1274 = vunpack.c.l.b16 %v827
        %v1275 = vunpack.c.h.b16 %v827
        %v1276 = vunpack.c.l.b16 %v828
        %v1277 = vunpack.c.h.b16 %v828
        %v1278 = vunpack.c.l.b16 %v829
        %v1279 = vunpack.c.h.b16 %v829
        %v1280 = vunpack.c.l.b16 %v830
        %v1281 = vunpack.c.h.b16 %v830
        %v1282 = vunpack.c.l.b16 %v831
        %v1283 = vunpack.c.h.b16 %v831
        %v1284 = vunpack.c.l.b16 %v832
        %v1285 = vunpack.c.h.b16 %v832
        %v1286 = vunpack.c.l.b16 %v833
        %v1287 = vunpack.c.h.b16 %v833
        %v1288 = vunpack.c.l.b16 %v834
        %v1289 = vunpack.c.h.b16 %v834
        %v1290 = vunpack.c.l.b16 %v835
        %v1291 = vunpack.c.h.b16 %v835
        %v1292 = vunpack.c.l.b16 %v836
        %v1293 = vunpack.c.h.b16 %v836
        %v1294 = vunpack.c.l.b16 %v837
        %v1295 = vunpack.c.h.b16 %v837
        %v1296 = vunpack.c.l.b16 %v838
        %v1297 = vunpack.c.h.b16 %v838
        %v1298 = vunpack.c.l.b16 %v839
        %v1299 = vunpack.c.h.b16 %v839
        %v1300 = vunpack.c.l.b16 %v840
        %v1301 = vunpack.c.h.b16 %v840
        %v1302 = vunpack.c.l.b16 %v841
        %v1303 = vunpack.c.h.b16 %v841
        %v1304 = vunpack.c.l.b16 %v842
        %v1305 = vunpack.c.h.b16 %v842
        %v1306 = vunpack.c.l.b16 %v843
        %v1307 = vunpack.c.h.b16 %v843
        %v1308 = vunpack.c.l.b16 %v844
        %v1309 = vunpack.c.h.b16 %v844
        %v1310 = vunpack.c.l.b16 %v845
        %v1311 = vunpack.c.h.b16 %v845
        %v1312 = vunpack.c.l.b16 %v846
        %v1313 = vunpack.c.h.b16 %v846
        %v1314 = vunpack.c.l.b16 %v847
        %v1315 = vunpack.c.h.b16 %v847
        %v1316 = vunpack.c.l.b16 %v848
        %v1317 = vunpack.c.h.b16 %v848
        %v1318 = vunpack.c.l.b16 %v849
        %v1319 = vunpack.c.h.b16 %v849
        %v1320 = vunpack.c.l.b16 %v850
        %v1321 = vunpack.c.h.b16 %v850
        %v1322 = vunpack.c.l.b16 %v851
        %v1323 = vunpack.c.h.b16 %v851
        %v1324 = vunpack.c.l.b16 %v852
        %v1325 = vunpack.c.h.b16 %v852
        %v1326 = vunpack.c.l.b16 %v853
        %v1327 = vunpack.c.h.b16 %v853
        %v1328 = vunpack.c.l.b16 %v854
        %v1329 = vunpack.c.h.b16 %v854
        %v1330 = vunpack.c.l.b16 %v855
        %v1331 = vunpack.c.h.b16 %v855
        %v1332 = vunpack.c.l.b16 %v856
        %v1333 = vunpack.c.h.b16 %v856
        %v1334 = vunpack.c.l.b16 %v857
        %v1335 = vunpack.c.h.b16 %v857
        %v1336 = vunpack.c.l.b16 %v858
        %v1337 = vunpack.c.h.b16 %v858
        %v1338 = vunpack.c.l.b16 %v859
        %v1339 = vunpack.c.h.b16 %v859
        %v1340 = vunpack.c.l.b16 %v860
        %v1341 = vunpack.c.h.b16 %v860
        %v1342 = vunpack.c.l.b16 %v861
        %v1343 = vunpack.c.h.b16 %v861
        %v1344 = vunpack.c.l.b16 %v862
        %v1345 = vunpack.c.h.b16 %v862
        %v1346 = vunpack.c.l.b16 %v863
        %v1347 = vunpack.c.h.b16 %v863
        %v1348 = vunpack.c.l.b16 %v864
        %v1349 = vunpack.c.h.b16 %v864
        %v1350 = vunpack.c.l.b16 %v865
        %v1351 = vunpack.c.h.b16 %v865
        %v1352 = vunpack.c.l.b16 %v866
        %v1353 = vunpack.c.h.b16 %v866
        %v1354 = vunpack.c.l.b16 %v867
        %v1355 = vunpack.c.h.b16 %v867
        %v1356 = vpack.c.b16 %v1104, %v1100
        %v1357 = vpack.c.b16 %v1105, %v1101
        %v1358 = vpack.c.b16 %v1106, %v1102
        %v1359 = vpack.c.b16 %v1107, %v1103
        %v1360 = vpack.c.b16 %v1112, %v1108
        %v1361 = vpack.c.b16 %v1113, %v1109
        %v1362 = vpack.c.b16 %v1114, %v1110
        %v1363 = vpack.c.b16 %v1115, %v1111
        %v1364 = vpack.c.b16 %v1120, %v1116
        %v1365 = vpack.c.b16 %v1121, %v1117
        %v1366 = vpack.c.b16 %v1122, %v1118
        %v1367 = vpack.c.b16 %v1123, %v1119
        %v1368 = vpack.c.b16 %v1128, %v1124
        %v1369 = vpack.c.b16 %v1129, %v1125
        %v1370 = vpack.c.b16 %v1130, %v1126
        %v1371 = vpack.c.b16 %v1131, %v1127
        %v1372 = vpack.c.b16 %v1136, %v1132
        %v1373 = vpack.c.b16 %v1137, %v1133
        %v1374 = vpack.c.b16 %v1138, %v1134
        %v1375 = vpack.c.b16 %v1139, %v1135
        %v1376 = vpack.c.b16 %v1144, %v1140
        %v1377 = vpack.c.b16 %v1145, %v1141
        %v1378 = vpack.c.b16 %v1146, %v1142
        %v1379 = vpack.c.b16 %v1147, %v1143
        %v1380 = vpack.c.b16 %v1152, %v1148
        %v1381 = vpack.c.b16 %v1153, %v1149
        %v1382 = vpack.c.b16 %v1154, %v1150
        %v1383 = vpack.c.b16 %v1155, %v1151
        %v1384 = vpack.c.b16 %v1160, %v1156
        %v1385 = vpack.c.b16 %v1161, %v1157
        %v1386 = vpack.c.b16 %v1162, %v1158
        %v1387 = vpack.c.b16 %v1163, %v1159
        %v1388 = vpack.c.b16 %v1168, %v1164
        %v1389 = vpack.c.b16 %v1169, %v1165
        %v1390 = vpack.c.b16 %v1170, %v1166
        %v1391 = vpack.c.b16 %v1171, %v1167
        %v1392 = vpack.c.b16 %v1176, %v1172
        %v1393 = vpack.c.b16 %v1177, %v1173
        %v1394 = vpack.c.b16 %v1178, %v1174
        %v1395 = vpack.c.b16 %v1179, %v1175
        %v1396 = vpack.c.b16 %v1184, %v1180
        %v1397 = vpack.c.b16 %v1185, %v1181
        %v1398 = vpack.c.b16 %v1186, %v1182
        %v1399 = vpack.c.b16 %v1187, %v1183
        %v1400 = vpack.c.b16 %v1192, %v1188
        %v1401 = vpack.c.b16 %v1193, %v1189
        %v1402 = vpack.c.b16 %v1194, %v1190
        %v1403 = vpack.c.b16 %v1195, %v1191
        %v1404 = vpack.c.b16 %v1200, %v1196
        %v1405 = vpack.c.b16 %v1201, %v1197
        %v1406 = vpack.c.b16 %v1202, %v1198
        %v1407 = vpack.c.b16 %v1203, %v1199
        %v1408 = vpack.c.b16 %v1208, %v1204
        %v1409 = vpack.c.b16 %v1209, %v1205
        %v1410 = vpack.c.b16 %v1210, %v1206
        %v1411 = vpack.c.b16 %v1211, %v1207
        %v1412 = vpack.c.b16 %v1216, %v1212
        %v1413 = vpack.c.b16 %v1217, %v1213
        %v1414 = vpack.c.b16 %v1218, %v1214
        %v1415 = vpack.c.b16 %v1219, %v1215
        %v1416 = vpack.c.b16 %v1224, %v1220
        %v1417 = vpack.c.b16 %v1225, %v1221
        %v1418 = vpack.c.b16 %v1226, %v1222
        %v1419 = vpack.c.b16 %v1227, %v1223
        %v1420 = vpack.c.b16 %v1232, %v1228
        %v1421 = vpack.c.b16 %v1233, %v1229
        %v1422 = vpack.c.b16 %v1234, %v1230
        %v1423 = vpack.c.b16 %v1235, %v1231
        %v1424 = vpack.c.b16 %v1240, %v1236
        %v1425 = vpack.c.b16 %v1241, %v1237
        %v1426 = vpack.c.b16 %v1242, %v1238
        %v1427 = vpack.c.b16 %v1243, %v1239
        %v1428 = vpack.c.b16 %v1248, %v1244
        %v1429 = vpack.c.b16 %v1249, %v1245
        %v1430 = vpack.c.b16 %v1250, %v1246
        %v1431 = vpack.c.b16 %v1251, %v1247
        %v1432 = vpack.c.b16 %v1256, %v1252
        %v1433 = vpack.c.b16 %v1257, %v1253
        %v1434 = vpack.c.b16 %v1258, %v1254
        %v1435 = vpack.c.b16 %v1259, %v1255
        %v1436 = vpack.c.b16 %v1264, %v1260
        %v1437 = vpack.c.b16 %v1265, %v1261
        %v1438 = vpack.c.b16 %v1266, %v1262
        %v1439 = vpack.c.b16 %v1267, %v1263
        %v1440 = vpack.c.b16 %v1272, %v1268
        %v1441 = vpack.c.b16 %v1273, %v1269
        %v1442 = vpack.c.b16 %v1274, %v1270
        %v1443 = vpack.c.b16 %v1275, %v1271
        %v1444 = vpack.c.b16 %v1280, %v1276
        %v1445 = vpack.c.b16 %v1281, %v1277
        %v1446 = vpack.c.b16 %v1282, %v1278
        %v1447 = vpack.c.b16 %v1283, %v1279
        %v1448 = vpack.c.b16 %v1288, %v1284
        %v1449 = vpack.c.b16 %v1289, %v1285
        %v1450 = vpack.c.b16 %v1290, %v1286
        %v1451 = vpack.c.b16 %v1291, %v1287
        %v1452 = vpack.c.b16 %v1296, %v1292
        %v1453 = vpack.c.b16 %v1297, %v1293
        %v1454 = vpack.c.b16 %v1298, %v1294
        %v1455 = vpack.c.b16 %v1299, %v1295
        %v1456 = vpack.c.b16 %v1304, %v1300
        %v1457 = vpack.c.b16 %v1305, %v1301
        %v1458 = vpack.c.b16 %v1306, %v1302
        %v1459 = vpack.c.b16 %v1307, %v1303
        %v1460 = vpack.c.b16 %v1312, %v1308
        %v1461 = vpack.c.b16 %v1313, %v1309
        %v1462 = vpack.c.b16 %v1314, %v1310
        %v1463 = vpack.c.b16 %v1315, %v1311
        %v1464 = vpack.c.b16 %v1320, %v1316
        %v1465 = vpack.c.b16 %v1321, %v1317
        %v1466 = vpack.c.b16 %v1322, %v1318
        %v1467 = vpack.c.b16 %v1323, %v1319
        %v1468 = vpack.c.b16 %v1328, %v1324
        %v1469 = vpack.c.b16 %v1329, %v1325
        %v1470 = vpack.c.b16 %v1330, %v1326
        %v1471 = vpack.c.b16 %v1331, %v1327
        %v1472 = vpack.c.b16 %v1336, %v1332
        %v1473 = vpack.c.b16 %v1337, %v1333
        %v1474 = vpack.c.b16 %v1338, %v1334
        %v1475 = vpack.c.b16 %v1339, %v1335
        %v1476 = vpack.c.b16 %v1344, %v1340
        %v1477 = vpack.c.b16 %v1345, %v1341
        %v1478 = vpack.c.b16 %v1346, %v1342
        %v1479 = vpack.c.b16 %v1347, %v1343
        %v1480 = vpack.c.b16 %v1352, %v1348
        %v1481 = vpack.c.b16 %v1353, %v1349
        %v1482 = vpack.c.b16 %v1354, %v1350
        %v1483 = vpack.c.b16 %v1355, %v1351
        %1612 = vmatprep.subr.bf16.mxu0 %v1385
        %1613 = vmatpush1.bf16.msra.mxu0 %v1384
        %1614 = vmatprep.subr.bf16.mxu0 %v1381
        %1615 = vmatpush1.bf16.msra.mxu0 %v1380
        %1616 = vmatprep.subr.bf16.mxu0 %v1377
        %1617 = vmatpush1.bf16.msra.mxu0 %v1376
        %1618 = vmatprep.subr.bf16.mxu0 %v1373
        %1619 = vmatpush1.bf16.msra.mxu0 %v1372
        %1620 = vmatprep.subr.bf16.mxu0 %v1369
        %1621 = vmatpush1.bf16.msra.mxu0 %v1368
        %1622 = vmatprep.subr.bf16.mxu0 %v1365
        %1623 = vmatpush1.bf16.msra.mxu0 %v1364
        %1624 = vmatprep.subr.bf16.mxu0 %v1361
        %1625 = vmatpush1.bf16.msra.mxu0 %v1360
        %1626 = vmatprep.subr.bf16.mxu0 %v1357
        %1627 = vmatpush1.bf16.msra.mxu0 %v1356
        %1628 = vmatprep.subr.bf16.mxu0 %v1417
        %1629 = vmatpush2.bf16.msra.mxu0 %v1416
        %1630 = vmatprep.subr.bf16.mxu0 %v1413
        %1631 = vmatpush2.bf16.msra.mxu0 %v1412
        %1632 = vmatprep.subr.bf16.mxu0 %v1409
        %1633 = vmatpush2.bf16.msra.mxu0 %v1408
        %1634 = vmatprep.subr.bf16.mxu0 %v1405
        %1635 = vmatpush2.bf16.msra.mxu0 %v1404
        %1636 = vmatprep.subr.bf16.mxu0 %v1401
        %1637 = vmatpush2.bf16.msra.mxu0 %v1400
        %1638 = vmatprep.subr.bf16.mxu0 %v1397
        %1639 = vmatpush2.bf16.msra.mxu0 %v1396
        %1640 = vmatprep.subr.bf16.mxu0 %v1393
        %1641 = vmatpush2.bf16.msra.mxu0 %v1392
        %1642 = vmatprep.subr.bf16.mxu0 %v1389
        %1643 = vmatpush2.bf16.msra.mxu0 %v1388
        %1644 = vmatprep.mubr.bf16.mxu0 %v969
        %1645 = vmatmul.mubr.bf16.gmra.mxu0 %v968
        %v1646 = vpop.f32.mrf.mxu0
        %v1647 = vadd.f32 0.0, %v1646
        %v1648 = vpop.f32.mrf.mxu0
        %v1649 = vadd.f32 0.0, %v1648
        %v1650 = vpop.f32.mrf.mxu0
        %v1651 = vpop.f32.mrf.mxu0
        %1652 = vdwg.mxu0
        %1653 = vmatprep.subr.bf16.mxu0 %v1449
        %1654 = vmatpush1.bf16.msra.mxu0 %v1448
        %1655 = vmatprep.subr.bf16.mxu0 %v1445
        %1656 = vmatpush1.bf16.msra.mxu0 %v1444
        %1657 = vmatprep.subr.bf16.mxu0 %v1441
        %1658 = vmatpush1.bf16.msra.mxu0 %v1440
        %1659 = vmatprep.subr.bf16.mxu0 %v1437
        %1660 = vmatpush1.bf16.msra.mxu0 %v1436
        %1661 = vmatprep.subr.bf16.mxu0 %v1433
        %1662 = vmatpush1.bf16.msra.mxu0 %v1432
        %1663 = vmatprep.subr.bf16.mxu0 %v1429
        %1664 = vmatpush1.bf16.msra.mxu0 %v1428
        %1665 = vmatprep.subr.bf16.mxu0 %v1425
        %1666 = vmatpush1.bf16.msra.mxu0 %v1424
        %1667 = vmatprep.subr.bf16.mxu0 %v1421
        %1668 = vmatpush1.bf16.msra.mxu0 %v1420
        %1669 = vmatprep.subr.bf16.mxu0 %v1481
        %1670 = vmatpush2.bf16.msra.mxu0 %v1480
        %1671 = vmatprep.subr.bf16.mxu0 %v1477
        %1672 = vmatpush2.bf16.msra.mxu0 %v1476
        %1673 = vmatprep.subr.bf16.mxu0 %v1473
        %1674 = vmatpush2.bf16.msra.mxu0 %v1472
        %1675 = vmatprep.subr.bf16.mxu0 %v1469
        %1676 = vmatpush2.bf16.msra.mxu0 %v1468
        %1677 = vmatprep.subr.bf16.mxu0 %v1465
        %1678 = vmatpush2.bf16.msra.mxu0 %v1464
        %1679 = vmatprep.subr.bf16.mxu0 %v1461
        %1680 = vmatpush2.bf16.msra.mxu0 %v1460
        %1681 = vmatprep.subr.bf16.mxu0 %v1457
        %1682 = vmatpush2.bf16.msra.mxu0 %v1456
        %1683 = vmatprep.subr.bf16.mxu0 %v1453
        %1684 = vmatpush2.bf16.msra.mxu0 %v1452
        %1685 = vmatprep.mubr.bf16.mxu0 %v971
        %1686 = vmatmul.mubr.bf16.gmra.mxu0 %v970
        %v1687 = vpop.f32.mrf.mxu0
        %v1688 = vadd.f32 %v1647, %v1687
        %v1689 = vpop.f32.mrf.mxu0
        %v1690 = vadd.f32 %v1649, %v1689
        %v1691 = vpop.f32.mrf.mxu0
        %v1692 = vpop.f32.mrf.mxu0
        %1693 = vdwg.mxu0
        %1694 = vmatprep.subr.bf16.mxu0 %v1387
        %1695 = vmatpush1.bf16.msra.mxu0 %v1386
        %1696 = vmatprep.subr.bf16.mxu0 %v1383
        %1697 = vmatpush1.bf16.msra.mxu0 %v1382
        %1698 = vmatprep.subr.bf16.mxu0 %v1379
        %1699 = vmatpush1.bf16.msra.mxu0 %v1378
        %1700 = vmatprep.subr.bf16.mxu0 %v1375
        %1701 = vmatpush1.bf16.msra.mxu0 %v1374
        %1702 = vmatprep.subr.bf16.mxu0 %v1371
        %1703 = vmatpush1.bf16.msra.mxu0 %v1370
        %1704 = vmatprep.subr.bf16.mxu0 %v1367
        %1705 = vmatpush1.bf16.msra.mxu0 %v1366
        %1706 = vmatprep.subr.bf16.mxu0 %v1363
        %1707 = vmatpush1.bf16.msra.mxu0 %v1362
        %1708 = vmatprep.subr.bf16.mxu0 %v1359
        %1709 = vmatpush1.bf16.msra.mxu0 %v1358
        %1710 = vmatprep.subr.bf16.mxu0 %v1419
        %1711 = vmatpush2.bf16.msra.mxu0 %v1418
        %1712 = vmatprep.subr.bf16.mxu0 %v1415
        %1713 = vmatpush2.bf16.msra.mxu0 %v1414
        %1714 = vmatprep.subr.bf16.mxu0 %v1411
        %1715 = vmatpush2.bf16.msra.mxu0 %v1410
        %1716 = vmatprep.subr.bf16.mxu0 %v1407
        %1717 = vmatpush2.bf16.msra.mxu0 %v1406
        %1718 = vmatprep.subr.bf16.mxu0 %v1403
        %1719 = vmatpush2.bf16.msra.mxu0 %v1402
        %1720 = vmatprep.subr.bf16.mxu0 %v1399
        %1721 = vmatpush2.bf16.msra.mxu0 %v1398
        %1722 = vmatprep.subr.bf16.mxu0 %v1395
        %1723 = vmatpush2.bf16.msra.mxu0 %v1394
        %1724 = vmatprep.subr.bf16.mxu0 %v1391
        %1725 = vmatpush2.bf16.msra.mxu0 %v1390
        %1726 = vmatprep.mubr.bf16.mxu0 %v969
        %1727 = vmatmul.mubr.bf16.gmra.mxu0 %v968
        %v1728 = vpop.f32.mrf.mxu0
        %v1729 = vadd.f32 0.0, %v1728
        %v1730 = vpop.f32.mrf.mxu0
        %v1731 = vadd.f32 0.0, %v1730
        %v1732 = vpop.f32.mrf.mxu0
        %v1733 = vpop.f32.mrf.mxu0
        %1734 = vdwg.mxu0
        %1735 = vmatprep.subr.bf16.mxu0 %v1451
        %1736 = vmatpush1.bf16.msra.mxu0 %v1450
        %1737 = vmatprep.subr.bf16.mxu0 %v1447
        %1738 = vmatpush1.bf16.msra.mxu0 %v1446
        %1739 = vmatprep.subr.bf16.mxu0 %v1443
        %1740 = vmatpush1.bf16.msra.mxu0 %v1442
        %1741 = vmatprep.subr.bf16.mxu0 %v1439
        %1742 = vmatpush1.bf16.msra.mxu0 %v1438
        %1743 = vmatprep.subr.bf16.mxu0 %v1435
        %1744 = vmatpush1.bf16.msra.mxu0 %v1434
        %1745 = vmatprep.subr.bf16.mxu0 %v1431
        %1746 = vmatpush1.bf16.msra.mxu0 %v1430
        %1747 = vmatprep.subr.bf16.mxu0 %v1427
        %1748 = vmatpush1.bf16.msra.mxu0 %v1426
        %1749 = vmatprep.subr.bf16.mxu0 %v1423
        %1750 = vmatpush1.bf16.msra.mxu0 %v1422
        %1751 = vmatprep.subr.bf16.mxu0 %v1483
        %1752 = vmatpush2.bf16.msra.mxu0 %v1482
        %1753 = vmatprep.subr.bf16.mxu0 %v1479
        %1754 = vmatpush2.bf16.msra.mxu0 %v1478
        %1755 = vmatprep.subr.bf16.mxu0 %v1475
        %1756 = vmatpush2.bf16.msra.mxu0 %v1474
        %1757 = vmatprep.subr.bf16.mxu0 %v1471
        %1758 = vmatpush2.bf16.msra.mxu0 %v1470
        %1759 = vmatprep.subr.bf16.mxu0 %v1467
        %1760 = vmatpush2.bf16.msra.mxu0 %v1466
        %1761 = vmatprep.subr.bf16.mxu0 %v1463
        %1762 = vmatpush2.bf16.msra.mxu0 %v1462
        %1763 = vmatprep.subr.bf16.mxu0 %v1459
        %1764 = vmatpush2.bf16.msra.mxu0 %v1458
        %1765 = vmatprep.subr.bf16.mxu0 %v1455
        %1766 = vmatpush2.bf16.msra.mxu0 %v1454
        %1767 = vmatprep.mubr.bf16.mxu0 %v971
        %1768 = vmatmul.mubr.bf16.gmra.mxu0 %v970
        %v1769 = vpop.f32.mrf.mxu0
        %v1770 = vadd.f32 %v1729, %v1769
        %v1771 = vpop.f32.mrf.mxu0
        %v1772 = vadd.f32 %v1731, %v1771
        %v1773 = vpop.f32.mrf.mxu0
        %v1774 = vpop.f32.mrf.mxu0
        %1775 = vdwg.mxu0
        %s1776 = scalar_lea.vmem [#allocation6], 512
        %v1777 = vld [vmem:[%s1776] sm:$0xff]
        %v1778 = vld [vmem:[%s1776 + $0x8] sm:$0xff]
        %v1779 = vld [vmem:[%s1776 + $0x10] sm:$0xff]
        %v1780 = vld [vmem:[%s1776 + $0x18] sm:$0xff]
        %v1781 = vld [vmem:[%s1776 + $0x20] sm:$0xff]
        %v1782 = vld [vmem:[%s1776 + $0x28] sm:$0xff]
        %v1783 = vld [vmem:[%s1776 + $0x30] sm:$0xff]
        %v1784 = vld [vmem:[%s1776 + $0x38] sm:$0xff]
        %v1785 = vld [vmem:[%s1776 + $0x40] sm:$0xff]
        %v1786 = vld [vmem:[%s1776 + $0x48] sm:$0xff]
        %v1787 = vld [vmem:[%s1776 + $0x50] sm:$0xff]
        %v1788 = vld [vmem:[%s1776 + $0x58] sm:$0xff]
        %v1789 = vld [vmem:[%s1776 + $0x60] sm:$0xff]
        %v1790 = vld [vmem:[%s1776 + $0x68] sm:$0xff]
        %v1791 = vld [vmem:[%s1776 + $0x70] sm:$0xff]
        %v1792 = vld [vmem:[%s1776 + $0x78] sm:$0xff]
        %v1793 = vld [vmem:[%s1776 + $0x80] sm:$0xff]
        %v1794 = vld [vmem:[%s1776 + $0x88] sm:$0xff]
        %v1795 = vld [vmem:[%s1776 + $0x90] sm:$0xff]
        %v1796 = vld [vmem:[%s1776 + $0x98] sm:$0xff]
        %v1797 = vld [vmem:[%s1776 + $0xa0] sm:$0xff]
        %v1798 = vld [vmem:[%s1776 + $0xa8] sm:$0xff]
        %v1799 = vld [vmem:[%s1776 + $0xb0] sm:$0xff]
        %v1800 = vld [vmem:[%s1776 + $0xb8] sm:$0xff]
        %v1801 = vld [vmem:[%s1776 + $0xc0] sm:$0xff]
        %v1802 = vld [vmem:[%s1776 + $0xc8] sm:$0xff]
        %v1803 = vld [vmem:[%s1776 + $0xd0] sm:$0xff]
        %v1804 = vld [vmem:[%s1776 + $0xd8] sm:$0xff]
        %v1805 = vld [vmem:[%s1776 + $0xe0] sm:$0xff]
        %v1806 = vld [vmem:[%s1776 + $0xe8] sm:$0xff]
        %v1807 = vld [vmem:[%s1776 + $0xf0] sm:$0xff]
        %v1808 = vld [vmem:[%s1776 + $0xf8] sm:$0xff]
        %v1809 = vld [vmem:[%s1776 + $0x100] sm:$0xff]
        %v1810 = vld [vmem:[%s1776 + $0x108] sm:$0xff]
        %v1811 = vld [vmem:[%s1776 + $0x110] sm:$0xff]
        %v1812 = vld [vmem:[%s1776 + $0x118] sm:$0xff]
        %v1813 = vld [vmem:[%s1776 + $0x120] sm:$0xff]
        %v1814 = vld [vmem:[%s1776 + $0x128] sm:$0xff]
        %v1815 = vld [vmem:[%s1776 + $0x130] sm:$0xff]
        %v1816 = vld [vmem:[%s1776 + $0x138] sm:$0xff]
        %v1817 = vld [vmem:[%s1776 + $0x140] sm:$0xff]
        %v1818 = vld [vmem:[%s1776 + $0x148] sm:$0xff]
        %v1819 = vld [vmem:[%s1776 + $0x150] sm:$0xff]
        %v1820 = vld [vmem:[%s1776 + $0x158] sm:$0xff]
        %v1821 = vld [vmem:[%s1776 + $0x160] sm:$0xff]
        %v1822 = vld [vmem:[%s1776 + $0x168] sm:$0xff]
        %v1823 = vld [vmem:[%s1776 + $0x170] sm:$0xff]
        %v1824 = vld [vmem:[%s1776 + $0x178] sm:$0xff]
        %v1825 = vld [vmem:[%s1776 + $0x180] sm:$0xff]
        %v1826 = vld [vmem:[%s1776 + $0x188] sm:$0xff]
        %v1827 = vld [vmem:[%s1776 + $0x190] sm:$0xff]
        %v1828 = vld [vmem:[%s1776 + $0x198] sm:$0xff]
        %v1829 = vld [vmem:[%s1776 + $0x1a0] sm:$0xff]
        %v1830 = vld [vmem:[%s1776 + $0x1a8] sm:$0xff]
        %v1831 = vld [vmem:[%s1776 + $0x1b0] sm:$0xff]
        %v1832 = vld [vmem:[%s1776 + $0x1b8] sm:$0xff]
        %v1833 = vld [vmem:[%s1776 + $0x1c0] sm:$0xff]
        %v1834 = vld [vmem:[%s1776 + $0x1c8] sm:$0xff]
        %v1835 = vld [vmem:[%s1776 + $0x1d0] sm:$0xff]
        %v1836 = vld [vmem:[%s1776 + $0x1d8] sm:$0xff]
        %v1837 = vld [vmem:[%s1776 + $0x1e0] sm:$0xff]
        %v1838 = vld [vmem:[%s1776 + $0x1e8] sm:$0xff]
        %v1839 = vld [vmem:[%s1776 + $0x1f0] sm:$0xff]
        %v1840 = vld [vmem:[%s1776 + $0x1f8] sm:$0xff]
        %v1841 = vpack.c.bf16 %v1688, %v1688
        %v1842 = vpack.c.bf16 %v1690, %v1690
        %v1843 = vpack.c.bf16 %v1770, %v1770
        %v1844 = vpack.c.bf16 %v1772, %v1772
        %v1909 = vunpack.c.l.b16 %v1777
        %v1910 = vunpack.c.h.b16 %v1777
        %v1911 = vunpack.c.l.b16 %v1778
        %v1912 = vunpack.c.h.b16 %v1778
        %v1913 = vunpack.c.l.b16 %v1779
        %v1914 = vunpack.c.h.b16 %v1779
        %v1915 = vunpack.c.l.b16 %v1780
        %v1916 = vunpack.c.h.b16 %v1780
        %v1917 = vunpack.c.l.b16 %v1781
        %v1918 = vunpack.c.h.b16 %v1781
        %v1919 = vunpack.c.l.b16 %v1782
        %v1920 = vunpack.c.h.b16 %v1782
        %v1921 = vunpack.c.l.b16 %v1783
        %v1922 = vunpack.c.h.b16 %v1783
        %v1923 = vunpack.c.l.b16 %v1784
        %v1924 = vunpack.c.h.b16 %v1784
        %v1925 = vunpack.c.l.b16 %v1785
        %v1926 = vunpack.c.h.b16 %v1785
        %v1927 = vunpack.c.l.b16 %v1786
        %v1928 = vunpack.c.h.b16 %v1786
        %v1929 = vunpack.c.l.b16 %v1787
        %v1930 = vunpack.c.h.b16 %v1787
        %v1931 = vunpack.c.l.b16 %v1788
        %v1932 = vunpack.c.h.b16 %v1788
        %v1933 = vunpack.c.l.b16 %v1789
        %v1934 = vunpack.c.h.b16 %v1789
        %v1935 = vunpack.c.l.b16 %v1790
        %v1936 = vunpack.c.h.b16 %v1790
        %v1937 = vunpack.c.l.b16 %v1791
        %v1938 = vunpack.c.h.b16 %v1791
        %v1939 = vunpack.c.l.b16 %v1792
        %v1940 = vunpack.c.h.b16 %v1792
        %v1941 = vunpack.c.l.b16 %v1793
        %v1942 = vunpack.c.h.b16 %v1793
        %v1943 = vunpack.c.l.b16 %v1794
        %v1944 = vunpack.c.h.b16 %v1794
        %v1945 = vunpack.c.l.b16 %v1795
        %v1946 = vunpack.c.h.b16 %v1795
        %v1947 = vunpack.c.l.b16 %v1796
        %v1948 = vunpack.c.h.b16 %v1796
        %v1949 = vunpack.c.l.b16 %v1797
        %v1950 = vunpack.c.h.b16 %v1797
        %v1951 = vunpack.c.l.b16 %v1798
        %v1952 = vunpack.c.h.b16 %v1798
        %v1953 = vunpack.c.l.b16 %v1799
        %v1954 = vunpack.c.h.b16 %v1799
        %v1955 = vunpack.c.l.b16 %v1800
        %v1956 = vunpack.c.h.b16 %v1800
        %v1957 = vunpack.c.l.b16 %v1801
        %v1958 = vunpack.c.h.b16 %v1801
        %v1959 = vunpack.c.l.b16 %v1802
        %v1960 = vunpack.c.h.b16 %v1802
        %v1961 = vunpack.c.l.b16 %v1803
        %v1962 = vunpack.c.h.b16 %v1803
        %v1963 = vunpack.c.l.b16 %v1804
        %v1964 = vunpack.c.h.b16 %v1804
        %v1965 = vunpack.c.l.b16 %v1805
        %v1966 = vunpack.c.h.b16 %v1805
        %v1967 = vunpack.c.l.b16 %v1806
        %v1968 = vunpack.c.h.b16 %v1806
        %v1969 = vunpack.c.l.b16 %v1807
        %v1970 = vunpack.c.h.b16 %v1807
        %v1971 = vunpack.c.l.b16 %v1808
        %v1972 = vunpack.c.h.b16 %v1808
        %v1973 = vunpack.c.l.b16 %v1809
        %v1974 = vunpack.c.h.b16 %v1809
        %v1975 = vunpack.c.l.b16 %v1810
        %v1976 = vunpack.c.h.b16 %v1810
        %v1977 = vunpack.c.l.b16 %v1811
        %v1978 = vunpack.c.h.b16 %v1811
        %v1979 = vunpack.c.l.b16 %v1812
        %v1980 = vunpack.c.h.b16 %v1812
        %v1981 = vunpack.c.l.b16 %v1813
        %v1982 = vunpack.c.h.b16 %v1813
        %v1983 = vunpack.c.l.b16 %v1814
        %v1984 = vunpack.c.h.b16 %v1814
        %v1985 = vunpack.c.l.b16 %v1815
        %v1986 = vunpack.c.h.b16 %v1815
        %v1987 = vunpack.c.l.b16 %v1816
        %v1988 = vunpack.c.h.b16 %v1816
        %v1989 = vunpack.c.l.b16 %v1817
        %v1990 = vunpack.c.h.b16 %v1817
        %v1991 = vunpack.c.l.b16 %v1818
        %v1992 = vunpack.c.h.b16 %v1818
        %v1993 = vunpack.c.l.b16 %v1819
        %v1994 = vunpack.c.h.b16 %v1819
        %v1995 = vunpack.c.l.b16 %v1820
        %v1996 = vunpack.c.h.b16 %v1820
        %v1997 = vunpack.c.l.b16 %v1821
        %v1998 = vunpack.c.h.b16 %v1821
        %v1999 = vunpack.c.l.b16 %v1822
        %v2000 = vunpack.c.h.b16 %v1822
        %v2001 = vunpack.c.l.b16 %v1823
        %v2002 = vunpack.c.h.b16 %v1823
        %v2003 = vunpack.c.l.b16 %v1824
        %v2004 = vunpack.c.h.b16 %v1824
        %v2005 = vunpack.c.l.b16 %v1825
        %v2006 = vunpack.c.h.b16 %v1825
        %v2007 = vunpack.c.l.b16 %v1826
        %v2008 = vunpack.c.h.b16 %v1826
        %v2009 = vunpack.c.l.b16 %v1827
        %v2010 = vunpack.c.h.b16 %v1827
        %v2011 = vunpack.c.l.b16 %v1828
        %v2012 = vunpack.c.h.b16 %v1828
        %v2013 = vunpack.c.l.b16 %v1829
        %v2014 = vunpack.c.h.b16 %v1829
        %v2015 = vunpack.c.l.b16 %v1830
        %v2016 = vunpack.c.h.b16 %v1830
        %v2017 = vunpack.c.l.b16 %v1831
        %v2018 = vunpack.c.h.b16 %v1831
        %v2019 = vunpack.c.l.b16 %v1832
        %v2020 = vunpack.c.h.b16 %v1832
        %v2021 = vunpack.c.l.b16 %v1833
        %v2022 = vunpack.c.h.b16 %v1833
        %v2023 = vunpack.c.l.b16 %v1834
        %v2024 = vunpack.c.h.b16 %v1834
        %v2025 = vunpack.c.l.b16 %v1835
        %v2026 = vunpack.c.h.b16 %v1835
        %v2027 = vunpack.c.l.b16 %v1836
        %v2028 = vunpack.c.h.b16 %v1836
        %v2029 = vunpack.c.l.b16 %v1837
        %v2030 = vunpack.c.h.b16 %v1837
        %v2031 = vunpack.c.l.b16 %v1838
        %v2032 = vunpack.c.h.b16 %v1838
        %v2033 = vunpack.c.l.b16 %v1839
        %v2034 = vunpack.c.h.b16 %v1839
        %v2035 = vunpack.c.l.b16 %v1840
        %v2036 = vunpack.c.h.b16 %v1840
        %v2037 = vpack.c.b16 %v1911, %v1909
        %v2038 = vpack.c.b16 %v1912, %v1910
        %v2039 = vpack.c.b16 %v1915, %v1913
        %v2040 = vpack.c.b16 %v1916, %v1914
        %v2041 = vpack.c.b16 %v1919, %v1917
        %v2042 = vpack.c.b16 %v1920, %v1918
        %v2043 = vpack.c.b16 %v1923, %v1921
        %v2044 = vpack.c.b16 %v1924, %v1922
        %v2045 = vpack.c.b16 %v1927, %v1925
        %v2046 = vpack.c.b16 %v1928, %v1926
        %v2047 = vpack.c.b16 %v1931, %v1929
        %v2048 = vpack.c.b16 %v1932, %v1930
        %v2049 = vpack.c.b16 %v1935, %v1933
        %v2050 = vpack.c.b16 %v1936, %v1934
        %v2051 = vpack.c.b16 %v1939, %v1937
        %v2052 = vpack.c.b16 %v1940, %v1938
        %v2053 = vpack.c.b16 %v1943, %v1941
        %v2054 = vpack.c.b16 %v1944, %v1942
        %v2055 = vpack.c.b16 %v1947, %v1945
        %v2056 = vpack.c.b16 %v1948, %v1946
        %v2057 = vpack.c.b16 %v1951, %v1949
        %v2058 = vpack.c.b16 %v1952, %v1950
        %v2059 = vpack.c.b16 %v1955, %v1953
        %v2060 = vpack.c.b16 %v1956, %v1954
        %v2061 = vpack.c.b16 %v1959, %v1957
        %v2062 = vpack.c.b16 %v1960, %v1958
        %v2063 = vpack.c.b16 %v1963, %v1961
        %v2064 = vpack.c.b16 %v1964, %v1962
        %v2065 = vpack.c.b16 %v1967, %v1965
        %v2066 = vpack.c.b16 %v1968, %v1966
        %v2067 = vpack.c.b16 %v1971, %v1969
        %v2068 = vpack.c.b16 %v1972, %v1970
        %v2069 = vpack.c.b16 %v1975, %v1973
        %v2070 = vpack.c.b16 %v1976, %v1974
        %v2071 = vpack.c.b16 %v1979, %v1977
        %v2072 = vpack.c.b16 %v1980, %v1978
        %v2073 = vpack.c.b16 %v1983, %v1981
        %v2074 = vpack.c.b16 %v1984, %v1982
        %v2075 = vpack.c.b16 %v1987, %v1985
        %v2076 = vpack.c.b16 %v1988, %v1986
        %v2077 = vpack.c.b16 %v1991, %v1989
        %v2078 = vpack.c.b16 %v1992, %v1990
        %v2079 = vpack.c.b16 %v1995, %v1993
        %v2080 = vpack.c.b16 %v1996, %v1994
        %v2081 = vpack.c.b16 %v1999, %v1997
        %v2082 = vpack.c.b16 %v2000, %v1998
        %v2083 = vpack.c.b16 %v2003, %v2001
        %v2084 = vpack.c.b16 %v2004, %v2002
        %v2085 = vpack.c.b16 %v2007, %v2005
        %v2086 = vpack.c.b16 %v2008, %v2006
        %v2087 = vpack.c.b16 %v2011, %v2009
        %v2088 = vpack.c.b16 %v2012, %v2010
        %v2089 = vpack.c.b16 %v2015, %v2013
        %v2090 = vpack.c.b16 %v2016, %v2014
        %v2091 = vpack.c.b16 %v2019, %v2017
        %v2092 = vpack.c.b16 %v2020, %v2018
        %v2093 = vpack.c.b16 %v2023, %v2021
        %v2094 = vpack.c.b16 %v2024, %v2022
        %v2095 = vpack.c.b16 %v2027, %v2025
        %v2096 = vpack.c.b16 %v2028, %v2026
        %v2097 = vpack.c.b16 %v2031, %v2029
        %v2098 = vpack.c.b16 %v2032, %v2030
        %v2099 = vpack.c.b16 %v2035, %v2033
        %v2100 = vpack.c.b16 %v2036, %v2034
        %2165 = vmatprep.subr.bf16.mxu0 %v2052
        %2166 = vmatpush1.bf16.msra.mxu0 %v2051
        %2167 = vmatprep.subr.bf16.mxu0 %v2050
        %2168 = vmatpush1.bf16.msra.mxu0 %v2049
        %2169 = vmatprep.subr.bf16.mxu0 %v2048
        %2170 = vmatpush1.bf16.msra.mxu0 %v2047
        %2171 = vmatprep.subr.bf16.mxu0 %v2046
        %2172 = vmatpush1.bf16.msra.mxu0 %v2045
        %2173 = vmatprep.subr.bf16.mxu0 %v2044
        %2174 = vmatpush1.bf16.msra.mxu0 %v2043
        %2175 = vmatprep.subr.bf16.mxu0 %v2042
        %2176 = vmatpush1.bf16.msra.mxu0 %v2041
        %2177 = vmatprep.subr.bf16.mxu0 %v2040
        %2178 = vmatpush1.bf16.msra.mxu0 %v2039
        %2179 = vmatprep.subr.bf16.mxu0 %v2038
        %2180 = vmatpush1.bf16.msra.mxu0 %v2037
        %2181 = vmatprep.subr.bf16.mxu0 %v2068
        %2182 = vmatpush2.bf16.msra.mxu0 %v2067
        %2183 = vmatprep.subr.bf16.mxu0 %v2066
        %2184 = vmatpush2.bf16.msra.mxu0 %v2065
        %2185 = vmatprep.subr.bf16.mxu0 %v2064
        %2186 = vmatpush2.bf16.msra.mxu0 %v2063
        %2187 = vmatprep.subr.bf16.mxu0 %v2062
        %2188 = vmatpush2.bf16.msra.mxu0 %v2061
        %2189 = vmatprep.subr.bf16.mxu0 %v2060
        %2190 = vmatpush2.bf16.msra.mxu0 %v2059
        %2191 = vmatprep.subr.bf16.mxu0 %v2058
        %2192 = vmatpush2.bf16.msra.mxu0 %v2057
        %2193 = vmatprep.subr.bf16.mxu0 %v2056
        %2194 = vmatpush2.bf16.msra.mxu0 %v2055
        %2195 = vmatprep.subr.bf16.mxu0 %v2054
        %2196 = vmatpush2.bf16.msra.mxu0 %v2053
        %2197 = vmatprep.mubr.bf16.mxu0 %v1842
        %2198 = vmatmul.mubr.bf16.gmra.mxu0 %v1841
        %v2199 = vpop.f32.mrf.mxu0
        %v2200 = vadd.f32 0.0, %v2199
        %v2201 = vpop.f32.mrf.mxu0
        %v2202 = vadd.f32 0.0, %v2201
        %v2203 = vpop.f32.mrf.mxu0
        %v2204 = vpop.f32.mrf.mxu0
        %2205 = vdwg.mxu0
        %2206 = vmatprep.subr.bf16.mxu0 %v2084
        %2207 = vmatpush1.bf16.msra.mxu0 %v2083
        %2208 = vmatprep.subr.bf16.mxu0 %v2082
        %2209 = vmatpush1.bf16.msra.mxu0 %v2081
        %2210 = vmatprep.subr.bf16.mxu0 %v2080
        %2211 = vmatpush1.bf16.msra.mxu0 %v2079
        %2212 = vmatprep.subr.bf16.mxu0 %v2078
        %2213 = vmatpush1.bf16.msra.mxu0 %v2077
        %2214 = vmatprep.subr.bf16.mxu0 %v2076
        %2215 = vmatpush1.bf16.msra.mxu0 %v2075
        %2216 = vmatprep.subr.bf16.mxu0 %v2074
        %2217 = vmatpush1.bf16.msra.mxu0 %v2073
        %2218 = vmatprep.subr.bf16.mxu0 %v2072
        %2219 = vmatpush1.bf16.msra.mxu0 %v2071
        %2220 = vmatprep.subr.bf16.mxu0 %v2070
        %2221 = vmatpush1.bf16.msra.mxu0 %v2069
        %2222 = vmatprep.subr.bf16.mxu0 %v2100
        %2223 = vmatpush2.bf16.msra.mxu0 %v2099
        %2224 = vmatprep.subr.bf16.mxu0 %v2098
        %2225 = vmatpush2.bf16.msra.mxu0 %v2097
        %2226 = vmatprep.subr.bf16.mxu0 %v2096
        %2227 = vmatpush2.bf16.msra.mxu0 %v2095
        %2228 = vmatprep.subr.bf16.mxu0 %v2094
        %2229 = vmatpush2.bf16.msra.mxu0 %v2093
        %2230 = vmatprep.subr.bf16.mxu0 %v2092
        %2231 = vmatpush2.bf16.msra.mxu0 %v2091
        %2232 = vmatprep.subr.bf16.mxu0 %v2090
        %2233 = vmatpush2.bf16.msra.mxu0 %v2089
        %2234 = vmatprep.subr.bf16.mxu0 %v2088
        %2235 = vmatpush2.bf16.msra.mxu0 %v2087
        %2236 = vmatprep.subr.bf16.mxu0 %v2086
        %2237 = vmatpush2.bf16.msra.mxu0 %v2085
        %2238 = vmatprep.mubr.bf16.mxu0 %v1844
        %2239 = vmatmul.mubr.bf16.gmra.mxu0 %v1843
        %v2240 = vpop.f32.mrf.mxu0
        %v2241 = vadd.f32 %v2200, %v2240
        %v2242 = vpop.f32.mrf.mxu0
        %v2243 = vadd.f32 %v2202, %v2242
        %v2244 = vpop.f32.mrf.mxu0
        %v2245 = vpop.f32.mrf.mxu0
        %2246 = vdwg.mxu0
        %v2311 = vunpack.c.l.b16 %v904
        %v2312 = vunpack.c.h.b16 %v904
        %v2313 = vunpack.c.l.b16 %v905
        %v2314 = vunpack.c.h.b16 %v905
        %v2315 = vunpack.c.l.b16 %v906
        %v2316 = vunpack.c.h.b16 %v906
        %v2317 = vunpack.c.l.b16 %v907
        %v2318 = vunpack.c.h.b16 %v907
        %v2319 = vunpack.c.l.b16 %v908
        %v2320 = vunpack.c.h.b16 %v908
        %v2321 = vunpack.c.l.b16 %v909
        %v2322 = vunpack.c.h.b16 %v909
        %v2323 = vunpack.c.l.b16 %v910
        %v2324 = vunpack.c.h.b16 %v910
        %v2325 = vunpack.c.l.b16 %v911
        %v2326 = vunpack.c.h.b16 %v911
        %v2327 = vunpack.c.l.b16 %v912
        %v2328 = vunpack.c.h.b16 %v912
        %v2329 = vunpack.c.l.b16 %v913
        %v2330 = vunpack.c.h.b16 %v913
        %v2331 = vunpack.c.l.b16 %v914
        %v2332 = vunpack.c.h.b16 %v914
        %v2333 = vunpack.c.l.b16 %v915
        %v2334 = vunpack.c.h.b16 %v915
        %v2335 = vunpack.c.l.b16 %v916
        %v2336 = vunpack.c.h.b16 %v916
        %v2337 = vunpack.c.l.b16 %v917
        %v2338 = vunpack.c.h.b16 %v917
        %v2339 = vunpack.c.l.b16 %v918
        %v2340 = vunpack.c.h.b16 %v918
        %v2341 = vunpack.c.l.b16 %v919
        %v2342 = vunpack.c.h.b16 %v919
        %v2343 = vunpack.c.l.b16 %v920
        %v2344 = vunpack.c.h.b16 %v920
        %v2345 = vunpack.c.l.b16 %v921
        %v2346 = vunpack.c.h.b16 %v921
        %v2347 = vunpack.c.l.b16 %v922
        %v2348 = vunpack.c.h.b16 %v922
        %v2349 = vunpack.c.l.b16 %v923
        %v2350 = vunpack.c.h.b16 %v923
        %v2351 = vunpack.c.l.b16 %v924
        %v2352 = vunpack.c.h.b16 %v924
        %v2353 = vunpack.c.l.b16 %v925
        %v2354 = vunpack.c.h.b16 %v925
        %v2355 = vunpack.c.l.b16 %v926
        %v2356 = vunpack.c.h.b16 %v926
        %v2357 = vunpack.c.l.b16 %v927
        %v2358 = vunpack.c.h.b16 %v927
        %v2359 = vunpack.c.l.b16 %v928
        %v2360 = vunpack.c.h.b16 %v928
        %v2361 = vunpack.c.l.b16 %v929
        %v2362 = vunpack.c.h.b16 %v929
        %v2363 = vunpack.c.l.b16 %v930
        %v2364 = vunpack.c.h.b16 %v930
        %v2365 = vunpack.c.l.b16 %v931
        %v2366 = vunpack.c.h.b16 %v931
        %v2367 = vunpack.c.l.b16 %v932
        %v2368 = vunpack.c.h.b16 %v932
        %v2369 = vunpack.c.l.b16 %v933
        %v2370 = vunpack.c.h.b16 %v933
        %v2371 = vunpack.c.l.b16 %v934
        %v2372 = vunpack.c.h.b16 %v934
        %v2373 = vunpack.c.l.b16 %v935
        %v2374 = vunpack.c.h.b16 %v935
        %v2375 = vunpack.c.l.b16 %v936
        %v2376 = vunpack.c.h.b16 %v936
        %v2377 = vunpack.c.l.b16 %v937
        %v2378 = vunpack.c.h.b16 %v937
        %v2379 = vunpack.c.l.b16 %v938
        %v2380 = vunpack.c.h.b16 %v938
        %v2381 = vunpack.c.l.b16 %v939
        %v2382 = vunpack.c.h.b16 %v939
        %v2383 = vunpack.c.l.b16 %v940
        %v2384 = vunpack.c.h.b16 %v940
        %v2385 = vunpack.c.l.b16 %v941
        %v2386 = vunpack.c.h.b16 %v941
        %v2387 = vunpack.c.l.b16 %v942
        %v2388 = vunpack.c.h.b16 %v942
        %v2389 = vunpack.c.l.b16 %v943
        %v2390 = vunpack.c.h.b16 %v943
        %v2391 = vunpack.c.l.b16 %v944
        %v2392 = vunpack.c.h.b16 %v944
        %v2393 = vunpack.c.l.b16 %v945
        %v2394 = vunpack.c.h.b16 %v945
        %v2395 = vunpack.c.l.b16 %v946
        %v2396 = vunpack.c.h.b16 %v946
        %v2397 = vunpack.c.l.b16 %v947
        %v2398 = vunpack.c.h.b16 %v947
        %v2399 = vunpack.c.l.b16 %v948
        %v2400 = vunpack.c.h.b16 %v948
        %v2401 = vunpack.c.l.b16 %v949
        %v2402 = vunpack.c.h.b16 %v949
        %v2403 = vunpack.c.l.b16 %v950
        %v2404 = vunpack.c.h.b16 %v950
        %v2405 = vunpack.c.l.b16 %v951
        %v2406 = vunpack.c.h.b16 %v951
        %v2407 = vunpack.c.l.b16 %v952
        %v2408 = vunpack.c.h.b16 %v952
        %v2409 = vunpack.c.l.b16 %v953
        %v2410 = vunpack.c.h.b16 %v953
        %v2411 = vunpack.c.l.b16 %v954
        %v2412 = vunpack.c.h.b16 %v954
        %v2413 = vunpack.c.l.b16 %v955
        %v2414 = vunpack.c.h.b16 %v955
        %v2415 = vunpack.c.l.b16 %v956
        %v2416 = vunpack.c.h.b16 %v956
        %v2417 = vunpack.c.l.b16 %v957
        %v2418 = vunpack.c.h.b16 %v957
        %v2419 = vunpack.c.l.b16 %v958
        %v2420 = vunpack.c.h.b16 %v958
        %v2421 = vunpack.c.l.b16 %v959
        %v2422 = vunpack.c.h.b16 %v959
        %v2423 = vunpack.c.l.b16 %v960
        %v2424 = vunpack.c.h.b16 %v960
        %v2425 = vunpack.c.l.b16 %v961
        %v2426 = vunpack.c.h.b16 %v961
        %v2427 = vunpack.c.l.b16 %v962
        %v2428 = vunpack.c.h.b16 %v962
        %v2429 = vunpack.c.l.b16 %v963
        %v2430 = vunpack.c.h.b16 %v963
        %v2431 = vunpack.c.l.b16 %v964
        %v2432 = vunpack.c.h.b16 %v964
        %v2433 = vunpack.c.l.b16 %v965
        %v2434 = vunpack.c.h.b16 %v965
        %v2435 = vunpack.c.l.b16 %v966
        %v2436 = vunpack.c.h.b16 %v966
        %v2437 = vunpack.c.l.b16 %v967
        %v2438 = vunpack.c.h.b16 %v967
        %v2439 = vpack.c.b16 %v2313, %v2311
        %v2440 = vpack.c.b16 %v2314, %v2312
        %v2441 = vpack.c.b16 %v2317, %v2315
        %v2442 = vpack.c.b16 %v2318, %v2316
        %v2443 = vpack.c.b16 %v2321, %v2319
        %v2444 = vpack.c.b16 %v2322, %v2320
        %v2445 = vpack.c.b16 %v2325, %v2323
        %v2446 = vpack.c.b16 %v2326, %v2324
        %v2447 = vpack.c.b16 %v2329, %v2327
        %v2448 = vpack.c.b16 %v2330, %v2328
        %v2449 = vpack.c.b16 %v2333, %v2331
        %v2450 = vpack.c.b16 %v2334, %v2332
        %v2451 = vpack.c.b16 %v2337, %v2335
        %v2452 = vpack.c.b16 %v2338, %v2336
        %v2453 = vpack.c.b16 %v2341, %v2339
        %v2454 = vpack.c.b16 %v2342, %v2340
        %v2455 = vpack.c.b16 %v2345, %v2343
        %v2456 = vpack.c.b16 %v2346, %v2344
        %v2457 = vpack.c.b16 %v2349, %v2347
        %v2458 = vpack.c.b16 %v2350, %v2348
        %v2459 = vpack.c.b16 %v2353, %v2351
        %v2460 = vpack.c.b16 %v2354, %v2352
        %v2461 = vpack.c.b16 %v2357, %v2355
        %v2462 = vpack.c.b16 %v2358, %v2356
        %v2463 = vpack.c.b16 %v2361, %v2359
        %v2464 = vpack.c.b16 %v2362, %v2360
        %v2465 = vpack.c.b16 %v2365, %v2363
        %v2466 = vpack.c.b16 %v2366, %v2364
        %v2467 = vpack.c.b16 %v2369, %v2367
        %v2468 = vpack.c.b16 %v2370, %v2368
        %v2469 = vpack.c.b16 %v2373, %v2371
        %v2470 = vpack.c.b16 %v2374, %v2372
        %v2471 = vpack.c.b16 %v2377, %v2375
        %v2472 = vpack.c.b16 %v2378, %v2376
        %v2473 = vpack.c.b16 %v2381, %v2379
        %v2474 = vpack.c.b16 %v2382, %v2380
        %v2475 = vpack.c.b16 %v2385, %v2383
        %v2476 = vpack.c.b16 %v2386, %v2384
        %v2477 = vpack.c.b16 %v2389, %v2387
        %v2478 = vpack.c.b16 %v2390, %v2388
        %v2479 = vpack.c.b16 %v2393, %v2391
        %v2480 = vpack.c.b16 %v2394, %v2392
        %v2481 = vpack.c.b16 %v2397, %v2395
        %v2482 = vpack.c.b16 %v2398, %v2396
        %v2483 = vpack.c.b16 %v2401, %v2399
        %v2484 = vpack.c.b16 %v2402, %v2400
        %v2485 = vpack.c.b16 %v2405, %v2403
        %v2486 = vpack.c.b16 %v2406, %v2404
        %v2487 = vpack.c.b16 %v2409, %v2407
        %v2488 = vpack.c.b16 %v2410, %v2408
        %v2489 = vpack.c.b16 %v2413, %v2411
        %v2490 = vpack.c.b16 %v2414, %v2412
        %v2491 = vpack.c.b16 %v2417, %v2415
        %v2492 = vpack.c.b16 %v2418, %v2416
        %v2493 = vpack.c.b16 %v2421, %v2419
        %v2494 = vpack.c.b16 %v2422, %v2420
        %v2495 = vpack.c.b16 %v2425, %v2423
        %v2496 = vpack.c.b16 %v2426, %v2424
        %v2497 = vpack.c.b16 %v2429, %v2427
        %v2498 = vpack.c.b16 %v2430, %v2428
        %v2499 = vpack.c.b16 %v2433, %v2431
        %v2500 = vpack.c.b16 %v2434, %v2432
        %v2501 = vpack.c.b16 %v2437, %v2435
        %v2502 = vpack.c.b16 %v2438, %v2436
        %2567 = vmatprep.subr.bf16.mxu0 %v2454
        %2568 = vmatpush1.bf16.msra.mxu0 %v2453
        %2569 = vmatprep.subr.bf16.mxu0 %v2452
        %2570 = vmatpush1.bf16.msra.mxu0 %v2451
        %2571 = vmatprep.subr.bf16.mxu0 %v2450
        %2572 = vmatpush1.bf16.msra.mxu0 %v2449
        %2573 = vmatprep.subr.bf16.mxu0 %v2448
        %2574 = vmatpush1.bf16.msra.mxu0 %v2447
        %2575 = vmatprep.subr.bf16.mxu0 %v2446
        %2576 = vmatpush1.bf16.msra.mxu0 %v2445
        %2577 = vmatprep.subr.bf16.mxu0 %v2444
        %2578 = vmatpush1.bf16.msra.mxu0 %v2443
        %2579 = vmatprep.subr.bf16.mxu0 %v2442
        %2580 = vmatpush1.bf16.msra.mxu0 %v2441
        %2581 = vmatprep.subr.bf16.mxu0 %v2440
        %2582 = vmatpush1.bf16.msra.mxu0 %v2439
        %2583 = vmatprep.subr.bf16.mxu0 %v2470
        %2584 = vmatpush2.bf16.msra.mxu0 %v2469
        %2585 = vmatprep.subr.bf16.mxu0 %v2468
        %2586 = vmatpush2.bf16.msra.mxu0 %v2467
        %2587 = vmatprep.subr.bf16.mxu0 %v2466
        %2588 = vmatpush2.bf16.msra.mxu0 %v2465
        %2589 = vmatprep.subr.bf16.mxu0 %v2464
        %2590 = vmatpush2.bf16.msra.mxu0 %v2463
        %2591 = vmatprep.subr.bf16.mxu0 %v2462
        %2592 = vmatpush2.bf16.msra.mxu0 %v2461
        %2593 = vmatprep.subr.bf16.mxu0 %v2460
        %2594 = vmatpush2.bf16.msra.mxu0 %v2459
        %2595 = vmatprep.subr.bf16.mxu0 %v2458
        %2596 = vmatpush2.bf16.msra.mxu0 %v2457
        %2597 = vmatprep.subr.bf16.mxu0 %v2456
        %2598 = vmatpush2.bf16.msra.mxu0 %v2455
        %2599 = vmatprep.mubr.bf16.mxu0 %v969
        %2600 = vmatmul.mubr.bf16.gmra.mxu0 %v968
        %v2601 = vpop.f32.mrf.mxu0
        %v2602 = vadd.f32 %v2241, %v2601
        %v2603 = vpop.f32.mrf.mxu0
        %v2604 = vadd.f32 %v2243, %v2603
        %v2605 = vpop.f32.mrf.mxu0
        %v2606 = vpop.f32.mrf.mxu0
        %2607 = vdwg.mxu0
        %2608 = vmatprep.subr.bf16.mxu0 %v2486
        %2609 = vmatpush1.bf16.msra.mxu0 %v2485
        %2610 = vmatprep.subr.bf16.mxu0 %v2484
        %2611 = vmatpush1.bf16.msra.mxu0 %v2483
        %2612 = vmatprep.subr.bf16.mxu0 %v2482
        %2613 = vmatpush1.bf16.msra.mxu0 %v2481
        %2614 = vmatprep.subr.bf16.mxu0 %v2480
        %2615 = vmatpush1.bf16.msra.mxu0 %v2479
        %2616 = vmatprep.subr.bf16.mxu0 %v2478
        %2617 = vmatpush1.bf16.msra.mxu0 %v2477
        %2618 = vmatprep.subr.bf16.mxu0 %v2476
        %2619 = vmatpush1.bf16.msra.mxu0 %v2475
        %2620 = vmatprep.subr.bf16.mxu0 %v2474
        %2621 = vmatpush1.bf16.msra.mxu0 %v2473
        %2622 = vmatprep.subr.bf16.mxu0 %v2472
        %2623 = vmatpush1.bf16.msra.mxu0 %v2471
        %2624 = vmatprep.subr.bf16.mxu0 %v2502
        %2625 = vmatpush2.bf16.msra.mxu0 %v2501
        %2626 = vmatprep.subr.bf16.mxu0 %v2500
        %2627 = vmatpush2.bf16.msra.mxu0 %v2499
        %2628 = vmatprep.subr.bf16.mxu0 %v2498
        %2629 = vmatpush2.bf16.msra.mxu0 %v2497
        %2630 = vmatprep.subr.bf16.mxu0 %v2496
        %2631 = vmatpush2.bf16.msra.mxu0 %v2495
        %2632 = vmatprep.subr.bf16.mxu0 %v2494
        %2633 = vmatpush2.bf16.msra.mxu0 %v2493
        %2634 = vmatprep.subr.bf16.mxu0 %v2492
        %2635 = vmatpush2.bf16.msra.mxu0 %v2491
        %2636 = vmatprep.subr.bf16.mxu0 %v2490
        %2637 = vmatpush2.bf16.msra.mxu0 %v2489
        %2638 = vmatprep.subr.bf16.mxu0 %v2488
        %2639 = vmatpush2.bf16.msra.mxu0 %v2487
        %2640 = vmatprep.mubr.bf16.mxu0 %v971
        %2641 = vmatmul.mubr.bf16.gmra.mxu0 %v970
        %v2642 = vpop.f32.mrf.mxu0
        %v2643 = vadd.f32 %v2602, %v2642
        %v2644 = vpop.f32.mrf.mxu0
        %v2645 = vadd.f32 %v2604, %v2644
        %v2646 = vpop.f32.mrf.mxu0
        %v2647 = vpop.f32.mrf.mxu0
        %2648 = vdwg.mxu0
        %2649 = vmatprep.subr.bf16.mxu0 %v1385
        %2650 = vmatpush1.bf16.msra.mxu0 %v1384
        %2651 = vmatprep.subr.bf16.mxu0 %v1381
        %2652 = vmatpush1.bf16.msra.mxu0 %v1380
        %2653 = vmatprep.subr.bf16.mxu0 %v1377
        %2654 = vmatpush1.bf16.msra.mxu0 %v1376
        %2655 = vmatprep.subr.bf16.mxu0 %v1373
        %2656 = vmatpush1.bf16.msra.mxu0 %v1372
        %2657 = vmatprep.subr.bf16.mxu0 %v1369
        %2658 = vmatpush1.bf16.msra.mxu0 %v1368
        %2659 = vmatprep.subr.bf16.mxu0 %v1365
        %2660 = vmatpush1.bf16.msra.mxu0 %v1364
        %2661 = vmatprep.subr.bf16.mxu0 %v1361
        %2662 = vmatpush1.bf16.msra.mxu0 %v1360
        %2663 = vmatprep.subr.bf16.mxu0 %v1357
        %2664 = vmatpush1.bf16.msra.mxu0 %v1356
        %2665 = vmatprep.subr.bf16.mxu0 %v1417
        %2666 = vmatpush2.bf16.msra.mxu0 %v1416
        %2667 = vmatprep.subr.bf16.mxu0 %v1413
        %2668 = vmatpush2.bf16.msra.mxu0 %v1412
        %2669 = vmatprep.subr.bf16.mxu0 %v1409
        %2670 = vmatpush2.bf16.msra.mxu0 %v1408
        %2671 = vmatprep.subr.bf16.mxu0 %v1405
        %2672 = vmatpush2.bf16.msra.mxu0 %v1404
        %2673 = vmatprep.subr.bf16.mxu0 %v1401
        %2674 = vmatpush2.bf16.msra.mxu0 %v1400
        %2675 = vmatprep.subr.bf16.mxu0 %v1397
        %2676 = vmatpush2.bf16.msra.mxu0 %v1396
        %2677 = vmatprep.subr.bf16.mxu0 %v1393
        %2678 = vmatpush2.bf16.msra.mxu0 %v1392
        %2679 = vmatprep.subr.bf16.mxu0 %v1389
        %2680 = vmatpush2.bf16.msra.mxu0 %v1388
        %2681 = vmatprep.mubr.bf16.mxu0 %v1842
        %2682 = vmatmul.mubr.bf16.gmra.mxu0 %v1841
        %v2683 = vpop.f32.mrf.mxu0
        %v2684 = vadd.f32 0.0, %v2683
        %v2685 = vpop.f32.mrf.mxu0
        %v2686 = vadd.f32 0.0, %v2685
        %v2687 = vpop.f32.mrf.mxu0
        %v2688 = vpop.f32.mrf.mxu0
        %2689 = vdwg.mxu0
        %2690 = vmatprep.subr.bf16.mxu0 %v1449
        %2691 = vmatpush1.bf16.msra.mxu0 %v1448
        %2692 = vmatprep.subr.bf16.mxu0 %v1445
        %2693 = vmatpush1.bf16.msra.mxu0 %v1444
        %2694 = vmatprep.subr.bf16.mxu0 %v1441
        %2695 = vmatpush1.bf16.msra.mxu0 %v1440
        %2696 = vmatprep.subr.bf16.mxu0 %v1437
        %2697 = vmatpush1.bf16.msra.mxu0 %v1436
        %2698 = vmatprep.subr.bf16.mxu0 %v1433
        %2699 = vmatpush1.bf16.msra.mxu0 %v1432
        %2700 = vmatprep.subr.bf16.mxu0 %v1429
        %2701 = vmatpush1.bf16.msra.mxu0 %v1428
        %2702 = vmatprep.subr.bf16.mxu0 %v1425
        %2703 = vmatpush1.bf16.msra.mxu0 %v1424
        %2704 = vmatprep.subr.bf16.mxu0 %v1421
        %2705 = vmatpush1.bf16.msra.mxu0 %v1420
        %2706 = vmatprep.subr.bf16.mxu0 %v1481
        %2707 = vmatpush2.bf16.msra.mxu0 %v1480
        %2708 = vmatprep.subr.bf16.mxu0 %v1477
        %2709 = vmatpush2.bf16.msra.mxu0 %v1476
        %2710 = vmatprep.subr.bf16.mxu0 %v1473
        %2711 = vmatpush2.bf16.msra.mxu0 %v1472
        %2712 = vmatprep.subr.bf16.mxu0 %v1469
        %2713 = vmatpush2.bf16.msra.mxu0 %v1468
        %2714 = vmatprep.subr.bf16.mxu0 %v1465
        %2715 = vmatpush2.bf16.msra.mxu0 %v1464
        %2716 = vmatprep.subr.bf16.mxu0 %v1461
        %2717 = vmatpush2.bf16.msra.mxu0 %v1460
        %2718 = vmatprep.subr.bf16.mxu0 %v1457
        %2719 = vmatpush2.bf16.msra.mxu0 %v1456
        %2720 = vmatprep.subr.bf16.mxu0 %v1453
        %2721 = vmatpush2.bf16.msra.mxu0 %v1452
        %2722 = vmatprep.mubr.bf16.mxu0 %v1844
        %2723 = vmatmul.mubr.bf16.gmra.mxu0 %v1843
        %v2724 = vpop.f32.mrf.mxu0
        %v2725 = vadd.f32 %v2684, %v2724
        %v2726 = vpop.f32.mrf.mxu0
        %v2727 = vadd.f32 %v2686, %v2726
        %v2728 = vpop.f32.mrf.mxu0
        %v2729 = vpop.f32.mrf.mxu0
        %2730 = vdwg.mxu0
        %2731 = vmatprep.subr.bf16.mxu0 %v1387
        %2732 = vmatpush1.bf16.msra.mxu0 %v1386
        %2733 = vmatprep.subr.bf16.mxu0 %v1383
        %2734 = vmatpush1.bf16.msra.mxu0 %v1382
        %2735 = vmatprep.subr.bf16.mxu0 %v1379
        %2736 = vmatpush1.bf16.msra.mxu0 %v1378
        %2737 = vmatprep.subr.bf16.mxu0 %v1375
        %2738 = vmatpush1.bf16.msra.mxu0 %v1374
        %2739 = vmatprep.subr.bf16.mxu0 %v1371
        %2740 = vmatpush1.bf16.msra.mxu0 %v1370
        %2741 = vmatprep.subr.bf16.mxu0 %v1367
        %2742 = vmatpush1.bf16.msra.mxu0 %v1366
        %2743 = vmatprep.subr.bf16.mxu0 %v1363
        %2744 = vmatpush1.bf16.msra.mxu0 %v1362
        %2745 = vmatprep.subr.bf16.mxu0 %v1359
        %2746 = vmatpush1.bf16.msra.mxu0 %v1358
        %2747 = vmatprep.subr.bf16.mxu0 %v1419
        %2748 = vmatpush2.bf16.msra.mxu0 %v1418
        %2749 = vmatprep.subr.bf16.mxu0 %v1415
        %2750 = vmatpush2.bf16.msra.mxu0 %v1414
        %2751 = vmatprep.subr.bf16.mxu0 %v1411
        %2752 = vmatpush2.bf16.msra.mxu0 %v1410
        %2753 = vmatprep.subr.bf16.mxu0 %v1407
        %2754 = vmatpush2.bf16.msra.mxu0 %v1406
        %2755 = vmatprep.subr.bf16.mxu0 %v1403
        %2756 = vmatpush2.bf16.msra.mxu0 %v1402
        %2757 = vmatprep.subr.bf16.mxu0 %v1399
        %2758 = vmatpush2.bf16.msra.mxu0 %v1398
        %2759 = vmatprep.subr.bf16.mxu0 %v1395
        %2760 = vmatpush2.bf16.msra.mxu0 %v1394
        %2761 = vmatprep.subr.bf16.mxu0 %v1391
        %2762 = vmatpush2.bf16.msra.mxu0 %v1390
        %2763 = vmatprep.mubr.bf16.mxu0 %v1842
        %2764 = vmatmul.mubr.bf16.gmra.mxu0 %v1841
        %v2765 = vpop.f32.mrf.mxu0
        %v2766 = vadd.f32 0.0, %v2765
        %v2767 = vpop.f32.mrf.mxu0
        %v2768 = vadd.f32 0.0, %v2767
        %v2769 = vpop.f32.mrf.mxu0
        %v2770 = vpop.f32.mrf.mxu0
        %2771 = vdwg.mxu0
        %2772 = vmatprep.subr.bf16.mxu0 %v1451
        %2773 = vmatpush1.bf16.msra.mxu0 %v1450
        %2774 = vmatprep.subr.bf16.mxu0 %v1447
        %2775 = vmatpush1.bf16.msra.mxu0 %v1446
        %2776 = vmatprep.subr.bf16.mxu0 %v1443
        %2777 = vmatpush1.bf16.msra.mxu0 %v1442
        %2778 = vmatprep.subr.bf16.mxu0 %v1439
        %2779 = vmatpush1.bf16.msra.mxu0 %v1438
        %2780 = vmatprep.subr.bf16.mxu0 %v1435
        %2781 = vmatpush1.bf16.msra.mxu0 %v1434
        %2782 = vmatprep.subr.bf16.mxu0 %v1431
        %2783 = vmatpush1.bf16.msra.mxu0 %v1430
        %2784 = vmatprep.subr.bf16.mxu0 %v1427
        %2785 = vmatpush1.bf16.msra.mxu0 %v1426
        %2786 = vmatprep.subr.bf16.mxu0 %v1423
        %2787 = vmatpush1.bf16.msra.mxu0 %v1422
        %2788 = vmatprep.subr.bf16.mxu0 %v1483
        %2789 = vmatpush2.bf16.msra.mxu0 %v1482
        %2790 = vmatprep.subr.bf16.mxu0 %v1479
        %2791 = vmatpush2.bf16.msra.mxu0 %v1478
        %2792 = vmatprep.subr.bf16.mxu0 %v1475
        %2793 = vmatpush2.bf16.msra.mxu0 %v1474
        %2794 = vmatprep.subr.bf16.mxu0 %v1471
        %2795 = vmatpush2.bf16.msra.mxu0 %v1470
        %2796 = vmatprep.subr.bf16.mxu0 %v1467
        %2797 = vmatpush2.bf16.msra.mxu0 %v1466
        %2798 = vmatprep.subr.bf16.mxu0 %v1463
        %2799 = vmatpush2.bf16.msra.mxu0 %v1462
        %2800 = vmatprep.subr.bf16.mxu0 %v1459
        %2801 = vmatpush2.bf16.msra.mxu0 %v1458
        %2802 = vmatprep.subr.bf16.mxu0 %v1455
        %2803 = vmatpush2.bf16.msra.mxu0 %v1454
        %2804 = vmatprep.mubr.bf16.mxu0 %v1844
        %2805 = vmatmul.mubr.bf16.gmra.mxu0 %v1843
        %v2806 = vpop.f32.mrf.mxu0
        %v2807 = vadd.f32 %v2766, %v2806
        %v2808 = vpop.f32.mrf.mxu0
        %v2809 = vadd.f32 %v2768, %v2808
        %v2810 = vpop.f32.mrf.mxu0
        %v2811 = vpop.f32.mrf.mxu0
        %2812 = vdwg.mxu0
        %v2813 = vmul.f32 %v2725, 2.0
        %v2814 = vmul.f32 %v2727, 2.0
        %v2815 = vmul.f32 %v2807, 2.0
        %v2816 = vmul.f32 %v2809, 2.0
        %v2817 = vsub.f32 %v2813, %v900
        %v2818 = vsub.f32 %v2814, %v901
        %v2819 = vsub.f32 %v2815, %v902
        %v2820 = vsub.f32 %v2816, %v903
        %s2821 = scalar_lea.vmem [#allocation6], 1024
        %v2822 = vld [vmem:[%s2821] sm:$0xff]
        %v2823 = vld [vmem:[%s2821 + $0x8] sm:$0xff]
        %v2824 = vld [vmem:[%s2821 + $0x10] sm:$0xff]
        %v2825 = vld [vmem:[%s2821 + $0x18] sm:$0xff]
        %v2826 = vld [vmem:[%s2821 + $0x20] sm:$0xff]
        %v2827 = vld [vmem:[%s2821 + $0x28] sm:$0xff]
        %v2828 = vld [vmem:[%s2821 + $0x30] sm:$0xff]
        %v2829 = vld [vmem:[%s2821 + $0x38] sm:$0xff]
        %v2830 = vld [vmem:[%s2821 + $0x40] sm:$0xff]
        %v2831 = vld [vmem:[%s2821 + $0x48] sm:$0xff]
        %v2832 = vld [vmem:[%s2821 + $0x50] sm:$0xff]
        %v2833 = vld [vmem:[%s2821 + $0x58] sm:$0xff]
        %v2834 = vld [vmem:[%s2821 + $0x60] sm:$0xff]
        %v2835 = vld [vmem:[%s2821 + $0x68] sm:$0xff]
        %v2836 = vld [vmem:[%s2821 + $0x70] sm:$0xff]
        %v2837 = vld [vmem:[%s2821 + $0x78] sm:$0xff]
        %v2838 = vld [vmem:[%s2821 + $0x80] sm:$0xff]
        %v2839 = vld [vmem:[%s2821 + $0x88] sm:$0xff]
        %v2840 = vld [vmem:[%s2821 + $0x90] sm:$0xff]
        %v2841 = vld [vmem:[%s2821 + $0x98] sm:$0xff]
        %v2842 = vld [vmem:[%s2821 + $0xa0] sm:$0xff]
        %v2843 = vld [vmem:[%s2821 + $0xa8] sm:$0xff]
        %v2844 = vld [vmem:[%s2821 + $0xb0] sm:$0xff]
        %v2845 = vld [vmem:[%s2821 + $0xb8] sm:$0xff]
        %v2846 = vld [vmem:[%s2821 + $0xc0] sm:$0xff]
        %v2847 = vld [vmem:[%s2821 + $0xc8] sm:$0xff]
        %v2848 = vld [vmem:[%s2821 + $0xd0] sm:$0xff]
        %v2849 = vld [vmem:[%s2821 + $0xd8] sm:$0xff]
        %v2850 = vld [vmem:[%s2821 + $0xe0] sm:$0xff]
        %v2851 = vld [vmem:[%s2821 + $0xe8] sm:$0xff]
        %v2852 = vld [vmem:[%s2821 + $0xf0] sm:$0xff]
        %v2853 = vld [vmem:[%s2821 + $0xf8] sm:$0xff]
        %v2854 = vld [vmem:[%s2821 + $0x100] sm:$0xff]
        %v2855 = vld [vmem:[%s2821 + $0x108] sm:$0xff]
        %v2856 = vld [vmem:[%s2821 + $0x110] sm:$0xff]
        %v2857 = vld [vmem:[%s2821 + $0x118] sm:$0xff]
        %v2858 = vld [vmem:[%s2821 + $0x120] sm:$0xff]
        %v2859 = vld [vmem:[%s2821 + $0x128] sm:$0xff]
        %v2860 = vld [vmem:[%s2821 + $0x130] sm:$0xff]
        %v2861 = vld [vmem:[%s2821 + $0x138] sm:$0xff]
        %v2862 = vld [vmem:[%s2821 + $0x140] sm:$0xff]
        %v2863 = vld [vmem:[%s2821 + $0x148] sm:$0xff]
        %v2864 = vld [vmem:[%s2821 + $0x150] sm:$0xff]
        %v2865 = vld [vmem:[%s2821 + $0x158] sm:$0xff]
        %v2866 = vld [vmem:[%s2821 + $0x160] sm:$0xff]
        %v2867 = vld [vmem:[%s2821 + $0x168] sm:$0xff]
        %v2868 = vld [vmem:[%s2821 + $0x170] sm:$0xff]
        %v2869 = vld [vmem:[%s2821 + $0x178] sm:$0xff]
        %v2870 = vld [vmem:[%s2821 + $0x180] sm:$0xff]
        %v2871 = vld [vmem:[%s2821 + $0x188] sm:$0xff]
        %v2872 = vld [vmem:[%s2821 + $0x190] sm:$0xff]
        %v2873 = vld [vmem:[%s2821 + $0x198] sm:$0xff]
        %v2874 = vld [vmem:[%s2821 + $0x1a0] sm:$0xff]
        %v2875 = vld [vmem:[%s2821 + $0x1a8] sm:$0xff]
        %v2876 = vld [vmem:[%s2821 + $0x1b0] sm:$0xff]
        %v2877 = vld [vmem:[%s2821 + $0x1b8] sm:$0xff]
        %v2878 = vld [vmem:[%s2821 + $0x1c0] sm:$0xff]
        %v2879 = vld [vmem:[%s2821 + $0x1c8] sm:$0xff]
        %v2880 = vld [vmem:[%s2821 + $0x1d0] sm:$0xff]
        %v2881 = vld [vmem:[%s2821 + $0x1d8] sm:$0xff]
        %v2882 = vld [vmem:[%s2821 + $0x1e0] sm:$0xff]
        %v2883 = vld [vmem:[%s2821 + $0x1e8] sm:$0xff]
        %v2884 = vld [vmem:[%s2821 + $0x1f0] sm:$0xff]
        %v2885 = vld [vmem:[%s2821 + $0x1f8] sm:$0xff]
        %v2886 = vpack.c.bf16 %v2817, %v2817
        %v2887 = vpack.c.bf16 %v2818, %v2818
        %v2888 = vpack.c.bf16 %v2819, %v2819
        %v2889 = vpack.c.bf16 %v2820, %v2820
        %v2954 = vunpack.c.l.b16 %v2822
        %v2955 = vunpack.c.h.b16 %v2822
        %v2956 = vunpack.c.l.b16 %v2823
        %v2957 = vunpack.c.h.b16 %v2823
        %v2958 = vunpack.c.l.b16 %v2824
        %v2959 = vunpack.c.h.b16 %v2824
        %v2960 = vunpack.c.l.b16 %v2825
        %v2961 = vunpack.c.h.b16 %v2825
        %v2962 = vunpack.c.l.b16 %v2826
        %v2963 = vunpack.c.h.b16 %v2826
        %v2964 = vunpack.c.l.b16 %v2827
        %v2965 = vunpack.c.h.b16 %v2827
        %v2966 = vunpack.c.l.b16 %v2828
        %v2967 = vunpack.c.h.b16 %v2828
        %v2968 = vunpack.c.l.b16 %v2829
        %v2969 = vunpack.c.h.b16 %v2829
        %v2970 = vunpack.c.l.b16 %v2830
        %v2971 = vunpack.c.h.b16 %v2830
        %v2972 = vunpack.c.l.b16 %v2831
        %v2973 = vunpack.c.h.b16 %v2831
        %v2974 = vunpack.c.l.b16 %v2832
        %v2975 = vunpack.c.h.b16 %v2832
        %v2976 = vunpack.c.l.b16 %v2833
        %v2977 = vunpack.c.h.b16 %v2833
        %v2978 = vunpack.c.l.b16 %v2834
        %v2979 = vunpack.c.h.b16 %v2834
        %v2980 = vunpack.c.l.b16 %v2835
        %v2981 = vunpack.c.h.b16 %v2835
        %v2982 = vunpack.c.l.b16 %v2836
        %v2983 = vunpack.c.h.b16 %v2836
        %v2984 = vunpack.c.l.b16 %v2837
        %v2985 = vunpack.c.h.b16 %v2837
        %v2986 = vunpack.c.l.b16 %v2838
        %v2987 = vunpack.c.h.b16 %v2838
        %v2988 = vunpack.c.l.b16 %v2839
        %v2989 = vunpack.c.h.b16 %v2839
        %v2990 = vunpack.c.l.b16 %v2840
        %v2991 = vunpack.c.h.b16 %v2840
        %v2992 = vunpack.c.l.b16 %v2841
        %v2993 = vunpack.c.h.b16 %v2841
        %v2994 = vunpack.c.l.b16 %v2842
        %v2995 = vunpack.c.h.b16 %v2842
        %v2996 = vunpack.c.l.b16 %v2843
        %v2997 = vunpack.c.h.b16 %v2843
        %v2998 = vunpack.c.l.b16 %v2844
        %v2999 = vunpack.c.h.b16 %v2844
        %v3000 = vunpack.c.l.b16 %v2845
        %v3001 = vunpack.c.h.b16 %v2845
        %v3002 = vunpack.c.l.b16 %v2846
        %v3003 = vunpack.c.h.b16 %v2846
        %v3004 = vunpack.c.l.b16 %v2847
        %v3005 = vunpack.c.h.b16 %v2847
        %v3006 = vunpack.c.l.b16 %v2848
        %v3007 = vunpack.c.h.b16 %v2848
        %v3008 = vunpack.c.l.b16 %v2849
        %v3009 = vunpack.c.h.b16 %v2849
        %v3010 = vunpack.c.l.b16 %v2850
        %v3011 = vunpack.c.h.b16 %v2850
        %v3012 = vunpack.c.l.b16 %v2851
        %v3013 = vunpack.c.h.b16 %v2851
        %v3014 = vunpack.c.l.b16 %v2852
        %v3015 = vunpack.c.h.b16 %v2852
        %v3016 = vunpack.c.l.b16 %v2853
        %v3017 = vunpack.c.h.b16 %v2853
        %v3018 = vunpack.c.l.b16 %v2854
        %v3019 = vunpack.c.h.b16 %v2854
        %v3020 = vunpack.c.l.b16 %v2855
        %v3021 = vunpack.c.h.b16 %v2855
        %v3022 = vunpack.c.l.b16 %v2856
        %v3023 = vunpack.c.h.b16 %v2856
        %v3024 = vunpack.c.l.b16 %v2857
        %v3025 = vunpack.c.h.b16 %v2857
        %v3026 = vunpack.c.l.b16 %v2858
        %v3027 = vunpack.c.h.b16 %v2858
        %v3028 = vunpack.c.l.b16 %v2859
        %v3029 = vunpack.c.h.b16 %v2859
        %v3030 = vunpack.c.l.b16 %v2860
        %v3031 = vunpack.c.h.b16 %v2860
        %v3032 = vunpack.c.l.b16 %v2861
        %v3033 = vunpack.c.h.b16 %v2861
        %v3034 = vunpack.c.l.b16 %v2862
        %v3035 = vunpack.c.h.b16 %v2862
        %v3036 = vunpack.c.l.b16 %v2863
        %v3037 = vunpack.c.h.b16 %v2863
        %v3038 = vunpack.c.l.b16 %v2864
        %v3039 = vunpack.c.h.b16 %v2864
        %v3040 = vunpack.c.l.b16 %v2865
        %v3041 = vunpack.c.h.b16 %v2865
        %v3042 = vunpack.c.l.b16 %v2866
        %v3043 = vunpack.c.h.b16 %v2866
        %v3044 = vunpack.c.l.b16 %v2867
        %v3045 = vunpack.c.h.b16 %v2867
        %v3046 = vunpack.c.l.b16 %v2868
        %v3047 = vunpack.c.h.b16 %v2868
        %v3048 = vunpack.c.l.b16 %v2869
        %v3049 = vunpack.c.h.b16 %v2869
        %v3050 = vunpack.c.l.b16 %v2870
        %v3051 = vunpack.c.h.b16 %v2870
        %v3052 = vunpack.c.l.b16 %v2871
        %v3053 = vunpack.c.h.b16 %v2871
        %v3054 = vunpack.c.l.b16 %v2872
        %v3055 = vunpack.c.h.b16 %v2872
        %v3056 = vunpack.c.l.b16 %v2873
        %v3057 = vunpack.c.h.b16 %v2873
        %v3058 = vunpack.c.l.b16 %v2874
        %v3059 = vunpack.c.h.b16 %v2874
        %v3060 = vunpack.c.l.b16 %v2875
        %v3061 = vunpack.c.h.b16 %v2875
        %v3062 = vunpack.c.l.b16 %v2876
        %v3063 = vunpack.c.h.b16 %v2876
        %v3064 = vunpack.c.l.b16 %v2877
        %v3065 = vunpack.c.h.b16 %v2877
        %v3066 = vunpack.c.l.b16 %v2878
        %v3067 = vunpack.c.h.b16 %v2878
        %v3068 = vunpack.c.l.b16 %v2879
        %v3069 = vunpack.c.h.b16 %v2879
        %v3070 = vunpack.c.l.b16 %v2880
        %v3071 = vunpack.c.h.b16 %v2880
        %v3072 = vunpack.c.l.b16 %v2881
        %v3073 = vunpack.c.h.b16 %v2881
        %v3074 = vunpack.c.l.b16 %v2882
        %v3075 = vunpack.c.h.b16 %v2882
        %v3076 = vunpack.c.l.b16 %v2883
        %v3077 = vunpack.c.h.b16 %v2883
        %v3078 = vunpack.c.l.b16 %v2884
        %v3079 = vunpack.c.h.b16 %v2884
        %v3080 = vunpack.c.l.b16 %v2885
        %v3081 = vunpack.c.h.b16 %v2885
        %v3082 = vpack.c.b16 %v2956, %v2954
        %v3083 = vpack.c.b16 %v2957, %v2955
        %v3084 = vpack.c.b16 %v2960, %v2958
        %v3085 = vpack.c.b16 %v2961, %v2959
        %v3086 = vpack.c.b16 %v2964, %v2962
        %v3087 = vpack.c.b16 %v2965, %v2963
        %v3088 = vpack.c.b16 %v2968, %v2966
        %v3089 = vpack.c.b16 %v2969, %v2967
        %v3090 = vpack.c.b16 %v2972, %v2970
        %v3091 = vpack.c.b16 %v2973, %v2971
        %v3092 = vpack.c.b16 %v2976, %v2974
        %v3093 = vpack.c.b16 %v2977, %v2975
        %v3094 = vpack.c.b16 %v2980, %v2978
        %v3095 = vpack.c.b16 %v2981, %v2979
        %v3096 = vpack.c.b16 %v2984, %v2982
        %v3097 = vpack.c.b16 %v2985, %v2983
        %v3098 = vpack.c.b16 %v2988, %v2986
        %v3099 = vpack.c.b16 %v2989, %v2987
        %v3100 = vpack.c.b16 %v2992, %v2990
        %v3101 = vpack.c.b16 %v2993, %v2991
        %v3102 = vpack.c.b16 %v2996, %v2994
        %v3103 = vpack.c.b16 %v2997, %v2995
        %v3104 = vpack.c.b16 %v3000, %v2998
        %v3105 = vpack.c.b16 %v3001, %v2999
        %v3106 = vpack.c.b16 %v3004, %v3002
        %v3107 = vpack.c.b16 %v3005, %v3003
        %v3108 = vpack.c.b16 %v3008, %v3006
        %v3109 = vpack.c.b16 %v3009, %v3007
        %v3110 = vpack.c.b16 %v3012, %v3010
        %v3111 = vpack.c.b16 %v3013, %v3011
        %v3112 = vpack.c.b16 %v3016, %v3014
        %v3113 = vpack.c.b16 %v3017, %v3015
        %v3114 = vpack.c.b16 %v3020, %v3018
        %v3115 = vpack.c.b16 %v3021, %v3019
        %v3116 = vpack.c.b16 %v3024, %v3022
        %v3117 = vpack.c.b16 %v3025, %v3023
        %v3118 = vpack.c.b16 %v3028, %v3026
        %v3119 = vpack.c.b16 %v3029, %v3027
        %v3120 = vpack.c.b16 %v3032, %v3030
        %v3121 = vpack.c.b16 %v3033, %v3031
        %v3122 = vpack.c.b16 %v3036, %v3034
        %v3123 = vpack.c.b16 %v3037, %v3035
        %v3124 = vpack.c.b16 %v3040, %v3038
        %v3125 = vpack.c.b16 %v3041, %v3039
        %v3126 = vpack.c.b16 %v3044, %v3042
        %v3127 = vpack.c.b16 %v3045, %v3043
        %v3128 = vpack.c.b16 %v3048, %v3046
        %v3129 = vpack.c.b16 %v3049, %v3047
        %v3130 = vpack.c.b16 %v3052, %v3050
        %v3131 = vpack.c.b16 %v3053, %v3051
        %v3132 = vpack.c.b16 %v3056, %v3054
        %v3133 = vpack.c.b16 %v3057, %v3055
        %v3134 = vpack.c.b16 %v3060, %v3058
        %v3135 = vpack.c.b16 %v3061, %v3059
        %v3136 = vpack.c.b16 %v3064, %v3062
        %v3137 = vpack.c.b16 %v3065, %v3063
        %v3138 = vpack.c.b16 %v3068, %v3066
        %v3139 = vpack.c.b16 %v3069, %v3067
        %v3140 = vpack.c.b16 %v3072, %v3070
        %v3141 = vpack.c.b16 %v3073, %v3071
        %v3142 = vpack.c.b16 %v3076, %v3074
        %v3143 = vpack.c.b16 %v3077, %v3075
        %v3144 = vpack.c.b16 %v3080, %v3078
        %v3145 = vpack.c.b16 %v3081, %v3079
        %3210 = vmatprep.subr.bf16.mxu0 %v3097
        %3211 = vmatpush1.bf16.msra.mxu0 %v3096
        %3212 = vmatprep.subr.bf16.mxu0 %v3095
        %3213 = vmatpush1.bf16.msra.mxu0 %v3094
        %3214 = vmatprep.subr.bf16.mxu0 %v3093
        %3215 = vmatpush1.bf16.msra.mxu0 %v3092
        %3216 = vmatprep.subr.bf16.mxu0 %v3091
        %3217 = vmatpush1.bf16.msra.mxu0 %v3090
        %3218 = vmatprep.subr.bf16.mxu0 %v3089
        %3219 = vmatpush1.bf16.msra.mxu0 %v3088
        %3220 = vmatprep.subr.bf16.mxu0 %v3087
        %3221 = vmatpush1.bf16.msra.mxu0 %v3086
        %3222 = vmatprep.subr.bf16.mxu0 %v3085
        %3223 = vmatpush1.bf16.msra.mxu0 %v3084
        %3224 = vmatprep.subr.bf16.mxu0 %v3083
        %3225 = vmatpush1.bf16.msra.mxu0 %v3082
        %3226 = vmatprep.subr.bf16.mxu0 %v3113
        %3227 = vmatpush2.bf16.msra.mxu0 %v3112
        %3228 = vmatprep.subr.bf16.mxu0 %v3111
        %3229 = vmatpush2.bf16.msra.mxu0 %v3110
        %3230 = vmatprep.subr.bf16.mxu0 %v3109
        %3231 = vmatpush2.bf16.msra.mxu0 %v3108
        %3232 = vmatprep.subr.bf16.mxu0 %v3107
        %3233 = vmatpush2.bf16.msra.mxu0 %v3106
        %3234 = vmatprep.subr.bf16.mxu0 %v3105
        %3235 = vmatpush2.bf16.msra.mxu0 %v3104
        %3236 = vmatprep.subr.bf16.mxu0 %v3103
        %3237 = vmatpush2.bf16.msra.mxu0 %v3102
        %3238 = vmatprep.subr.bf16.mxu0 %v3101
        %3239 = vmatpush2.bf16.msra.mxu0 %v3100
        %3240 = vmatprep.subr.bf16.mxu0 %v3099
        %3241 = vmatpush2.bf16.msra.mxu0 %v3098
        %3242 = vmatprep.mubr.bf16.mxu0 %v2887
        %3243 = vmatmul.mubr.bf16.gmra.mxu0 %v2886
        %v3244 = vpop.f32.mrf.mxu0
        %v3245 = vadd.f32 0.0, %v3244
        %v3246 = vpop.f32.mrf.mxu0
        %v3247 = vadd.f32 0.0, %v3246
        %v3248 = vpop.f32.mrf.mxu0
        %v3249 = vpop.f32.mrf.mxu0
        %3250 = vdwg.mxu0
        %3251 = vmatprep.subr.bf16.mxu0 %v3129
        %3252 = vmatpush1.bf16.msra.mxu0 %v3128
        %3253 = vmatprep.subr.bf16.mxu0 %v3127
        %3254 = vmatpush1.bf16.msra.mxu0 %v3126
        %3255 = vmatprep.subr.bf16.mxu0 %v3125
        %3256 = vmatpush1.bf16.msra.mxu0 %v3124
        %3257 = vmatprep.subr.bf16.mxu0 %v3123
        %3258 = vmatpush1.bf16.msra.mxu0 %v3122
        %3259 = vmatprep.subr.bf16.mxu0 %v3121
        %3260 = vmatpush1.bf16.msra.mxu0 %v3120
        %3261 = vmatprep.subr.bf16.mxu0 %v3119
        %3262 = vmatpush1.bf16.msra.mxu0 %v3118
        %3263 = vmatprep.subr.bf16.mxu0 %v3117
        %3264 = vmatpush1.bf16.msra.mxu0 %v3116
        %3265 = vmatprep.subr.bf16.mxu0 %v3115
        %3266 = vmatpush1.bf16.msra.mxu0 %v3114
        %3267 = vmatprep.subr.bf16.mxu0 %v3145
        %3268 = vmatpush2.bf16.msra.mxu0 %v3144
        %3269 = vmatprep.subr.bf16.mxu0 %v3143
        %3270 = vmatpush2.bf16.msra.mxu0 %v3142
        %3271 = vmatprep.subr.bf16.mxu0 %v3141
        %3272 = vmatpush2.bf16.msra.mxu0 %v3140
        %3273 = vmatprep.subr.bf16.mxu0 %v3139
        %3274 = vmatpush2.bf16.msra.mxu0 %v3138
        %3275 = vmatprep.subr.bf16.mxu0 %v3137
        %3276 = vmatpush2.bf16.msra.mxu0 %v3136
        %3277 = vmatprep.subr.bf16.mxu0 %v3135
        %3278 = vmatpush2.bf16.msra.mxu0 %v3134
        %3279 = vmatprep.subr.bf16.mxu0 %v3133
        %3280 = vmatpush2.bf16.msra.mxu0 %v3132
        %3281 = vmatprep.subr.bf16.mxu0 %v3131
        %3282 = vmatpush2.bf16.msra.mxu0 %v3130
        %3283 = vmatprep.mubr.bf16.mxu0 %v2889
        %3284 = vmatmul.mubr.bf16.gmra.mxu0 %v2888
        %v3285 = vpop.f32.mrf.mxu0
        %v3286 = vadd.f32 %v3245, %v3285
        %v3287 = vpop.f32.mrf.mxu0
        %v3288 = vadd.f32 %v3247, %v3287
        %v3289 = vpop.f32.mrf.mxu0
        %v3290 = vpop.f32.mrf.mxu0
        %3291 = vdwg.mxu0
        %v3292 = vadd.f32 %v2643, %v3286
        %v3293 = vadd.f32 %v2645, %v3288
        %v3294 = vld [vmem:[%s4] sm:$0x3]
        %v3296 = vlaneseq
        %v3297 = vshrl.u32 %v3296, 7
        %v3298 = vsub.s32 0, %v3297
        %v3299 = vrot.slane %v3294, %v3298
        %v3300 = vlaneseq
        %v3301 = vshrl.u32 %v3300, 7
        %v3302 = vsub.s32 1, %v3301
        %v3303 = vrot.slane %v3294, %v3302
        %v3306 = vadd.f32 %v3292, %v3299
        %v3307 = vadd.f32 %v3293, %v3303
        %v3308 = vmax.f32 %v3306, 0.0
        %v3309 = vmax.f32 %v3307, 0.0
        %v3310 = vld [vmem:[%s5] sm:$0xff]
        %v3311 = vld [vmem:[%s5 + $0x8] sm:$0xff]
        %v3312 = vld [vmem:[%s5 + $0x10] sm:$0xff]
        %v3313 = vld [vmem:[%s5 + $0x18] sm:$0xff]
        %v3314 = vld [vmem:[%s5 + $0x20] sm:$0xff]
        %v3315 = vld [vmem:[%s5 + $0x28] sm:$0xff]
        %v3316 = vld [vmem:[%s5 + $0x30] sm:$0xff]
        %v3317 = vld [vmem:[%s5 + $0x38] sm:$0xff]
        %v3318 = vld [vmem:[%s5 + $0x40] sm:$0xff]
        %v3319 = vld [vmem:[%s5 + $0x48] sm:$0xff]
        %v3320 = vld [vmem:[%s5 + $0x50] sm:$0xff]
        %v3321 = vld [vmem:[%s5 + $0x58] sm:$0xff]
        %v3322 = vld [vmem:[%s5 + $0x60] sm:$0xff]
        %v3323 = vld [vmem:[%s5 + $0x68] sm:$0xff]
        %v3324 = vld [vmem:[%s5 + $0x70] sm:$0xff]
        %v3325 = vld [vmem:[%s5 + $0x78] sm:$0xff]
        %v3326 = vld [vmem:[%s5 + $0x80] sm:$0xff]
        %v3327 = vld [vmem:[%s5 + $0x88] sm:$0xff]
        %v3328 = vld [vmem:[%s5 + $0x90] sm:$0xff]
        %v3329 = vld [vmem:[%s5 + $0x98] sm:$0xff]
        %v3330 = vld [vmem:[%s5 + $0xa0] sm:$0xff]
        %v3331 = vld [vmem:[%s5 + $0xa8] sm:$0xff]
        %v3332 = vld [vmem:[%s5 + $0xb0] sm:$0xff]
        %v3333 = vld [vmem:[%s5 + $0xb8] sm:$0xff]
        %v3334 = vld [vmem:[%s5 + $0xc0] sm:$0xff]
        %v3335 = vld [vmem:[%s5 + $0xc8] sm:$0xff]
        %v3336 = vld [vmem:[%s5 + $0xd0] sm:$0xff]
        %v3337 = vld [vmem:[%s5 + $0xd8] sm:$0xff]
        %v3338 = vld [vmem:[%s5 + $0xe0] sm:$0xff]
        %v3339 = vld [vmem:[%s5 + $0xe8] sm:$0xff]
        %v3340 = vld [vmem:[%s5 + $0xf0] sm:$0xff]
        %v3341 = vld [vmem:[%s5 + $0xf8] sm:$0xff]
        %v3342 = vpack.c.bf16 %v3308, %v3308
        %v3343 = vpack.c.bf16 %v3309, %v3309
        %v3376 = vunpack.c.l.b16 %v868
        %v3377 = vunpack.c.h.b16 %v868
        %v3378 = vunpack.c.l.b16 %v869
        %v3379 = vunpack.c.h.b16 %v869
        %v3380 = vunpack.c.l.b16 %v870
        %v3381 = vunpack.c.h.b16 %v870
        %v3382 = vunpack.c.l.b16 %v871
        %v3383 = vunpack.c.h.b16 %v871
        %v3384 = vunpack.c.l.b16 %v872
        %v3385 = vunpack.c.h.b16 %v872
        %v3386 = vunpack.c.l.b16 %v873
        %v3387 = vunpack.c.h.b16 %v873
        %v3388 = vunpack.c.l.b16 %v874
        %v3389 = vunpack.c.h.b16 %v874
        %v3390 = vunpack.c.l.b16 %v875
        %v3391 = vunpack.c.h.b16 %v875
        %v3392 = vunpack.c.l.b16 %v876
        %v3393 = vunpack.c.h.b16 %v876
        %v3394 = vunpack.c.l.b16 %v877
        %v3395 = vunpack.c.h.b16 %v877
        %v3396 = vunpack.c.l.b16 %v878
        %v3397 = vunpack.c.h.b16 %v878
        %v3398 = vunpack.c.l.b16 %v879
        %v3399 = vunpack.c.h.b16 %v879
        %v3400 = vunpack.c.l.b16 %v880
        %v3401 = vunpack.c.h.b16 %v880
        %v3402 = vunpack.c.l.b16 %v881
        %v3403 = vunpack.c.h.b16 %v881
        %v3404 = vunpack.c.l.b16 %v882
        %v3405 = vunpack.c.h.b16 %v882
        %v3406 = vunpack.c.l.b16 %v883
        %v3407 = vunpack.c.h.b16 %v883
        %v3408 = vunpack.c.l.b16 %v884
        %v3409 = vunpack.c.h.b16 %v884
        %v3410 = vunpack.c.l.b16 %v885
        %v3411 = vunpack.c.h.b16 %v885
        %v3412 = vunpack.c.l.b16 %v886
        %v3413 = vunpack.c.h.b16 %v886
        %v3414 = vunpack.c.l.b16 %v887
        %v3415 = vunpack.c.h.b16 %v887
        %v3416 = vunpack.c.l.b16 %v888
        %v3417 = vunpack.c.h.b16 %v888
        %v3418 = vunpack.c.l.b16 %v889
        %v3419 = vunpack.c.h.b16 %v889
        %v3420 = vunpack.c.l.b16 %v890
        %v3421 = vunpack.c.h.b16 %v890
        %v3422 = vunpack.c.l.b16 %v891
        %v3423 = vunpack.c.h.b16 %v891
        %v3424 = vunpack.c.l.b16 %v892
        %v3425 = vunpack.c.h.b16 %v892
        %v3426 = vunpack.c.l.b16 %v893
        %v3427 = vunpack.c.h.b16 %v893
        %v3428 = vunpack.c.l.b16 %v894
        %v3429 = vunpack.c.h.b16 %v894
        %v3430 = vunpack.c.l.b16 %v895
        %v3431 = vunpack.c.h.b16 %v895
        %v3432 = vunpack.c.l.b16 %v896
        %v3433 = vunpack.c.h.b16 %v896
        %v3434 = vunpack.c.l.b16 %v897
        %v3435 = vunpack.c.h.b16 %v897
        %v3436 = vunpack.c.l.b16 %v898
        %v3437 = vunpack.c.h.b16 %v898
        %v3438 = vunpack.c.l.b16 %v899
        %v3439 = vunpack.c.h.b16 %v899
        %v3440 = vpack.c.b16 %v3378, %v3376
        %v3441 = vpack.c.b16 %v3379, %v3377
        %v3442 = vpack.c.b16 %v3382, %v3380
        %v3443 = vpack.c.b16 %v3383, %v3381
        %v3444 = vpack.c.b16 %v3386, %v3384
        %v3445 = vpack.c.b16 %v3387, %v3385
        %v3446 = vpack.c.b16 %v3390, %v3388
        %v3447 = vpack.c.b16 %v3391, %v3389
        %v3448 = vpack.c.b16 %v3394, %v3392
        %v3449 = vpack.c.b16 %v3395, %v3393
        %v3450 = vpack.c.b16 %v3398, %v3396
        %v3451 = vpack.c.b16 %v3399, %v3397
        %v3452 = vpack.c.b16 %v3402, %v3400
        %v3453 = vpack.c.b16 %v3403, %v3401
        %v3454 = vpack.c.b16 %v3406, %v3404
        %v3455 = vpack.c.b16 %v3407, %v3405
        %v3456 = vpack.c.b16 %v3410, %v3408
        %v3457 = vpack.c.b16 %v3411, %v3409
        %v3458 = vpack.c.b16 %v3414, %v3412
        %v3459 = vpack.c.b16 %v3415, %v3413
        %v3460 = vpack.c.b16 %v3418, %v3416
        %v3461 = vpack.c.b16 %v3419, %v3417
        %v3462 = vpack.c.b16 %v3422, %v3420
        %v3463 = vpack.c.b16 %v3423, %v3421
        %v3464 = vpack.c.b16 %v3426, %v3424
        %v3465 = vpack.c.b16 %v3427, %v3425
        %v3466 = vpack.c.b16 %v3430, %v3428
        %v3467 = vpack.c.b16 %v3431, %v3429
        %v3468 = vpack.c.b16 %v3434, %v3432
        %v3469 = vpack.c.b16 %v3435, %v3433
        %v3470 = vpack.c.b16 %v3438, %v3436
        %v3471 = vpack.c.b16 %v3439, %v3437
        %3504 = vmatprep.subr.bf16.mxu0 %v3455
        %3505 = vmatpush1.bf16.msra.mxu0 %v3454
        %3506 = vmatprep.subr.bf16.mxu0 %v3453
        %3507 = vmatpush1.bf16.msra.mxu0 %v3452
        %3508 = vmatprep.subr.bf16.mxu0 %v3451
        %3509 = vmatpush1.bf16.msra.mxu0 %v3450
        %3510 = vmatprep.subr.bf16.mxu0 %v3449
        %3511 = vmatpush1.bf16.msra.mxu0 %v3448
        %3512 = vmatprep.subr.bf16.mxu0 %v3447
        %3513 = vmatpush1.bf16.msra.mxu0 %v3446
        %3514 = vmatprep.subr.bf16.mxu0 %v3445
        %3515 = vmatpush1.bf16.msra.mxu0 %v3444
        %3516 = vmatprep.subr.bf16.mxu0 %v3443
        %3517 = vmatpush1.bf16.msra.mxu0 %v3442
        %3518 = vmatprep.subr.bf16.mxu0 %v3441
        %3519 = vmatpush1.bf16.msra.mxu0 %v3440
        %3520 = vmatprep.subr.bf16.mxu0 %v3471
        %3521 = vmatpush2.bf16.msra.mxu0 %v3470
        %3522 = vmatprep.subr.bf16.mxu0 %v3469
        %3523 = vmatpush2.bf16.msra.mxu0 %v3468
        %3524 = vmatprep.subr.bf16.mxu0 %v3467
        %3525 = vmatpush2.bf16.msra.mxu0 %v3466
        %3526 = vmatprep.subr.bf16.mxu0 %v3465
        %3527 = vmatpush2.bf16.msra.mxu0 %v3464
        %3528 = vmatprep.subr.bf16.mxu0 %v3463
        %3529 = vmatpush2.bf16.msra.mxu0 %v3462
        %3530 = vmatprep.subr.bf16.mxu0 %v3461
        %3531 = vmatpush2.bf16.msra.mxu0 %v3460
        %3532 = vmatprep.subr.bf16.mxu0 %v3459
        %3533 = vmatpush2.bf16.msra.mxu0 %v3458
        %3534 = vmatprep.subr.bf16.mxu0 %v3457
        %3535 = vmatpush2.bf16.msra.mxu0 %v3456
        %3536 = vmatprep.mubr.bf16.mxu0 %v3343
        %3537 = vmatmul.mubr.bf16.gmra.mxu0 %v3342
        %v3538 = vpop.f32.mrf.mxu0
        %v3539 = vadd.f32 0.0, %v3538
        %v3540 = vpop.f32.mrf.mxu0
        %v3541 = vadd.f32 0.0, %v3540
        %v3542 = vpop.f32.mrf.mxu0
        %v3543 = vpop.f32.mrf.mxu0
        %3544 = vdwg.mxu0
        %s3545 = scalar_lea.vmem %s5, 256
        %v3546 = vld [vmem:[%s3545] sm:$0xff]
        %v3547 = vld [vmem:[%s3545 + $0x8] sm:$0xff]
        %v3548 = vld [vmem:[%s3545 + $0x10] sm:$0xff]
        %v3549 = vld [vmem:[%s3545 + $0x18] sm:$0xff]
        %v3550 = vld [vmem:[%s3545 + $0x20] sm:$0xff]
        %v3551 = vld [vmem:[%s3545 + $0x28] sm:$0xff]
        %v3552 = vld [vmem:[%s3545 + $0x30] sm:$0xff]
        %v3553 = vld [vmem:[%s3545 + $0x38] sm:$0xff]
        %v3554 = vld [vmem:[%s3545 + $0x40] sm:$0xff]
        %v3555 = vld [vmem:[%s3545 + $0x48] sm:$0xff]
        %v3556 = vld [vmem:[%s3545 + $0x50] sm:$0xff]
        %v3557 = vld [vmem:[%s3545 + $0x58] sm:$0xff]
        %v3558 = vld [vmem:[%s3545 + $0x60] sm:$0xff]
        %v3559 = vld [vmem:[%s3545 + $0x68] sm:$0xff]
        %v3560 = vld [vmem:[%s3545 + $0x70] sm:$0xff]
        %v3561 = vld [vmem:[%s3545 + $0x78] sm:$0xff]
        %v3562 = vld [vmem:[%s3545 + $0x80] sm:$0xff]
        %v3563 = vld [vmem:[%s3545 + $0x88] sm:$0xff]
        %v3564 = vld [vmem:[%s3545 + $0x90] sm:$0xff]
        %v3565 = vld [vmem:[%s3545 + $0x98] sm:$0xff]
        %v3566 = vld [vmem:[%s3545 + $0xa0] sm:$0xff]
        %v3567 = vld [vmem:[%s3545 + $0xa8] sm:$0xff]
        %v3568 = vld [vmem:[%s3545 + $0xb0] sm:$0xff]
        %v3569 = vld [vmem:[%s3545 + $0xb8] sm:$0xff]
        %v3570 = vld [vmem:[%s3545 + $0xc0] sm:$0xff]
        %v3571 = vld [vmem:[%s3545 + $0xc8] sm:$0xff]
        %v3572 = vld [vmem:[%s3545 + $0xd0] sm:$0xff]
        %v3573 = vld [vmem:[%s3545 + $0xd8] sm:$0xff]
        %v3574 = vld [vmem:[%s3545 + $0xe0] sm:$0xff]
        %v3575 = vld [vmem:[%s3545 + $0xe8] sm:$0xff]
        %v3576 = vld [vmem:[%s3545 + $0xf0] sm:$0xff]
        %v3577 = vld [vmem:[%s3545 + $0xf8] sm:$0xff]
        %v3578 = vpack.c.bf16 %v3539, %v3539
        %v3579 = vpack.c.bf16 %v3541, %v3541
        %v3612 = vunpack.c.l.b16 %v3546
        %v3613 = vunpack.c.h.b16 %v3546
        %v3614 = vunpack.c.l.b16 %v3547
        %v3615 = vunpack.c.h.b16 %v3547
        %v3616 = vunpack.c.l.b16 %v3548
        %v3617 = vunpack.c.h.b16 %v3548
        %v3618 = vunpack.c.l.b16 %v3549
        %v3619 = vunpack.c.h.b16 %v3549
        %v3620 = vunpack.c.l.b16 %v3550
        %v3621 = vunpack.c.h.b16 %v3550
        %v3622 = vunpack.c.l.b16 %v3551
        %v3623 = vunpack.c.h.b16 %v3551
        %v3624 = vunpack.c.l.b16 %v3552
        %v3625 = vunpack.c.h.b16 %v3552
        %v3626 = vunpack.c.l.b16 %v3553
        %v3627 = vunpack.c.h.b16 %v3553
        %v3628 = vunpack.c.l.b16 %v3554
        %v3629 = vunpack.c.h.b16 %v3554
        %v3630 = vunpack.c.l.b16 %v3555
        %v3631 = vunpack.c.h.b16 %v3555
        %v3632 = vunpack.c.l.b16 %v3556
        %v3633 = vunpack.c.h.b16 %v3556
        %v3634 = vunpack.c.l.b16 %v3557
        %v3635 = vunpack.c.h.b16 %v3557
        %v3636 = vunpack.c.l.b16 %v3558
        %v3637 = vunpack.c.h.b16 %v3558
        %v3638 = vunpack.c.l.b16 %v3559
        %v3639 = vunpack.c.h.b16 %v3559
        %v3640 = vunpack.c.l.b16 %v3560
        %v3641 = vunpack.c.h.b16 %v3560
        %v3642 = vunpack.c.l.b16 %v3561
        %v3643 = vunpack.c.h.b16 %v3561
        %v3644 = vunpack.c.l.b16 %v3562
        %v3645 = vunpack.c.h.b16 %v3562
        %v3646 = vunpack.c.l.b16 %v3563
        %v3647 = vunpack.c.h.b16 %v3563
        %v3648 = vunpack.c.l.b16 %v3564
        %v3649 = vunpack.c.h.b16 %v3564
        %v3650 = vunpack.c.l.b16 %v3565
        %v3651 = vunpack.c.h.b16 %v3565
        %v3652 = vunpack.c.l.b16 %v3566
        %v3653 = vunpack.c.h.b16 %v3566
        %v3654 = vunpack.c.l.b16 %v3567
        %v3655 = vunpack.c.h.b16 %v3567
        %v3656 = vunpack.c.l.b16 %v3568
        %v3657 = vunpack.c.h.b16 %v3568
        %v3658 = vunpack.c.l.b16 %v3569
        %v3659 = vunpack.c.h.b16 %v3569
        %v3660 = vunpack.c.l.b16 %v3570
        %v3661 = vunpack.c.h.b16 %v3570
        %v3662 = vunpack.c.l.b16 %v3571
        %v3663 = vunpack.c.h.b16 %v3571
        %v3664 = vunpack.c.l.b16 %v3572
        %v3665 = vunpack.c.h.b16 %v3572
        %v3666 = vunpack.c.l.b16 %v3573
        %v3667 = vunpack.c.h.b16 %v3573
        %v3668 = vunpack.c.l.b16 %v3574
        %v3669 = vunpack.c.h.b16 %v3574
        %v3670 = vunpack.c.l.b16 %v3575
        %v3671 = vunpack.c.h.b16 %v3575
        %v3672 = vunpack.c.l.b16 %v3576
        %v3673 = vunpack.c.h.b16 %v3576
        %v3674 = vunpack.c.l.b16 %v3577
        %v3675 = vunpack.c.h.b16 %v3577
        %v3676 = vpack.c.b16 %v3614, %v3612
        %v3677 = vpack.c.b16 %v3615, %v3613
        %v3678 = vpack.c.b16 %v3618, %v3616
        %v3679 = vpack.c.b16 %v3619, %v3617
        %v3680 = vpack.c.b16 %v3622, %v3620
        %v3681 = vpack.c.b16 %v3623, %v3621
        %v3682 = vpack.c.b16 %v3626, %v3624
        %v3683 = vpack.c.b16 %v3627, %v3625
        %v3684 = vpack.c.b16 %v3630, %v3628
        %v3685 = vpack.c.b16 %v3631, %v3629
        %v3686 = vpack.c.b16 %v3634, %v3632
        %v3687 = vpack.c.b16 %v3635, %v3633
        %v3688 = vpack.c.b16 %v3638, %v3636
        %v3689 = vpack.c.b16 %v3639, %v3637
        %v3690 = vpack.c.b16 %v3642, %v3640
        %v3691 = vpack.c.b16 %v3643, %v3641
        %v3692 = vpack.c.b16 %v3646, %v3644
        %v3693 = vpack.c.b16 %v3647, %v3645
        %v3694 = vpack.c.b16 %v3650, %v3648
        %v3695 = vpack.c.b16 %v3651, %v3649
        %v3696 = vpack.c.b16 %v3654, %v3652
        %v3697 = vpack.c.b16 %v3655, %v3653
        %v3698 = vpack.c.b16 %v3658, %v3656
        %v3699 = vpack.c.b16 %v3659, %v3657
        %v3700 = vpack.c.b16 %v3662, %v3660
        %v3701 = vpack.c.b16 %v3663, %v3661
        %v3702 = vpack.c.b16 %v3666, %v3664
        %v3703 = vpack.c.b16 %v3667, %v3665
        %v3704 = vpack.c.b16 %v3670, %v3668
        %v3705 = vpack.c.b16 %v3671, %v3669
        %v3706 = vpack.c.b16 %v3674, %v3672
        %v3707 = vpack.c.b16 %v3675, %v3673
        %3740 = vmatprep.subr.bf16.mxu0 %v3691
        %3741 = vmatpush1.bf16.msra.mxu0 %v3690
        %3742 = vmatprep.subr.bf16.mxu0 %v3689
        %3743 = vmatpush1.bf16.msra.mxu0 %v3688
        %3744 = vmatprep.subr.bf16.mxu0 %v3687
        %3745 = vmatpush1.bf16.msra.mxu0 %v3686
        %3746 = vmatprep.subr.bf16.mxu0 %v3685
        %3747 = vmatpush1.bf16.msra.mxu0 %v3684
        %3748 = vmatprep.subr.bf16.mxu0 %v3683
        %3749 = vmatpush1.bf16.msra.mxu0 %v3682
        %3750 = vmatprep.subr.bf16.mxu0 %v3681
        %3751 = vmatpush1.bf16.msra.mxu0 %v3680
        %3752 = vmatprep.subr.bf16.mxu0 %v3679
        %3753 = vmatpush1.bf16.msra.mxu0 %v3678
        %3754 = vmatprep.subr.bf16.mxu0 %v3677
        %3755 = vmatpush1.bf16.msra.mxu0 %v3676
        %3756 = vmatprep.subr.bf16.mxu0 %v3707
        %3757 = vmatpush2.bf16.msra.mxu0 %v3706
        %3758 = vmatprep.subr.bf16.mxu0 %v3705
        %3759 = vmatpush2.bf16.msra.mxu0 %v3704
        %3760 = vmatprep.subr.bf16.mxu0 %v3703
        %3761 = vmatpush2.bf16.msra.mxu0 %v3702
        %3762 = vmatprep.subr.bf16.mxu0 %v3701
        %3763 = vmatpush2.bf16.msra.mxu0 %v3700
        %3764 = vmatprep.subr.bf16.mxu0 %v3699
        %3765 = vmatpush2.bf16.msra.mxu0 %v3698
        %3766 = vmatprep.subr.bf16.mxu0 %v3697
        %3767 = vmatpush2.bf16.msra.mxu0 %v3696
        %3768 = vmatprep.subr.bf16.mxu0 %v3695
        %3769 = vmatpush2.bf16.msra.mxu0 %v3694
        %3770 = vmatprep.subr.bf16.mxu0 %v3693
        %3771 = vmatpush2.bf16.msra.mxu0 %v3692
        %3772 = vmatprep.mubr.bf16.mxu0 %v3579
        %3773 = vmatmul.mubr.bf16.gmra.mxu0 %v3578
        %v3774 = vpop.f32.mrf.mxu0
        %v3775 = vadd.f32 0.0, %v3774
        %v3776 = vpop.f32.mrf.mxu0
        %v3777 = vadd.f32 0.0, %v3776
        %v3778 = vpop.f32.mrf.mxu0
        %v3779 = vpop.f32.mrf.mxu0
        %3780 = vdwg.mxu0
        %v3813 = vunpack.c.l.b16 %v3310
        %v3814 = vunpack.c.h.b16 %v3310
        %v3815 = vunpack.c.l.b16 %v3311
        %v3816 = vunpack.c.h.b16 %v3311
        %v3817 = vunpack.c.l.b16 %v3312
        %v3818 = vunpack.c.h.b16 %v3312
        %v3819 = vunpack.c.l.b16 %v3313
        %v3820 = vunpack.c.h.b16 %v3313
        %v3821 = vunpack.c.l.b16 %v3314
        %v3822 = vunpack.c.h.b16 %v3314
        %v3823 = vunpack.c.l.b16 %v3315
        %v3824 = vunpack.c.h.b16 %v3315
        %v3825 = vunpack.c.l.b16 %v3316
        %v3826 = vunpack.c.h.b16 %v3316
        %v3827 = vunpack.c.l.b16 %v3317
        %v3828 = vunpack.c.h.b16 %v3317
        %v3829 = vunpack.c.l.b16 %v3318
        %v3830 = vunpack.c.h.b16 %v3318
        %v3831 = vunpack.c.l.b16 %v3319
        %v3832 = vunpack.c.h.b16 %v3319
        %v3833 = vunpack.c.l.b16 %v3320
        %v3834 = vunpack.c.h.b16 %v3320
        %v3835 = vunpack.c.l.b16 %v3321
        %v3836 = vunpack.c.h.b16 %v3321
        %v3837 = vunpack.c.l.b16 %v3322
        %v3838 = vunpack.c.h.b16 %v3322
        %v3839 = vunpack.c.l.b16 %v3323
        %v3840 = vunpack.c.h.b16 %v3323
        %v3841 = vunpack.c.l.b16 %v3324
        %v3842 = vunpack.c.h.b16 %v3324
        %v3843 = vunpack.c.l.b16 %v3325
        %v3844 = vunpack.c.h.b16 %v3325
        %v3845 = vunpack.c.l.b16 %v3326
        %v3846 = vunpack.c.h.b16 %v3326
        %v3847 = vunpack.c.l.b16 %v3327
        %v3848 = vunpack.c.h.b16 %v3327
        %v3849 = vunpack.c.l.b16 %v3328
        %v3850 = vunpack.c.h.b16 %v3328
        %v3851 = vunpack.c.l.b16 %v3329
        %v3852 = vunpack.c.h.b16 %v3329
        %v3853 = vunpack.c.l.b16 %v3330
        %v3854 = vunpack.c.h.b16 %v3330
        %v3855 = vunpack.c.l.b16 %v3331
        %v3856 = vunpack.c.h.b16 %v3331
        %v3857 = vunpack.c.l.b16 %v3332
        %v3858 = vunpack.c.h.b16 %v3332
        %v3859 = vunpack.c.l.b16 %v3333
        %v3860 = vunpack.c.h.b16 %v3333
        %v3861 = vunpack.c.l.b16 %v3334
        %v3862 = vunpack.c.h.b16 %v3334
        %v3863 = vunpack.c.l.b16 %v3335
        %v3864 = vunpack.c.h.b16 %v3335
        %v3865 = vunpack.c.l.b16 %v3336
        %v3866 = vunpack.c.h.b16 %v3336
        %v3867 = vunpack.c.l.b16 %v3337
        %v3868 = vunpack.c.h.b16 %v3337
        %v3869 = vunpack.c.l.b16 %v3338
        %v3870 = vunpack.c.h.b16 %v3338
        %v3871 = vunpack.c.l.b16 %v3339
        %v3872 = vunpack.c.h.b16 %v3339
        %v3873 = vunpack.c.l.b16 %v3340
        %v3874 = vunpack.c.h.b16 %v3340
        %v3875 = vunpack.c.l.b16 %v3341
        %v3876 = vunpack.c.h.b16 %v3341
        %v3877 = vpack.c.b16 %v3815, %v3813
        %v3878 = vpack.c.b16 %v3816, %v3814
        %v3879 = vpack.c.b16 %v3819, %v3817
        %v3880 = vpack.c.b16 %v3820, %v3818
        %v3881 = vpack.c.b16 %v3823, %v3821
        %v3882 = vpack.c.b16 %v3824, %v3822
        %v3883 = vpack.c.b16 %v3827, %v3825
        %v3884 = vpack.c.b16 %v3828, %v3826
        %v3885 = vpack.c.b16 %v3831, %v3829
        %v3886 = vpack.c.b16 %v3832, %v3830
        %v3887 = vpack.c.b16 %v3835, %v3833
        %v3888 = vpack.c.b16 %v3836, %v3834
        %v3889 = vpack.c.b16 %v3839, %v3837
        %v3890 = vpack.c.b16 %v3840, %v3838
        %v3891 = vpack.c.b16 %v3843, %v3841
        %v3892 = vpack.c.b16 %v3844, %v3842
        %v3893 = vpack.c.b16 %v3847, %v3845
        %v3894 = vpack.c.b16 %v3848, %v3846
        %v3895 = vpack.c.b16 %v3851, %v3849
        %v3896 = vpack.c.b16 %v3852, %v3850
        %v3897 = vpack.c.b16 %v3855, %v3853
        %v3898 = vpack.c.b16 %v3856, %v3854
        %v3899 = vpack.c.b16 %v3859, %v3857
        %v3900 = vpack.c.b16 %v3860, %v3858
        %v3901 = vpack.c.b16 %v3863, %v3861
        %v3902 = vpack.c.b16 %v3864, %v3862
        %v3903 = vpack.c.b16 %v3867, %v3865
        %v3904 = vpack.c.b16 %v3868, %v3866
        %v3905 = vpack.c.b16 %v3871, %v3869
        %v3906 = vpack.c.b16 %v3872, %v3870
        %v3907 = vpack.c.b16 %v3875, %v3873
        %v3908 = vpack.c.b16 %v3876, %v3874
        %3941 = vmatprep.subr.bf16.mxu0 %v3892
        %3942 = vmatpush1.bf16.msra.mxu0 %v3891
        %3943 = vmatprep.subr.bf16.mxu0 %v3890
        %3944 = vmatpush1.bf16.msra.mxu0 %v3889
        %3945 = vmatprep.subr.bf16.mxu0 %v3888
        %3946 = vmatpush1.bf16.msra.mxu0 %v3887
        %3947 = vmatprep.subr.bf16.mxu0 %v3886
        %3948 = vmatpush1.bf16.msra.mxu0 %v3885
        %3949 = vmatprep.subr.bf16.mxu0 %v3884
        %3950 = vmatpush1.bf16.msra.mxu0 %v3883
        %3951 = vmatprep.subr.bf16.mxu0 %v3882
        %3952 = vmatpush1.bf16.msra.mxu0 %v3881
        %3953 = vmatprep.subr.bf16.mxu0 %v3880
        %3954 = vmatpush1.bf16.msra.mxu0 %v3879
        %3955 = vmatprep.subr.bf16.mxu0 %v3878
        %3956 = vmatpush1.bf16.msra.mxu0 %v3877
        %3957 = vmatprep.subr.bf16.mxu0 %v3908
        %3958 = vmatpush2.bf16.msra.mxu0 %v3907
        %3959 = vmatprep.subr.bf16.mxu0 %v3906
        %3960 = vmatpush2.bf16.msra.mxu0 %v3905
        %3961 = vmatprep.subr.bf16.mxu0 %v3904
        %3962 = vmatpush2.bf16.msra.mxu0 %v3903
        %3963 = vmatprep.subr.bf16.mxu0 %v3902
        %3964 = vmatpush2.bf16.msra.mxu0 %v3901
        %3965 = vmatprep.subr.bf16.mxu0 %v3900
        %3966 = vmatpush2.bf16.msra.mxu0 %v3899
        %3967 = vmatprep.subr.bf16.mxu0 %v3898
        %3968 = vmatpush2.bf16.msra.mxu0 %v3897
        %3969 = vmatprep.subr.bf16.mxu0 %v3896
        %3970 = vmatpush2.bf16.msra.mxu0 %v3895
        %3971 = vmatprep.subr.bf16.mxu0 %v3894
        %3972 = vmatpush2.bf16.msra.mxu0 %v3893
        %3973 = vmatprep.mubr.bf16.mxu0 %v3343
        %3974 = vmatmul.mubr.bf16.gmra.mxu0 %v3342
        %v3975 = vpop.f32.mrf.mxu0
        %v3976 = vadd.f32 %v3775, %v3975
        %v3977 = vpop.f32.mrf.mxu0
        %v3978 = vadd.f32 %v3777, %v3977
        %v3979 = vpop.f32.mrf.mxu0
        %v3980 = vpop.f32.mrf.mxu0
        %3981 = vdwg.mxu0
        %3982 = vmatprep.subr.bf16.mxu0 %v3455
        %3983 = vmatpush1.bf16.msra.mxu0 %v3454
        %3984 = vmatprep.subr.bf16.mxu0 %v3453
        %3985 = vmatpush1.bf16.msra.mxu0 %v3452
        %3986 = vmatprep.subr.bf16.mxu0 %v3451
        %3987 = vmatpush1.bf16.msra.mxu0 %v3450
        %3988 = vmatprep.subr.bf16.mxu0 %v3449
        %3989 = vmatpush1.bf16.msra.mxu0 %v3448
        %3990 = vmatprep.subr.bf16.mxu0 %v3447
        %3991 = vmatpush1.bf16.msra.mxu0 %v3446
        %3992 = vmatprep.subr.bf16.mxu0 %v3445
        %3993 = vmatpush1.bf16.msra.mxu0 %v3444
        %3994 = vmatprep.subr.bf16.mxu0 %v3443
        %3995 = vmatpush1.bf16.msra.mxu0 %v3442
        %3996 = vmatprep.subr.bf16.mxu0 %v3441
        %3997 = vmatpush1.bf16.msra.mxu0 %v3440
        %3998 = vmatprep.subr.bf16.mxu0 %v3471
        %3999 = vmatpush2.bf16.msra.mxu0 %v3470
        %4000 = vmatprep.subr.bf16.mxu0 %v3469
        %4001 = vmatpush2.bf16.msra.mxu0 %v3468
        %4002 = vmatprep.subr.bf16.mxu0 %v3467
        %4003 = vmatpush2.bf16.msra.mxu0 %v3466
        %4004 = vmatprep.subr.bf16.mxu0 %v3465
        %4005 = vmatpush2.bf16.msra.mxu0 %v3464
        %4006 = vmatprep.subr.bf16.mxu0 %v3463
        %4007 = vmatpush2.bf16.msra.mxu0 %v3462
        %4008 = vmatprep.subr.bf16.mxu0 %v3461
        %4009 = vmatpush2.bf16.msra.mxu0 %v3460
        %4010 = vmatprep.subr.bf16.mxu0 %v3459
        %4011 = vmatpush2.bf16.msra.mxu0 %v3458
        %4012 = vmatprep.subr.bf16.mxu0 %v3457
        %4013 = vmatpush2.bf16.msra.mxu0 %v3456
        %4014 = vmatprep.mubr.bf16.mxu0 %v3579
        %4015 = vmatmul.mubr.bf16.gmra.mxu0 %v3578
        %v4016 = vpop.f32.mrf.mxu0
        %v4017 = vadd.f32 0.0, %v4016
        %v4018 = vpop.f32.mrf.mxu0
        %v4019 = vadd.f32 0.0, %v4018
        %v4020 = vpop.f32.mrf.mxu0
        %v4021 = vpop.f32.mrf.mxu0
        %4022 = vdwg.mxu0
        %v4023 = vmul.f32 %v4017, 2.0
        %v4024 = vmul.f32 %v4019, 2.0
        %v4025 = vsub.f32 %v4023, %v3308
        %v4026 = vsub.f32 %v4024, %v3309
        %s4027 = scalar_lea.vmem %s5, 512
        %v4028 = vld [vmem:[%s4027] sm:$0xff]
        %v4029 = vld [vmem:[%s4027 + $0x8] sm:$0xff]
        %v4030 = vld [vmem:[%s4027 + $0x10] sm:$0xff]
        %v4031 = vld [vmem:[%s4027 + $0x18] sm:$0xff]
        %v4032 = vld [vmem:[%s4027 + $0x20] sm:$0xff]
        %v4033 = vld [vmem:[%s4027 + $0x28] sm:$0xff]
        %v4034 = vld [vmem:[%s4027 + $0x30] sm:$0xff]
        %v4035 = vld [vmem:[%s4027 + $0x38] sm:$0xff]
        %v4036 = vld [vmem:[%s4027 + $0x40] sm:$0xff]
        %v4037 = vld [vmem:[%s4027 + $0x48] sm:$0xff]
        %v4038 = vld [vmem:[%s4027 + $0x50] sm:$0xff]
        %v4039 = vld [vmem:[%s4027 + $0x58] sm:$0xff]
        %v4040 = vld [vmem:[%s4027 + $0x60] sm:$0xff]
        %v4041 = vld [vmem:[%s4027 + $0x68] sm:$0xff]
        %v4042 = vld [vmem:[%s4027 + $0x70] sm:$0xff]
        %v4043 = vld [vmem:[%s4027 + $0x78] sm:$0xff]
        %v4044 = vld [vmem:[%s4027 + $0x80] sm:$0xff]
        %v4045 = vld [vmem:[%s4027 + $0x88] sm:$0xff]
        %v4046 = vld [vmem:[%s4027 + $0x90] sm:$0xff]
        %v4047 = vld [vmem:[%s4027 + $0x98] sm:$0xff]
        %v4048 = vld [vmem:[%s4027 + $0xa0] sm:$0xff]
        %v4049 = vld [vmem:[%s4027 + $0xa8] sm:$0xff]
        %v4050 = vld [vmem:[%s4027 + $0xb0] sm:$0xff]
        %v4051 = vld [vmem:[%s4027 + $0xb8] sm:$0xff]
        %v4052 = vld [vmem:[%s4027 + $0xc0] sm:$0xff]
        %v4053 = vld [vmem:[%s4027 + $0xc8] sm:$0xff]
        %v4054 = vld [vmem:[%s4027 + $0xd0] sm:$0xff]
        %v4055 = vld [vmem:[%s4027 + $0xd8] sm:$0xff]
        %v4056 = vld [vmem:[%s4027 + $0xe0] sm:$0xff]
        %v4057 = vld [vmem:[%s4027 + $0xe8] sm:$0xff]
        %v4058 = vld [vmem:[%s4027 + $0xf0] sm:$0xff]
        %v4059 = vld [vmem:[%s4027 + $0xf8] sm:$0xff]
        %v4060 = vpack.c.bf16 %v4025, %v4025
        %v4061 = vpack.c.bf16 %v4026, %v4026
        %v4094 = vunpack.c.l.b16 %v4028
        %v4095 = vunpack.c.h.b16 %v4028
        %v4096 = vunpack.c.l.b16 %v4029
        %v4097 = vunpack.c.h.b16 %v4029
        %v4098 = vunpack.c.l.b16 %v4030
        %v4099 = vunpack.c.h.b16 %v4030
        %v4100 = vunpack.c.l.b16 %v4031
        %v4101 = vunpack.c.h.b16 %v4031
        %v4102 = vunpack.c.l.b16 %v4032
        %v4103 = vunpack.c.h.b16 %v4032
        %v4104 = vunpack.c.l.b16 %v4033
        %v4105 = vunpack.c.h.b16 %v4033
        %v4106 = vunpack.c.l.b16 %v4034
        %v4107 = vunpack.c.h.b16 %v4034
        %v4108 = vunpack.c.l.b16 %v4035
        %v4109 = vunpack.c.h.b16 %v4035
        %v4110 = vunpack.c.l.b16 %v4036
        %v4111 = vunpack.c.h.b16 %v4036
        %v4112 = vunpack.c.l.b16 %v4037
        %v4113 = vunpack.c.h.b16 %v4037
        %v4114 = vunpack.c.l.b16 %v4038
        %v4115 = vunpack.c.h.b16 %v4038
        %v4116 = vunpack.c.l.b16 %v4039
        %v4117 = vunpack.c.h.b16 %v4039
        %v4118 = vunpack.c.l.b16 %v4040
        %v4119 = vunpack.c.h.b16 %v4040
        %v4120 = vunpack.c.l.b16 %v4041
        %v4121 = vunpack.c.h.b16 %v4041
        %v4122 = vunpack.c.l.b16 %v4042
        %v4123 = vunpack.c.h.b16 %v4042
        %v4124 = vunpack.c.l.b16 %v4043
        %v4125 = vunpack.c.h.b16 %v4043
        %v4126 = vunpack.c.l.b16 %v4044
        %v4127 = vunpack.c.h.b16 %v4044
        %v4128 = vunpack.c.l.b16 %v4045
        %v4129 = vunpack.c.h.b16 %v4045
        %v4130 = vunpack.c.l.b16 %v4046
        %v4131 = vunpack.c.h.b16 %v4046
        %v4132 = vunpack.c.l.b16 %v4047
        %v4133 = vunpack.c.h.b16 %v4047
        %v4134 = vunpack.c.l.b16 %v4048
        %v4135 = vunpack.c.h.b16 %v4048
        %v4136 = vunpack.c.l.b16 %v4049
        %v4137 = vunpack.c.h.b16 %v4049
        %v4138 = vunpack.c.l.b16 %v4050
        %v4139 = vunpack.c.h.b16 %v4050
        %v4140 = vunpack.c.l.b16 %v4051
        %v4141 = vunpack.c.h.b16 %v4051
        %v4142 = vunpack.c.l.b16 %v4052
        %v4143 = vunpack.c.h.b16 %v4052
        %v4144 = vunpack.c.l.b16 %v4053
        %v4145 = vunpack.c.h.b16 %v4053
        %v4146 = vunpack.c.l.b16 %v4054
        %v4147 = vunpack.c.h.b16 %v4054
        %v4148 = vunpack.c.l.b16 %v4055
        %v4149 = vunpack.c.h.b16 %v4055
        %v4150 = vunpack.c.l.b16 %v4056
        %v4151 = vunpack.c.h.b16 %v4056
        %v4152 = vunpack.c.l.b16 %v4057
        %v4153 = vunpack.c.h.b16 %v4057
        %v4154 = vunpack.c.l.b16 %v4058
        %v4155 = vunpack.c.h.b16 %v4058
        %v4156 = vunpack.c.l.b16 %v4059
        %v4157 = vunpack.c.h.b16 %v4059
        %v4158 = vpack.c.b16 %v4096, %v4094
        %v4159 = vpack.c.b16 %v4097, %v4095
        %v4160 = vpack.c.b16 %v4100, %v4098
        %v4161 = vpack.c.b16 %v4101, %v4099
        %v4162 = vpack.c.b16 %v4104, %v4102
        %v4163 = vpack.c.b16 %v4105, %v4103
        %v4164 = vpack.c.b16 %v4108, %v4106
        %v4165 = vpack.c.b16 %v4109, %v4107
        %v4166 = vpack.c.b16 %v4112, %v4110
        %v4167 = vpack.c.b16 %v4113, %v4111
        %v4168 = vpack.c.b16 %v4116, %v4114
        %v4169 = vpack.c.b16 %v4117, %v4115
        %v4170 = vpack.c.b16 %v4120, %v4118
        %v4171 = vpack.c.b16 %v4121, %v4119
        %v4172 = vpack.c.b16 %v4124, %v4122
        %v4173 = vpack.c.b16 %v4125, %v4123
        %v4174 = vpack.c.b16 %v4128, %v4126
        %v4175 = vpack.c.b16 %v4129, %v4127
        %v4176 = vpack.c.b16 %v4132, %v4130
        %v4177 = vpack.c.b16 %v4133, %v4131
        %v4178 = vpack.c.b16 %v4136, %v4134
        %v4179 = vpack.c.b16 %v4137, %v4135
        %v4180 = vpack.c.b16 %v4140, %v4138
        %v4181 = vpack.c.b16 %v4141, %v4139
        %v4182 = vpack.c.b16 %v4144, %v4142
        %v4183 = vpack.c.b16 %v4145, %v4143
        %v4184 = vpack.c.b16 %v4148, %v4146
        %v4185 = vpack.c.b16 %v4149, %v4147
        %v4186 = vpack.c.b16 %v4152, %v4150
        %v4187 = vpack.c.b16 %v4153, %v4151
        %v4188 = vpack.c.b16 %v4156, %v4154
        %v4189 = vpack.c.b16 %v4157, %v4155
        %4222 = vmatprep.subr.bf16.mxu0 %v4173
        %4223 = vmatpush1.bf16.msra.mxu0 %v4172
        %4224 = vmatprep.subr.bf16.mxu0 %v4171
        %4225 = vmatpush1.bf16.msra.mxu0 %v4170
        %4226 = vmatprep.subr.bf16.mxu0 %v4169
        %4227 = vmatpush1.bf16.msra.mxu0 %v4168
        %4228 = vmatprep.subr.bf16.mxu0 %v4167
        %4229 = vmatpush1.bf16.msra.mxu0 %v4166
        %4230 = vmatprep.subr.bf16.mxu0 %v4165
        %4231 = vmatpush1.bf16.msra.mxu0 %v4164
        %4232 = vmatprep.subr.bf16.mxu0 %v4163
        %4233 = vmatpush1.bf16.msra.mxu0 %v4162
        %4234 = vmatprep.subr.bf16.mxu0 %v4161
        %4235 = vmatpush1.bf16.msra.mxu0 %v4160
        %4236 = vmatprep.subr.bf16.mxu0 %v4159
        %4237 = vmatpush1.bf16.msra.mxu0 %v4158
        %4238 = vmatprep.subr.bf16.mxu0 %v4189
        %4239 = vmatpush2.bf16.msra.mxu0 %v4188
        %4240 = vmatprep.subr.bf16.mxu0 %v4187
        %4241 = vmatpush2.bf16.msra.mxu0 %v4186
        %4242 = vmatprep.subr.bf16.mxu0 %v4185
        %4243 = vmatpush2.bf16.msra.mxu0 %v4184
        %4244 = vmatprep.subr.bf16.mxu0 %v4183
        %4245 = vmatpush2.bf16.msra.mxu0 %v4182
        %4246 = vmatprep.subr.bf16.mxu0 %v4181
        %4247 = vmatpush2.bf16.msra.mxu0 %v4180
        %4248 = vmatprep.subr.bf16.mxu0 %v4179
        %4249 = vmatpush2.bf16.msra.mxu0 %v4178
        %4250 = vmatprep.subr.bf16.mxu0 %v4177
        %4251 = vmatpush2.bf16.msra.mxu0 %v4176
        %4252 = vmatprep.subr.bf16.mxu0 %v4175
        %4253 = vmatpush2.bf16.msra.mxu0 %v4174
        %4254 = vmatprep.mubr.bf16.mxu0 %v4061
        %4255 = vmatmul.mubr.bf16.gmra.mxu0 %v4060
        %v4256 = vpop.f32.mrf.mxu0
        %v4257 = vadd.f32 0.0, %v4256
        %v4258 = vpop.f32.mrf.mxu0
        %v4259 = vadd.f32 0.0, %v4258
        %v4260 = vpop.f32.mrf.mxu0
        %v4261 = vpop.f32.mrf.mxu0
        %4262 = vdwg.mxu0
        %v4263 = vadd.f32 %v3976, %v4257
        %v4264 = vadd.f32 %v3978, %v4259
        %v4265 = vld [vmem:[%s6] sm:$0x3]
        %v4267 = vlaneseq
        %v4268 = vshrl.u32 %v4267, 7
        %v4269 = vsub.s32 0, %v4268
        %v4270 = vrot.slane %v4265, %v4269
        %v4271 = vlaneseq
        %v4272 = vshrl.u32 %v4271, 7
        %v4273 = vsub.s32 1, %v4272
        %v4274 = vrot.slane %v4265, %v4273
        %v4277 = vadd.f32 %v4263, %v4270
        %v4278 = vadd.f32 %v4264, %v4274
        %v4279 = vmax.f32 %v4277, 0.0
        %v4280 = vmax.f32 %v4278, 0.0
        %v4281 = vld [vmem:[#allocation7] sm:$0xff]
        %v4282 = vld [vmem:[#allocation7 + $0x8] sm:$0xff]
        %v4283 = vld [vmem:[#allocation7 + $0x10] sm:$0xff]
        %v4284 = vld [vmem:[#allocation7 + $0x18] sm:$0xff]
        %v4285 = vld [vmem:[#allocation7 + $0x20] sm:$0xff]
        %v4286 = vld [vmem:[#allocation7 + $0x28] sm:$0xff]
        %v4287 = vld [vmem:[#allocation7 + $0x30] sm:$0xff]
        %v4288 = vld [vmem:[#allocation7 + $0x38] sm:$0xff]
        %v4289 = vld [vmem:[#allocation7 + $0x40] sm:$0xff]
        %v4290 = vld [vmem:[#allocation7 + $0x48] sm:$0xff]
        %v4291 = vld [vmem:[#allocation7 + $0x50] sm:$0xff]
        %v4292 = vld [vmem:[#allocation7 + $0x58] sm:$0xff]
        %v4293 = vld [vmem:[#allocation7 + $0x60] sm:$0xff]
        %v4294 = vld [vmem:[#allocation7 + $0x68] sm:$0xff]
        %v4295 = vld [vmem:[#allocation7 + $0x70] sm:$0xff]
        %v4296 = vld [vmem:[#allocation7 + $0x78] sm:$0xff]
        %v4297 = vld [vmem:[#allocation7 + $0x80] sm:$0xff]
        %v4298 = vld [vmem:[#allocation7 + $0x88] sm:$0xff]
        %v4299 = vld [vmem:[#allocation7 + $0x90] sm:$0xff]
        %v4300 = vld [vmem:[#allocation7 + $0x98] sm:$0xff]
        %v4301 = vld [vmem:[#allocation7 + $0xa0] sm:$0xff]
        %v4302 = vld [vmem:[#allocation7 + $0xa8] sm:$0xff]
        %v4303 = vld [vmem:[#allocation7 + $0xb0] sm:$0xff]
        %v4304 = vld [vmem:[#allocation7 + $0xb8] sm:$0xff]
        %v4305 = vld [vmem:[#allocation7 + $0xc0] sm:$0xff]
        %v4306 = vld [vmem:[#allocation7 + $0xc8] sm:$0xff]
        %v4307 = vld [vmem:[#allocation7 + $0xd0] sm:$0xff]
        %v4308 = vld [vmem:[#allocation7 + $0xd8] sm:$0xff]
        %v4309 = vld [vmem:[#allocation7 + $0xe0] sm:$0xff]
        %v4310 = vld [vmem:[#allocation7 + $0xe8] sm:$0xff]
        %v4311 = vld [vmem:[#allocation7 + $0xf0] sm:$0xff]
        %v4312 = vld [vmem:[#allocation7 + $0xf8] sm:$0xff]
        %v4313 = vpack.c.bf16 %v4279, %v4279
        %v4314 = vpack.c.bf16 %v4280, %v4280
        %4315 = vmatprep.subr.bf16.mxu0 %v3455
        %4316 = vmatpush1.bf16.msra.mxu0 %v3454
        %4317 = vmatprep.subr.bf16.mxu0 %v3453
        %4318 = vmatpush1.bf16.msra.mxu0 %v3452
        %4319 = vmatprep.subr.bf16.mxu0 %v3451
        %4320 = vmatpush1.bf16.msra.mxu0 %v3450
        %4321 = vmatprep.subr.bf16.mxu0 %v3449
        %4322 = vmatpush1.bf16.msra.mxu0 %v3448
        %4323 = vmatprep.subr.bf16.mxu0 %v3447
        %4324 = vmatpush1.bf16.msra.mxu0 %v3446
        %4325 = vmatprep.subr.bf16.mxu0 %v3445
        %4326 = vmatpush1.bf16.msra.mxu0 %v3444
        %4327 = vmatprep.subr.bf16.mxu0 %v3443
        %4328 = vmatpush1.bf16.msra.mxu0 %v3442
        %4329 = vmatprep.subr.bf16.mxu0 %v3441
        %4330 = vmatpush1.bf16.msra.mxu0 %v3440
        %4331 = vmatprep.subr.bf16.mxu0 %v3471
        %4332 = vmatpush2.bf16.msra.mxu0 %v3470
        %4333 = vmatprep.subr.bf16.mxu0 %v3469
        %4334 = vmatpush2.bf16.msra.mxu0 %v3468
        %4335 = vmatprep.subr.bf16.mxu0 %v3467
        %4336 = vmatpush2.bf16.msra.mxu0 %v3466
        %4337 = vmatprep.subr.bf16.mxu0 %v3465
        %4338 = vmatpush2.bf16.msra.mxu0 %v3464
        %4339 = vmatprep.subr.bf16.mxu0 %v3463
        %4340 = vmatpush2.bf16.msra.mxu0 %v3462
        %4341 = vmatprep.subr.bf16.mxu0 %v3461
        %4342 = vmatpush2.bf16.msra.mxu0 %v3460
        %4343 = vmatprep.subr.bf16.mxu0 %v3459
        %4344 = vmatpush2.bf16.msra.mxu0 %v3458
        %4345 = vmatprep.subr.bf16.mxu0 %v3457
        %4346 = vmatpush2.bf16.msra.mxu0 %v3456
        %4347 = vmatprep.mubr.bf16.mxu0 %v4314
        %4348 = vmatmul.mubr.bf16.gmra.mxu0 %v4313
        %v4349 = vpop.f32.mrf.mxu0
        %v4350 = vadd.f32 0.0, %v4349
        %v4351 = vpop.f32.mrf.mxu0
        %v4352 = vadd.f32 0.0, %v4351
        %v4353 = vpop.f32.mrf.mxu0
        %v4354 = vpop.f32.mrf.mxu0
        %4355 = vdwg.mxu0
        %s4356 = scalar_lea.vmem [#allocation7], 256
        %v4357 = vld [vmem:[%s4356] sm:$0xff]
        %v4358 = vld [vmem:[%s4356 + $0x8] sm:$0xff]
        %v4359 = vld [vmem:[%s4356 + $0x10] sm:$0xff]
        %v4360 = vld [vmem:[%s4356 + $0x18] sm:$0xff]
        %v4361 = vld [vmem:[%s4356 + $0x20] sm:$0xff]
        %v4362 = vld [vmem:[%s4356 + $0x28] sm:$0xff]
        %v4363 = vld [vmem:[%s4356 + $0x30] sm:$0xff]
        %v4364 = vld [vmem:[%s4356 + $0x38] sm:$0xff]
        %v4365 = vld [vmem:[%s4356 + $0x40] sm:$0xff]
        %v4366 = vld [vmem:[%s4356 + $0x48] sm:$0xff]
        %v4367 = vld [vmem:[%s4356 + $0x50] sm:$0xff]
        %v4368 = vld [vmem:[%s4356 + $0x58] sm:$0xff]
        %v4369 = vld [vmem:[%s4356 + $0x60] sm:$0xff]
        %v4370 = vld [vmem:[%s4356 + $0x68] sm:$0xff]
        %v4371 = vld [vmem:[%s4356 + $0x70] sm:$0xff]
        %v4372 = vld [vmem:[%s4356 + $0x78] sm:$0xff]
        %v4373 = vld [vmem:[%s4356 + $0x80] sm:$0xff]
        %v4374 = vld [vmem:[%s4356 + $0x88] sm:$0xff]
        %v4375 = vld [vmem:[%s4356 + $0x90] sm:$0xff]
        %v4376 = vld [vmem:[%s4356 + $0x98] sm:$0xff]
        %v4377 = vld [vmem:[%s4356 + $0xa0] sm:$0xff]
        %v4378 = vld [vmem:[%s4356 + $0xa8] sm:$0xff]
        %v4379 = vld [vmem:[%s4356 + $0xb0] sm:$0xff]
        %v4380 = vld [vmem:[%s4356 + $0xb8] sm:$0xff]
        %v4381 = vld [vmem:[%s4356 + $0xc0] sm:$0xff]
        %v4382 = vld [vmem:[%s4356 + $0xc8] sm:$0xff]
        %v4383 = vld [vmem:[%s4356 + $0xd0] sm:$0xff]
        %v4384 = vld [vmem:[%s4356 + $0xd8] sm:$0xff]
        %v4385 = vld [vmem:[%s4356 + $0xe0] sm:$0xff]
        %v4386 = vld [vmem:[%s4356 + $0xe8] sm:$0xff]
        %v4387 = vld [vmem:[%s4356 + $0xf0] sm:$0xff]
        %v4388 = vld [vmem:[%s4356 + $0xf8] sm:$0xff]
        %v4389 = vpack.c.bf16 %v4350, %v4350
        %v4390 = vpack.c.bf16 %v4352, %v4352
        %v4423 = vunpack.c.l.b16 %v4357
        %v4424 = vunpack.c.h.b16 %v4357
        %v4425 = vunpack.c.l.b16 %v4358
        %v4426 = vunpack.c.h.b16 %v4358
        %v4427 = vunpack.c.l.b16 %v4359
        %v4428 = vunpack.c.h.b16 %v4359
        %v4429 = vunpack.c.l.b16 %v4360
        %v4430 = vunpack.c.h.b16 %v4360
        %v4431 = vunpack.c.l.b16 %v4361
        %v4432 = vunpack.c.h.b16 %v4361
        %v4433 = vunpack.c.l.b16 %v4362
        %v4434 = vunpack.c.h.b16 %v4362
        %v4435 = vunpack.c.l.b16 %v4363
        %v4436 = vunpack.c.h.b16 %v4363
        %v4437 = vunpack.c.l.b16 %v4364
        %v4438 = vunpack.c.h.b16 %v4364
        %v4439 = vunpack.c.l.b16 %v4365
        %v4440 = vunpack.c.h.b16 %v4365
        %v4441 = vunpack.c.l.b16 %v4366
        %v4442 = vunpack.c.h.b16 %v4366
        %v4443 = vunpack.c.l.b16 %v4367
        %v4444 = vunpack.c.h.b16 %v4367
        %v4445 = vunpack.c.l.b16 %v4368
        %v4446 = vunpack.c.h.b16 %v4368
        %v4447 = vunpack.c.l.b16 %v4369
        %v4448 = vunpack.c.h.b16 %v4369
        %v4449 = vunpack.c.l.b16 %v4370
        %v4450 = vunpack.c.h.b16 %v4370
        %v4451 = vunpack.c.l.b16 %v4371
        %v4452 = vunpack.c.h.b16 %v4371
        %v4453 = vunpack.c.l.b16 %v4372
        %v4454 = vunpack.c.h.b16 %v4372
        %v4455 = vunpack.c.l.b16 %v4373
        %v4456 = vunpack.c.h.b16 %v4373
        %v4457 = vunpack.c.l.b16 %v4374
        %v4458 = vunpack.c.h.b16 %v4374
        %v4459 = vunpack.c.l.b16 %v4375
        %v4460 = vunpack.c.h.b16 %v4375
        %v4461 = vunpack.c.l.b16 %v4376
        %v4462 = vunpack.c.h.b16 %v4376
        %v4463 = vunpack.c.l.b16 %v4377
        %v4464 = vunpack.c.h.b16 %v4377
        %v4465 = vunpack.c.l.b16 %v4378
        %v4466 = vunpack.c.h.b16 %v4378
        %v4467 = vunpack.c.l.b16 %v4379
        %v4468 = vunpack.c.h.b16 %v4379
        %v4469 = vunpack.c.l.b16 %v4380
        %v4470 = vunpack.c.h.b16 %v4380
        %v4471 = vunpack.c.l.b16 %v4381
        %v4472 = vunpack.c.h.b16 %v4381
        %v4473 = vunpack.c.l.b16 %v4382
        %v4474 = vunpack.c.h.b16 %v4382
        %v4475 = vunpack.c.l.b16 %v4383
        %v4476 = vunpack.c.h.b16 %v4383
        %v4477 = vunpack.c.l.b16 %v4384
        %v4478 = vunpack.c.h.b16 %v4384
        %v4479 = vunpack.c.l.b16 %v4385
        %v4480 = vunpack.c.h.b16 %v4385
        %v4481 = vunpack.c.l.b16 %v4386
        %v4482 = vunpack.c.h.b16 %v4386
        %v4483 = vunpack.c.l.b16 %v4387
        %v4484 = vunpack.c.h.b16 %v4387
        %v4485 = vunpack.c.l.b16 %v4388
        %v4486 = vunpack.c.h.b16 %v4388
        %v4487 = vpack.c.b16 %v4425, %v4423
        %v4488 = vpack.c.b16 %v4426, %v4424
        %v4489 = vpack.c.b16 %v4429, %v4427
        %v4490 = vpack.c.b16 %v4430, %v4428
        %v4491 = vpack.c.b16 %v4433, %v4431
        %v4492 = vpack.c.b16 %v4434, %v4432
        %v4493 = vpack.c.b16 %v4437, %v4435
        %v4494 = vpack.c.b16 %v4438, %v4436
        %v4495 = vpack.c.b16 %v4441, %v4439
        %v4496 = vpack.c.b16 %v4442, %v4440
        %v4497 = vpack.c.b16 %v4445, %v4443
        %v4498 = vpack.c.b16 %v4446, %v4444
        %v4499 = vpack.c.b16 %v4449, %v4447
        %v4500 = vpack.c.b16 %v4450, %v4448
        %v4501 = vpack.c.b16 %v4453, %v4451
        %v4502 = vpack.c.b16 %v4454, %v4452
        %v4503 = vpack.c.b16 %v4457, %v4455
        %v4504 = vpack.c.b16 %v4458, %v4456
        %v4505 = vpack.c.b16 %v4461, %v4459
        %v4506 = vpack.c.b16 %v4462, %v4460
        %v4507 = vpack.c.b16 %v4465, %v4463
        %v4508 = vpack.c.b16 %v4466, %v4464
        %v4509 = vpack.c.b16 %v4469, %v4467
        %v4510 = vpack.c.b16 %v4470, %v4468
        %v4511 = vpack.c.b16 %v4473, %v4471
        %v4512 = vpack.c.b16 %v4474, %v4472
        %v4513 = vpack.c.b16 %v4477, %v4475
        %v4514 = vpack.c.b16 %v4478, %v4476
        %v4515 = vpack.c.b16 %v4481, %v4479
        %v4516 = vpack.c.b16 %v4482, %v4480
        %v4517 = vpack.c.b16 %v4485, %v4483
        %v4518 = vpack.c.b16 %v4486, %v4484
        %4551 = vmatprep.subr.bf16.mxu0 %v4502
        %4552 = vmatpush1.bf16.msra.mxu0 %v4501
        %4553 = vmatprep.subr.bf16.mxu0 %v4500
        %4554 = vmatpush1.bf16.msra.mxu0 %v4499
        %4555 = vmatprep.subr.bf16.mxu0 %v4498
        %4556 = vmatpush1.bf16.msra.mxu0 %v4497
        %4557 = vmatprep.subr.bf16.mxu0 %v4496
        %4558 = vmatpush1.bf16.msra.mxu0 %v4495
        %4559 = vmatprep.subr.bf16.mxu0 %v4494
        %4560 = vmatpush1.bf16.msra.mxu0 %v4493
        %4561 = vmatprep.subr.bf16.mxu0 %v4492
        %4562 = vmatpush1.bf16.msra.mxu0 %v4491
        %4563 = vmatprep.subr.bf16.mxu0 %v4490
        %4564 = vmatpush1.bf16.msra.mxu0 %v4489
        %4565 = vmatprep.subr.bf16.mxu0 %v4488
        %4566 = vmatpush1.bf16.msra.mxu0 %v4487
        %4567 = vmatprep.subr.bf16.mxu0 %v4518
        %4568 = vmatpush2.bf16.msra.mxu0 %v4517
        %4569 = vmatprep.subr.bf16.mxu0 %v4516
        %4570 = vmatpush2.bf16.msra.mxu0 %v4515
        %4571 = vmatprep.subr.bf16.mxu0 %v4514
        %4572 = vmatpush2.bf16.msra.mxu0 %v4513
        %4573 = vmatprep.subr.bf16.mxu0 %v4512
        %4574 = vmatpush2.bf16.msra.mxu0 %v4511
        %4575 = vmatprep.subr.bf16.mxu0 %v4510
        %4576 = vmatpush2.bf16.msra.mxu0 %v4509
        %4577 = vmatprep.subr.bf16.mxu0 %v4508
        %4578 = vmatpush2.bf16.msra.mxu0 %v4507
        %4579 = vmatprep.subr.bf16.mxu0 %v4506
        %4580 = vmatpush2.bf16.msra.mxu0 %v4505
        %4581 = vmatprep.subr.bf16.mxu0 %v4504
        %4582 = vmatpush2.bf16.msra.mxu0 %v4503
        %4583 = vmatprep.mubr.bf16.mxu0 %v4390
        %4584 = vmatmul.mubr.bf16.gmra.mxu0 %v4389
        %v4585 = vpop.f32.mrf.mxu0
        %v4586 = vadd.f32 0.0, %v4585
        %v4587 = vpop.f32.mrf.mxu0
        %v4588 = vadd.f32 0.0, %v4587
        %v4589 = vpop.f32.mrf.mxu0
        %v4590 = vpop.f32.mrf.mxu0
        %4591 = vdwg.mxu0
        %v4624 = vunpack.c.l.b16 %v4281
        %v4625 = vunpack.c.h.b16 %v4281
        %v4626 = vunpack.c.l.b16 %v4282
        %v4627 = vunpack.c.h.b16 %v4282
        %v4628 = vunpack.c.l.b16 %v4283
        %v4629 = vunpack.c.h.b16 %v4283
        %v4630 = vunpack.c.l.b16 %v4284
        %v4631 = vunpack.c.h.b16 %v4284
        %v4632 = vunpack.c.l.b16 %v4285
        %v4633 = vunpack.c.h.b16 %v4285
        %v4634 = vunpack.c.l.b16 %v4286
        %v4635 = vunpack.c.h.b16 %v4286
        %v4636 = vunpack.c.l.b16 %v4287
        %v4637 = vunpack.c.h.b16 %v4287
        %v4638 = vunpack.c.l.b16 %v4288
        %v4639 = vunpack.c.h.b16 %v4288
        %v4640 = vunpack.c.l.b16 %v4289
        %v4641 = vunpack.c.h.b16 %v4289
        %v4642 = vunpack.c.l.b16 %v4290
        %v4643 = vunpack.c.h.b16 %v4290
        %v4644 = vunpack.c.l.b16 %v4291
        %v4645 = vunpack.c.h.b16 %v4291
        %v4646 = vunpack.c.l.b16 %v4292
        %v4647 = vunpack.c.h.b16 %v4292
        %v4648 = vunpack.c.l.b16 %v4293
        %v4649 = vunpack.c.h.b16 %v4293
        %v4650 = vunpack.c.l.b16 %v4294
        %v4651 = vunpack.c.h.b16 %v4294
        %v4652 = vunpack.c.l.b16 %v4295
        %v4653 = vunpack.c.h.b16 %v4295
        %v4654 = vunpack.c.l.b16 %v4296
        %v4655 = vunpack.c.h.b16 %v4296
        %v4656 = vunpack.c.l.b16 %v4297
        %v4657 = vunpack.c.h.b16 %v4297
        %v4658 = vunpack.c.l.b16 %v4298
        %v4659 = vunpack.c.h.b16 %v4298
        %v4660 = vunpack.c.l.b16 %v4299
        %v4661 = vunpack.c.h.b16 %v4299
        %v4662 = vunpack.c.l.b16 %v4300
        %v4663 = vunpack.c.h.b16 %v4300
        %v4664 = vunpack.c.l.b16 %v4301
        %v4665 = vunpack.c.h.b16 %v4301
        %v4666 = vunpack.c.l.b16 %v4302
        %v4667 = vunpack.c.h.b16 %v4302
        %v4668 = vunpack.c.l.b16 %v4303
        %v4669 = vunpack.c.h.b16 %v4303
        %v4670 = vunpack.c.l.b16 %v4304
        %v4671 = vunpack.c.h.b16 %v4304
        %v4672 = vunpack.c.l.b16 %v4305
        %v4673 = vunpack.c.h.b16 %v4305
        %v4674 = vunpack.c.l.b16 %v4306
        %v4675 = vunpack.c.h.b16 %v4306
        %v4676 = vunpack.c.l.b16 %v4307
        %v4677 = vunpack.c.h.b16 %v4307
        %v4678 = vunpack.c.l.b16 %v4308
        %v4679 = vunpack.c.h.b16 %v4308
        %v4680 = vunpack.c.l.b16 %v4309
        %v4681 = vunpack.c.h.b16 %v4309
        %v4682 = vunpack.c.l.b16 %v4310
        %v4683 = vunpack.c.h.b16 %v4310
        %v4684 = vunpack.c.l.b16 %v4311
        %v4685 = vunpack.c.h.b16 %v4311
        %v4686 = vunpack.c.l.b16 %v4312
        %v4687 = vunpack.c.h.b16 %v4312
        %v4688 = vpack.c.b16 %v4626, %v4624
        %v4689 = vpack.c.b16 %v4627, %v4625
        %v4690 = vpack.c.b16 %v4630, %v4628
        %v4691 = vpack.c.b16 %v4631, %v4629
        %v4692 = vpack.c.b16 %v4634, %v4632
        %v4693 = vpack.c.b16 %v4635, %v4633
        %v4694 = vpack.c.b16 %v4638, %v4636
        %v4695 = vpack.c.b16 %v4639, %v4637
        %v4696 = vpack.c.b16 %v4642, %v4640
        %v4697 = vpack.c.b16 %v4643, %v4641
        %v4698 = vpack.c.b16 %v4646, %v4644
        %v4699 = vpack.c.b16 %v4647, %v4645
        %v4700 = vpack.c.b16 %v4650, %v4648
        %v4701 = vpack.c.b16 %v4651, %v4649
        %v4702 = vpack.c.b16 %v4654, %v4652
        %v4703 = vpack.c.b16 %v4655, %v4653
        %v4704 = vpack.c.b16 %v4658, %v4656
        %v4705 = vpack.c.b16 %v4659, %v4657
        %v4706 = vpack.c.b16 %v4662, %v4660
        %v4707 = vpack.c.b16 %v4663, %v4661
        %v4708 = vpack.c.b16 %v4666, %v4664
        %v4709 = vpack.c.b16 %v4667, %v4665
        %v4710 = vpack.c.b16 %v4670, %v4668
        %v4711 = vpack.c.b16 %v4671, %v4669
        %v4712 = vpack.c.b16 %v4674, %v4672
        %v4713 = vpack.c.b16 %v4675, %v4673
        %v4714 = vpack.c.b16 %v4678, %v4676
        %v4715 = vpack.c.b16 %v4679, %v4677
        %v4716 = vpack.c.b16 %v4682, %v4680
        %v4717 = vpack.c.b16 %v4683, %v4681
        %v4718 = vpack.c.b16 %v4686, %v4684
        %v4719 = vpack.c.b16 %v4687, %v4685
        %4752 = vmatprep.subr.bf16.mxu0 %v4703
        %4753 = vmatpush1.bf16.msra.mxu0 %v4702
        %4754 = vmatprep.subr.bf16.mxu0 %v4701
        %4755 = vmatpush1.bf16.msra.mxu0 %v4700
        %4756 = vmatprep.subr.bf16.mxu0 %v4699
        %4757 = vmatpush1.bf16.msra.mxu0 %v4698
        %4758 = vmatprep.subr.bf16.mxu0 %v4697
        %4759 = vmatpush1.bf16.msra.mxu0 %v4696
        %4760 = vmatprep.subr.bf16.mxu0 %v4695
        %4761 = vmatpush1.bf16.msra.mxu0 %v4694
        %4762 = vmatprep.subr.bf16.mxu0 %v4693
        %4763 = vmatpush1.bf16.msra.mxu0 %v4692
        %4764 = vmatprep.subr.bf16.mxu0 %v4691
        %4765 = vmatpush1.bf16.msra.mxu0 %v4690
        %4766 = vmatprep.subr.bf16.mxu0 %v4689
        %4767 = vmatpush1.bf16.msra.mxu0 %v4688
        %4768 = vmatprep.subr.bf16.mxu0 %v4719
        %4769 = vmatpush2.bf16.msra.mxu0 %v4718
        %4770 = vmatprep.subr.bf16.mxu0 %v4717
        %4771 = vmatpush2.bf16.msra.mxu0 %v4716
        %4772 = vmatprep.subr.bf16.mxu0 %v4715
        %4773 = vmatpush2.bf16.msra.mxu0 %v4714
        %4774 = vmatprep.subr.bf16.mxu0 %v4713
        %4775 = vmatpush2.bf16.msra.mxu0 %v4712
        %4776 = vmatprep.subr.bf16.mxu0 %v4711
        %4777 = vmatpush2.bf16.msra.mxu0 %v4710
        %4778 = vmatprep.subr.bf16.mxu0 %v4709
        %4779 = vmatpush2.bf16.msra.mxu0 %v4708
        %4780 = vmatprep.subr.bf16.mxu0 %v4707
        %4781 = vmatpush2.bf16.msra.mxu0 %v4706
        %4782 = vmatprep.subr.bf16.mxu0 %v4705
        %4783 = vmatpush2.bf16.msra.mxu0 %v4704
        %4784 = vmatprep.mubr.bf16.mxu0 %v4314
        %4785 = vmatmul.mubr.bf16.gmra.mxu0 %v4313
        %v4786 = vpop.f32.mrf.mxu0
        %v4787 = vadd.f32 %v4586, %v4786
        %v4788 = vpop.f32.mrf.mxu0
        %v4789 = vadd.f32 %v4588, %v4788
        %v4790 = vpop.f32.mrf.mxu0
        %v4791 = vpop.f32.mrf.mxu0
        %4792 = vdwg.mxu0
        %4793 = vmatprep.subr.bf16.mxu0 %v3455
        %4794 = vmatpush1.bf16.msra.mxu0 %v3454
        %4795 = vmatprep.subr.bf16.mxu0 %v3453
        %4796 = vmatpush1.bf16.msra.mxu0 %v3452
        %4797 = vmatprep.subr.bf16.mxu0 %v3451
        %4798 = vmatpush1.bf16.msra.mxu0 %v3450
        %4799 = vmatprep.subr.bf16.mxu0 %v3449
        %4800 = vmatpush1.bf16.msra.mxu0 %v3448
        %4801 = vmatprep.subr.bf16.mxu0 %v3447
        %4802 = vmatpush1.bf16.msra.mxu0 %v3446
        %4803 = vmatprep.subr.bf16.mxu0 %v3445
        %4804 = vmatpush1.bf16.msra.mxu0 %v3444
        %4805 = vmatprep.subr.bf16.mxu0 %v3443
        %4806 = vmatpush1.bf16.msra.mxu0 %v3442
        %4807 = vmatprep.subr.bf16.mxu0 %v3441
        %4808 = vmatpush1.bf16.msra.mxu0 %v3440
        %4809 = vmatprep.subr.bf16.mxu0 %v3471
        %4810 = vmatpush2.bf16.msra.mxu0 %v3470
        %4811 = vmatprep.subr.bf16.mxu0 %v3469
        %4812 = vmatpush2.bf16.msra.mxu0 %v3468
        %4813 = vmatprep.subr.bf16.mxu0 %v3467
        %4814 = vmatpush2.bf16.msra.mxu0 %v3466
        %4815 = vmatprep.subr.bf16.mxu0 %v3465
        %4816 = vmatpush2.bf16.msra.mxu0 %v3464
        %4817 = vmatprep.subr.bf16.mxu0 %v3463
        %4818 = vmatpush2.bf16.msra.mxu0 %v3462
        %4819 = vmatprep.subr.bf16.mxu0 %v3461
        %4820 = vmatpush2.bf16.msra.mxu0 %v3460
        %4821 = vmatprep.subr.bf16.mxu0 %v3459
        %4822 = vmatpush2.bf16.msra.mxu0 %v3458
        %4823 = vmatprep.subr.bf16.mxu0 %v3457
        %4824 = vmatpush2.bf16.msra.mxu0 %v3456
        %4825 = vmatprep.mubr.bf16.mxu0 %v4390
        %4826 = vmatmul.mubr.bf16.gmra.mxu0 %v4389
        %v4827 = vpop.f32.mrf.mxu0
        %v4828 = vadd.f32 0.0, %v4827
        %v4829 = vpop.f32.mrf.mxu0
        %v4830 = vadd.f32 0.0, %v4829
        %v4831 = vpop.f32.mrf.mxu0
        %v4832 = vpop.f32.mrf.mxu0
        %4833 = vdwg.mxu0
        %v4834 = vmul.f32 %v4828, 2.0
        %v4835 = vmul.f32 %v4830, 2.0
        %v4836 = vsub.f32 %v4834, %v4279
        %v4837 = vsub.f32 %v4835, %v4280
        %s4838 = scalar_lea.vmem [#allocation7], 512
        %v4839 = vld [vmem:[%s4838] sm:$0xff]
        %v4840 = vld [vmem:[%s4838 + $0x8] sm:$0xff]
        %v4841 = vld [vmem:[%s4838 + $0x10] sm:$0xff]
        %v4842 = vld [vmem:[%s4838 + $0x18] sm:$0xff]
        %v4843 = vld [vmem:[%s4838 + $0x20] sm:$0xff]
        %v4844 = vld [vmem:[%s4838 + $0x28] sm:$0xff]
        %v4845 = vld [vmem:[%s4838 + $0x30] sm:$0xff]
        %v4846 = vld [vmem:[%s4838 + $0x38] sm:$0xff]
        %v4847 = vld [vmem:[%s4838 + $0x40] sm:$0xff]
        %v4848 = vld [vmem:[%s4838 + $0x48] sm:$0xff]
        %v4849 = vld [vmem:[%s4838 + $0x50] sm:$0xff]
        %v4850 = vld [vmem:[%s4838 + $0x58] sm:$0xff]
        %v4851 = vld [vmem:[%s4838 + $0x60] sm:$0xff]
        %v4852 = vld [vmem:[%s4838 + $0x68] sm:$0xff]
        %v4853 = vld [vmem:[%s4838 + $0x70] sm:$0xff]
        %v4854 = vld [vmem:[%s4838 + $0x78] sm:$0xff]
        %v4855 = vld [vmem:[%s4838 + $0x80] sm:$0xff]
        %v4856 = vld [vmem:[%s4838 + $0x88] sm:$0xff]
        %v4857 = vld [vmem:[%s4838 + $0x90] sm:$0xff]
        %v4858 = vld [vmem:[%s4838 + $0x98] sm:$0xff]
        %v4859 = vld [vmem:[%s4838 + $0xa0] sm:$0xff]
        %v4860 = vld [vmem:[%s4838 + $0xa8] sm:$0xff]
        %v4861 = vld [vmem:[%s4838 + $0xb0] sm:$0xff]
        %v4862 = vld [vmem:[%s4838 + $0xb8] sm:$0xff]
        %v4863 = vld [vmem:[%s4838 + $0xc0] sm:$0xff]
        %v4864 = vld [vmem:[%s4838 + $0xc8] sm:$0xff]
        %v4865 = vld [vmem:[%s4838 + $0xd0] sm:$0xff]
        %v4866 = vld [vmem:[%s4838 + $0xd8] sm:$0xff]
        %v4867 = vld [vmem:[%s4838 + $0xe0] sm:$0xff]
        %v4868 = vld [vmem:[%s4838 + $0xe8] sm:$0xff]
        %v4869 = vld [vmem:[%s4838 + $0xf0] sm:$0xff]
        %v4870 = vld [vmem:[%s4838 + $0xf8] sm:$0xff]
        %v4871 = vpack.c.bf16 %v4836, %v4836
        %v4872 = vpack.c.bf16 %v4837, %v4837
        %v4905 = vunpack.c.l.b16 %v4839
        %v4906 = vunpack.c.h.b16 %v4839
        %v4907 = vunpack.c.l.b16 %v4840
        %v4908 = vunpack.c.h.b16 %v4840
        %v4909 = vunpack.c.l.b16 %v4841
        %v4910 = vunpack.c.h.b16 %v4841
        %v4911 = vunpack.c.l.b16 %v4842
        %v4912 = vunpack.c.h.b16 %v4842
        %v4913 = vunpack.c.l.b16 %v4843
        %v4914 = vunpack.c.h.b16 %v4843
        %v4915 = vunpack.c.l.b16 %v4844
        %v4916 = vunpack.c.h.b16 %v4844
        %v4917 = vunpack.c.l.b16 %v4845
        %v4918 = vunpack.c.h.b16 %v4845
        %v4919 = vunpack.c.l.b16 %v4846
        %v4920 = vunpack.c.h.b16 %v4846
        %v4921 = vunpack.c.l.b16 %v4847
        %v4922 = vunpack.c.h.b16 %v4847
        %v4923 = vunpack.c.l.b16 %v4848
        %v4924 = vunpack.c.h.b16 %v4848
        %v4925 = vunpack.c.l.b16 %v4849
        %v4926 = vunpack.c.h.b16 %v4849
        %v4927 = vunpack.c.l.b16 %v4850
        %v4928 = vunpack.c.h.b16 %v4850
        %v4929 = vunpack.c.l.b16 %v4851
        %v4930 = vunpack.c.h.b16 %v4851
        %v4931 = vunpack.c.l.b16 %v4852
        %v4932 = vunpack.c.h.b16 %v4852
        %v4933 = vunpack.c.l.b16 %v4853
        %v4934 = vunpack.c.h.b16 %v4853
        %v4935 = vunpack.c.l.b16 %v4854
        %v4936 = vunpack.c.h.b16 %v4854
        %v4937 = vunpack.c.l.b16 %v4855
        %v4938 = vunpack.c.h.b16 %v4855
        %v4939 = vunpack.c.l.b16 %v4856
        %v4940 = vunpack.c.h.b16 %v4856
        %v4941 = vunpack.c.l.b16 %v4857
        %v4942 = vunpack.c.h.b16 %v4857
        %v4943 = vunpack.c.l.b16 %v4858
        %v4944 = vunpack.c.h.b16 %v4858
        %v4945 = vunpack.c.l.b16 %v4859
        %v4946 = vunpack.c.h.b16 %v4859
        %v4947 = vunpack.c.l.b16 %v4860
        %v4948 = vunpack.c.h.b16 %v4860
        %v4949 = vunpack.c.l.b16 %v4861
        %v4950 = vunpack.c.h.b16 %v4861
        %v4951 = vunpack.c.l.b16 %v4862
        %v4952 = vunpack.c.h.b16 %v4862
        %v4953 = vunpack.c.l.b16 %v4863
        %v4954 = vunpack.c.h.b16 %v4863
        %v4955 = vunpack.c.l.b16 %v4864
        %v4956 = vunpack.c.h.b16 %v4864
        %v4957 = vunpack.c.l.b16 %v4865
        %v4958 = vunpack.c.h.b16 %v4865
        %v4959 = vunpack.c.l.b16 %v4866
        %v4960 = vunpack.c.h.b16 %v4866
        %v4961 = vunpack.c.l.b16 %v4867
        %v4962 = vunpack.c.h.b16 %v4867
        %v4963 = vunpack.c.l.b16 %v4868
        %v4964 = vunpack.c.h.b16 %v4868
        %v4965 = vunpack.c.l.b16 %v4869
        %v4966 = vunpack.c.h.b16 %v4869
        %v4967 = vunpack.c.l.b16 %v4870
        %v4968 = vunpack.c.h.b16 %v4870
        %v4969 = vpack.c.b16 %v4907, %v4905
        %v4970 = vpack.c.b16 %v4908, %v4906
        %v4971 = vpack.c.b16 %v4911, %v4909
        %v4972 = vpack.c.b16 %v4912, %v4910
        %v4973 = vpack.c.b16 %v4915, %v4913
        %v4974 = vpack.c.b16 %v4916, %v4914
        %v4975 = vpack.c.b16 %v4919, %v4917
        %v4976 = vpack.c.b16 %v4920, %v4918
        %v4977 = vpack.c.b16 %v4923, %v4921
        %v4978 = vpack.c.b16 %v4924, %v4922
        %v4979 = vpack.c.b16 %v4927, %v4925
        %v4980 = vpack.c.b16 %v4928, %v4926
        %v4981 = vpack.c.b16 %v4931, %v4929
        %v4982 = vpack.c.b16 %v4932, %v4930
        %v4983 = vpack.c.b16 %v4935, %v4933
        %v4984 = vpack.c.b16 %v4936, %v4934
        %v4985 = vpack.c.b16 %v4939, %v4937
        %v4986 = vpack.c.b16 %v4940, %v4938
        %v4987 = vpack.c.b16 %v4943, %v4941
        %v4988 = vpack.c.b16 %v4944, %v4942
        %v4989 = vpack.c.b16 %v4947, %v4945
        %v4990 = vpack.c.b16 %v4948, %v4946
        %v4991 = vpack.c.b16 %v4951, %v4949
        %v4992 = vpack.c.b16 %v4952, %v4950
        %v4993 = vpack.c.b16 %v4955, %v4953
        %v4994 = vpack.c.b16 %v4956, %v4954
        %v4995 = vpack.c.b16 %v4959, %v4957
        %v4996 = vpack.c.b16 %v4960, %v4958
        %v4997 = vpack.c.b16 %v4963, %v4961
        %v4998 = vpack.c.b16 %v4964, %v4962
        %v4999 = vpack.c.b16 %v4967, %v4965
        %v5000 = vpack.c.b16 %v4968, %v4966
        %5033 = vmatprep.subr.bf16.mxu0 %v4984
        %5034 = vmatpush1.bf16.msra.mxu0 %v4983
        %5035 = vmatprep.subr.bf16.mxu0 %v4982
        %5036 = vmatpush1.bf16.msra.mxu0 %v4981
        %5037 = vmatprep.subr.bf16.mxu0 %v4980
        %5038 = vmatpush1.bf16.msra.mxu0 %v4979
        %5039 = vmatprep.subr.bf16.mxu0 %v4978
        %5040 = vmatpush1.bf16.msra.mxu0 %v4977
        %5041 = vmatprep.subr.bf16.mxu0 %v4976
        %5042 = vmatpush1.bf16.msra.mxu0 %v4975
        %5043 = vmatprep.subr.bf16.mxu0 %v4974
        %5044 = vmatpush1.bf16.msra.mxu0 %v4973
        %5045 = vmatprep.subr.bf16.mxu0 %v4972
        %5046 = vmatpush1.bf16.msra.mxu0 %v4971
        %5047 = vmatprep.subr.bf16.mxu0 %v4970
        %5048 = vmatpush1.bf16.msra.mxu0 %v4969
        %5049 = vmatprep.subr.bf16.mxu0 %v5000
        %5050 = vmatpush2.bf16.msra.mxu0 %v4999
        %5051 = vmatprep.subr.bf16.mxu0 %v4998
        %5052 = vmatpush2.bf16.msra.mxu0 %v4997
        %5053 = vmatprep.subr.bf16.mxu0 %v4996
        %5054 = vmatpush2.bf16.msra.mxu0 %v4995
        %5055 = vmatprep.subr.bf16.mxu0 %v4994
        %5056 = vmatpush2.bf16.msra.mxu0 %v4993
        %5057 = vmatprep.subr.bf16.mxu0 %v4992
        %5058 = vmatpush2.bf16.msra.mxu0 %v4991
        %5059 = vmatprep.subr.bf16.mxu0 %v4990
        %5060 = vmatpush2.bf16.msra.mxu0 %v4989
        %5061 = vmatprep.subr.bf16.mxu0 %v4988
        %5062 = vmatpush2.bf16.msra.mxu0 %v4987
        %5063 = vmatprep.subr.bf16.mxu0 %v4986
        %5064 = vmatpush2.bf16.msra.mxu0 %v4985
        %5065 = vmatprep.mubr.bf16.mxu0 %v4872
        %5066 = vmatmul.mubr.bf16.gmra.mxu0 %v4871
        %v5067 = vpop.f32.mrf.mxu0
        %v5068 = vadd.f32 0.0, %v5067
        %v5069 = vpop.f32.mrf.mxu0
        %v5070 = vadd.f32 0.0, %v5069
        %v5071 = vpop.f32.mrf.mxu0
        %v5072 = vpop.f32.mrf.mxu0
        %5073 = vdwg.mxu0
        %v5074 = vadd.f32 %v4787, %v5068
        %v5075 = vadd.f32 %v4789, %v5070
        %v5076 = vld [vmem:[%s8] sm:$0x3]
        %v5078 = vlaneseq
        %v5079 = vshrl.u32 %v5078, 7
        %v5080 = vsub.s32 0, %v5079
        %v5081 = vrot.slane %v5076, %v5080
        %v5082 = vlaneseq
        %v5083 = vshrl.u32 %v5082, 7
        %v5084 = vsub.s32 1, %v5083
        %v5085 = vrot.slane %v5076, %v5084
        %v5088 = vadd.f32 %v5074, %v5081
        %v5089 = vadd.f32 %v5075, %v5085
        %v5090 = vmax.f32 %v5088, 0.0
        %v5091 = vmax.f32 %v5089, 0.0
        %v5092 = vld [vmem:[#allocation9] sm:$0xff]
        %v5093 = vld [vmem:[#allocation9 + $0x8] sm:$0xff]
        %v5094 = vld [vmem:[#allocation9 + $0x10] sm:$0xff]
        %v5095 = vld [vmem:[#allocation9 + $0x18] sm:$0xff]
        %v5096 = vld [vmem:[#allocation9 + $0x20] sm:$0xff]
        %v5097 = vld [vmem:[#allocation9 + $0x28] sm:$0xff]
        %v5098 = vld [vmem:[#allocation9 + $0x30] sm:$0xff]
        %v5099 = vld [vmem:[#allocation9 + $0x38] sm:$0xff]
        %v5100 = vld [vmem:[#allocation9 + $0x40] sm:$0xff]
        %v5101 = vld [vmem:[#allocation9 + $0x48] sm:$0xff]
        %v5102 = vld [vmem:[#allocation9 + $0x50] sm:$0xff]
        %v5103 = vld [vmem:[#allocation9 + $0x58] sm:$0xff]
        %v5104 = vld [vmem:[#allocation9 + $0x60] sm:$0xff]
        %v5105 = vld [vmem:[#allocation9 + $0x68] sm:$0xff]
        %v5106 = vld [vmem:[#allocation9 + $0x70] sm:$0xff]
        %v5107 = vld [vmem:[#allocation9 + $0x78] sm:$0xff]
        %v5108 = vld [vmem:[#allocation9 + $0x80] sm:$0xff]
        %v5109 = vld [vmem:[#allocation9 + $0x88] sm:$0xff]
        %v5110 = vld [vmem:[#allocation9 + $0x90] sm:$0xff]
        %v5111 = vld [vmem:[#allocation9 + $0x98] sm:$0xff]
        %v5112 = vld [vmem:[#allocation9 + $0xa0] sm:$0xff]
        %v5113 = vld [vmem:[#allocation9 + $0xa8] sm:$0xff]
        %v5114 = vld [vmem:[#allocation9 + $0xb0] sm:$0xff]
        %v5115 = vld [vmem:[#allocation9 + $0xb8] sm:$0xff]
        %v5116 = vld [vmem:[#allocation9 + $0xc0] sm:$0xff]
        %v5117 = vld [vmem:[#allocation9 + $0xc8] sm:$0xff]
        %v5118 = vld [vmem:[#allocation9 + $0xd0] sm:$0xff]
        %v5119 = vld [vmem:[#allocation9 + $0xd8] sm:$0xff]
        %v5120 = vld [vmem:[#allocation9 + $0xe0] sm:$0xff]
        %v5121 = vld [vmem:[#allocation9 + $0xe8] sm:$0xff]
        %v5122 = vld [vmem:[#allocation9 + $0xf0] sm:$0xff]
        %v5123 = vld [vmem:[#allocation9 + $0xf8] sm:$0xff]
        %v5124 = vpack.c.bf16 %v5090, %v5090
        %v5125 = vpack.c.bf16 %v5091, %v5091
        %5126 = vmatprep.subr.bf16.mxu0 %v3455
        %5127 = vmatpush1.bf16.msra.mxu0 %v3454
        %5128 = vmatprep.subr.bf16.mxu0 %v3453
        %5129 = vmatpush1.bf16.msra.mxu0 %v3452
        %5130 = vmatprep.subr.bf16.mxu0 %v3451
        %5131 = vmatpush1.bf16.msra.mxu0 %v3450
        %5132 = vmatprep.subr.bf16.mxu0 %v3449
        %5133 = vmatpush1.bf16.msra.mxu0 %v3448
        %5134 = vmatprep.subr.bf16.mxu0 %v3447
        %5135 = vmatpush1.bf16.msra.mxu0 %v3446
        %5136 = vmatprep.subr.bf16.mxu0 %v3445
        %5137 = vmatpush1.bf16.msra.mxu0 %v3444
        %5138 = vmatprep.subr.bf16.mxu0 %v3443
        %5139 = vmatpush1.bf16.msra.mxu0 %v3442
        %5140 = vmatprep.subr.bf16.mxu0 %v3441
        %5141 = vmatpush1.bf16.msra.mxu0 %v3440
        %5142 = vmatprep.subr.bf16.mxu0 %v3471
        %5143 = vmatpush2.bf16.msra.mxu0 %v3470
        %5144 = vmatprep.subr.bf16.mxu0 %v3469
        %5145 = vmatpush2.bf16.msra.mxu0 %v3468
        %5146 = vmatprep.subr.bf16.mxu0 %v3467
        %5147 = vmatpush2.bf16.msra.mxu0 %v3466
        %5148 = vmatprep.subr.bf16.mxu0 %v3465
        %5149 = vmatpush2.bf16.msra.mxu0 %v3464
        %5150 = vmatprep.subr.bf16.mxu0 %v3463
        %5151 = vmatpush2.bf16.msra.mxu0 %v3462
        %5152 = vmatprep.subr.bf16.mxu0 %v3461
        %5153 = vmatpush2.bf16.msra.mxu0 %v3460
        %5154 = vmatprep.subr.bf16.mxu0 %v3459
        %5155 = vmatpush2.bf16.msra.mxu0 %v3458
        %5156 = vmatprep.subr.bf16.mxu0 %v3457
        %5157 = vmatpush2.bf16.msra.mxu0 %v3456
        %5158 = vmatprep.mubr.bf16.mxu0 %v5125
        %5159 = vmatmul.mubr.bf16.gmra.mxu0 %v5124
        %v5160 = vpop.f32.mrf.mxu0
        %v5161 = vadd.f32 0.0, %v5160
        %v5162 = vpop.f32.mrf.mxu0
        %v5163 = vadd.f32 0.0, %v5162
        %v5164 = vpop.f32.mrf.mxu0
        %v5165 = vpop.f32.mrf.mxu0
        %5166 = vdwg.mxu0
        %s5167 = scalar_lea.vmem [#allocation9], 256
        %v5168 = vld [vmem:[%s5167] sm:$0xff]
        %v5169 = vld [vmem:[%s5167 + $0x8] sm:$0xff]
        %v5170 = vld [vmem:[%s5167 + $0x10] sm:$0xff]
        %v5171 = vld [vmem:[%s5167 + $0x18] sm:$0xff]
        %v5172 = vld [vmem:[%s5167 + $0x20] sm:$0xff]
        %v5173 = vld [vmem:[%s5167 + $0x28] sm:$0xff]
        %v5174 = vld [vmem:[%s5167 + $0x30] sm:$0xff]
        %v5175 = vld [vmem:[%s5167 + $0x38] sm:$0xff]
        %v5176 = vld [vmem:[%s5167 + $0x40] sm:$0xff]
        %v5177 = vld [vmem:[%s5167 + $0x48] sm:$0xff]
        %v5178 = vld [vmem:[%s5167 + $0x50] sm:$0xff]
        %v5179 = vld [vmem:[%s5167 + $0x58] sm:$0xff]
        %v5180 = vld [vmem:[%s5167 + $0x60] sm:$0xff]
        %v5181 = vld [vmem:[%s5167 + $0x68] sm:$0xff]
        %v5182 = vld [vmem:[%s5167 + $0x70] sm:$0xff]
        %v5183 = vld [vmem:[%s5167 + $0x78] sm:$0xff]
        %v5184 = vld [vmem:[%s5167 + $0x80] sm:$0xff]
        %v5185 = vld [vmem:[%s5167 + $0x88] sm:$0xff]
        %v5186 = vld [vmem:[%s5167 + $0x90] sm:$0xff]
        %v5187 = vld [vmem:[%s5167 + $0x98] sm:$0xff]
        %v5188 = vld [vmem:[%s5167 + $0xa0] sm:$0xff]
        %v5189 = vld [vmem:[%s5167 + $0xa8] sm:$0xff]
        %v5190 = vld [vmem:[%s5167 + $0xb0] sm:$0xff]
        %v5191 = vld [vmem:[%s5167 + $0xb8] sm:$0xff]
        %v5192 = vld [vmem:[%s5167 + $0xc0] sm:$0xff]
        %v5193 = vld [vmem:[%s5167 + $0xc8] sm:$0xff]
        %v5194 = vld [vmem:[%s5167 + $0xd0] sm:$0xff]
        %v5195 = vld [vmem:[%s5167 + $0xd8] sm:$0xff]
        %v5196 = vld [vmem:[%s5167 + $0xe0] sm:$0xff]
        %v5197 = vld [vmem:[%s5167 + $0xe8] sm:$0xff]
        %v5198 = vld [vmem:[%s5167 + $0xf0] sm:$0xff]
        %v5199 = vld [vmem:[%s5167 + $0xf8] sm:$0xff]
        %v5200 = vpack.c.bf16 %v5161, %v5161
        %v5201 = vpack.c.bf16 %v5163, %v5163
        %v5234 = vunpack.c.l.b16 %v5168
        %v5235 = vunpack.c.h.b16 %v5168
        %v5236 = vunpack.c.l.b16 %v5169
        %v5237 = vunpack.c.h.b16 %v5169
        %v5238 = vunpack.c.l.b16 %v5170
        %v5239 = vunpack.c.h.b16 %v5170
        %v5240 = vunpack.c.l.b16 %v5171
        %v5241 = vunpack.c.h.b16 %v5171
        %v5242 = vunpack.c.l.b16 %v5172
        %v5243 = vunpack.c.h.b16 %v5172
        %v5244 = vunpack.c.l.b16 %v5173
        %v5245 = vunpack.c.h.b16 %v5173
        %v5246 = vunpack.c.l.b16 %v5174
        %v5247 = vunpack.c.h.b16 %v5174
        %v5248 = vunpack.c.l.b16 %v5175
        %v5249 = vunpack.c.h.b16 %v5175
        %v5250 = vunpack.c.l.b16 %v5176
        %v5251 = vunpack.c.h.b16 %v5176
        %v5252 = vunpack.c.l.b16 %v5177
        %v5253 = vunpack.c.h.b16 %v5177
        %v5254 = vunpack.c.l.b16 %v5178
        %v5255 = vunpack.c.h.b16 %v5178
        %v5256 = vunpack.c.l.b16 %v5179
        %v5257 = vunpack.c.h.b16 %v5179
        %v5258 = vunpack.c.l.b16 %v5180
        %v5259 = vunpack.c.h.b16 %v5180
        %v5260 = vunpack.c.l.b16 %v5181
        %v5261 = vunpack.c.h.b16 %v5181
        %v5262 = vunpack.c.l.b16 %v5182
        %v5263 = vunpack.c.h.b16 %v5182
        %v5264 = vunpack.c.l.b16 %v5183
        %v5265 = vunpack.c.h.b16 %v5183
        %v5266 = vunpack.c.l.b16 %v5184
        %v5267 = vunpack.c.h.b16 %v5184
        %v5268 = vunpack.c.l.b16 %v5185
        %v5269 = vunpack.c.h.b16 %v5185
        %v5270 = vunpack.c.l.b16 %v5186
        %v5271 = vunpack.c.h.b16 %v5186
        %v5272 = vunpack.c.l.b16 %v5187
        %v5273 = vunpack.c.h.b16 %v5187
        %v5274 = vunpack.c.l.b16 %v5188
        %v5275 = vunpack.c.h.b16 %v5188
        %v5276 = vunpack.c.l.b16 %v5189
        %v5277 = vunpack.c.h.b16 %v5189
        %v5278 = vunpack.c.l.b16 %v5190
        %v5279 = vunpack.c.h.b16 %v5190
        %v5280 = vunpack.c.l.b16 %v5191
        %v5281 = vunpack.c.h.b16 %v5191
        %v5282 = vunpack.c.l.b16 %v5192
        %v5283 = vunpack.c.h.b16 %v5192
        %v5284 = vunpack.c.l.b16 %v5193
        %v5285 = vunpack.c.h.b16 %v5193
        %v5286 = vunpack.c.l.b16 %v5194
        %v5287 = vunpack.c.h.b16 %v5194
        %v5288 = vunpack.c.l.b16 %v5195
        %v5289 = vunpack.c.h.b16 %v5195
        %v5290 = vunpack.c.l.b16 %v5196
        %v5291 = vunpack.c.h.b16 %v5196
        %v5292 = vunpack.c.l.b16 %v5197
        %v5293 = vunpack.c.h.b16 %v5197
        %v5294 = vunpack.c.l.b16 %v5198
        %v5295 = vunpack.c.h.b16 %v5198
        %v5296 = vunpack.c.l.b16 %v5199
        %v5297 = vunpack.c.h.b16 %v5199
        %v5298 = vpack.c.b16 %v5236, %v5234
        %v5299 = vpack.c.b16 %v5237, %v5235
        %v5300 = vpack.c.b16 %v5240, %v5238
        %v5301 = vpack.c.b16 %v5241, %v5239
        %v5302 = vpack.c.b16 %v5244, %v5242
        %v5303 = vpack.c.b16 %v5245, %v5243
        %v5304 = vpack.c.b16 %v5248, %v5246
        %v5305 = vpack.c.b16 %v5249, %v5247
        %v5306 = vpack.c.b16 %v5252, %v5250
        %v5307 = vpack.c.b16 %v5253, %v5251
        %v5308 = vpack.c.b16 %v5256, %v5254
        %v5309 = vpack.c.b16 %v5257, %v5255
        %v5310 = vpack.c.b16 %v5260, %v5258
        %v5311 = vpack.c.b16 %v5261, %v5259
        %v5312 = vpack.c.b16 %v5264, %v5262
        %v5313 = vpack.c.b16 %v5265, %v5263
        %v5314 = vpack.c.b16 %v5268, %v5266
        %v5315 = vpack.c.b16 %v5269, %v5267
        %v5316 = vpack.c.b16 %v5272, %v5270
        %v5317 = vpack.c.b16 %v5273, %v5271
        %v5318 = vpack.c.b16 %v5276, %v5274
        %v5319 = vpack.c.b16 %v5277, %v5275
        %v5320 = vpack.c.b16 %v5280, %v5278
        %v5321 = vpack.c.b16 %v5281, %v5279
        %v5322 = vpack.c.b16 %v5284, %v5282
        %v5323 = vpack.c.b16 %v5285, %v5283
        %v5324 = vpack.c.b16 %v5288, %v5286
        %v5325 = vpack.c.b16 %v5289, %v5287
        %v5326 = vpack.c.b16 %v5292, %v5290
        %v5327 = vpack.c.b16 %v5293, %v5291
        %v5328 = vpack.c.b16 %v5296, %v5294
        %v5329 = vpack.c.b16 %v5297, %v5295
        %5362 = vmatprep.subr.bf16.mxu0 %v5313
        %5363 = vmatpush1.bf16.msra.mxu0 %v5312
        %5364 = vmatprep.subr.bf16.mxu0 %v5311
        %5365 = vmatpush1.bf16.msra.mxu0 %v5310
        %5366 = vmatprep.subr.bf16.mxu0 %v5309
        %5367 = vmatpush1.bf16.msra.mxu0 %v5308
        %5368 = vmatprep.subr.bf16.mxu0 %v5307
        %5369 = vmatpush1.bf16.msra.mxu0 %v5306
        %5370 = vmatprep.subr.bf16.mxu0 %v5305
        %5371 = vmatpush1.bf16.msra.mxu0 %v5304
        %5372 = vmatprep.subr.bf16.mxu0 %v5303
        %5373 = vmatpush1.bf16.msra.mxu0 %v5302
        %5374 = vmatprep.subr.bf16.mxu0 %v5301
        %5375 = vmatpush1.bf16.msra.mxu0 %v5300
        %5376 = vmatprep.subr.bf16.mxu0 %v5299
        %5377 = vmatpush1.bf16.msra.mxu0 %v5298
        %5378 = vmatprep.subr.bf16.mxu0 %v5329
        %5379 = vmatpush2.bf16.msra.mxu0 %v5328
        %5380 = vmatprep.subr.bf16.mxu0 %v5327
        %5381 = vmatpush2.bf16.msra.mxu0 %v5326
        %5382 = vmatprep.subr.bf16.mxu0 %v5325
        %5383 = vmatpush2.bf16.msra.mxu0 %v5324
        %5384 = vmatprep.subr.bf16.mxu0 %v5323
        %5385 = vmatpush2.bf16.msra.mxu0 %v5322
        %5386 = vmatprep.subr.bf16.mxu0 %v5321
        %5387 = vmatpush2.bf16.msra.mxu0 %v5320
        %5388 = vmatprep.subr.bf16.mxu0 %v5319
        %5389 = vmatpush2.bf16.msra.mxu0 %v5318
        %5390 = vmatprep.subr.bf16.mxu0 %v5317
        %5391 = vmatpush2.bf16.msra.mxu0 %v5316
        %5392 = vmatprep.subr.bf16.mxu0 %v5315
        %5393 = vmatpush2.bf16.msra.mxu0 %v5314
        %5394 = vmatprep.mubr.bf16.mxu0 %v5201
        %5395 = vmatmul.mubr.bf16.gmra.mxu0 %v5200
        %v5396 = vpop.f32.mrf.mxu0
        %v5397 = vadd.f32 0.0, %v5396
        %v5398 = vpop.f32.mrf.mxu0
        %v5399 = vadd.f32 0.0, %v5398
        %v5400 = vpop.f32.mrf.mxu0
        %v5401 = vpop.f32.mrf.mxu0
        %5402 = vdwg.mxu0
        %v5435 = vunpack.c.l.b16 %v5092
        %v5436 = vunpack.c.h.b16 %v5092
        %v5437 = vunpack.c.l.b16 %v5093
        %v5438 = vunpack.c.h.b16 %v5093
        %v5439 = vunpack.c.l.b16 %v5094
        %v5440 = vunpack.c.h.b16 %v5094
        %v5441 = vunpack.c.l.b16 %v5095
        %v5442 = vunpack.c.h.b16 %v5095
        %v5443 = vunpack.c.l.b16 %v5096
        %v5444 = vunpack.c.h.b16 %v5096
        %v5445 = vunpack.c.l.b16 %v5097
        %v5446 = vunpack.c.h.b16 %v5097
        %v5447 = vunpack.c.l.b16 %v5098
        %v5448 = vunpack.c.h.b16 %v5098
        %v5449 = vunpack.c.l.b16 %v5099
        %v5450 = vunpack.c.h.b16 %v5099
        %v5451 = vunpack.c.l.b16 %v5100
        %v5452 = vunpack.c.h.b16 %v5100
        %v5453 = vunpack.c.l.b16 %v5101
        %v5454 = vunpack.c.h.b16 %v5101
        %v5455 = vunpack.c.l.b16 %v5102
        %v5456 = vunpack.c.h.b16 %v5102
        %v5457 = vunpack.c.l.b16 %v5103
        %v5458 = vunpack.c.h.b16 %v5103
        %v5459 = vunpack.c.l.b16 %v5104
        %v5460 = vunpack.c.h.b16 %v5104
        %v5461 = vunpack.c.l.b16 %v5105
        %v5462 = vunpack.c.h.b16 %v5105
        %v5463 = vunpack.c.l.b16 %v5106
        %v5464 = vunpack.c.h.b16 %v5106
        %v5465 = vunpack.c.l.b16 %v5107
        %v5466 = vunpack.c.h.b16 %v5107
        %v5467 = vunpack.c.l.b16 %v5108
        %v5468 = vunpack.c.h.b16 %v5108
        %v5469 = vunpack.c.l.b16 %v5109
        %v5470 = vunpack.c.h.b16 %v5109
        %v5471 = vunpack.c.l.b16 %v5110
        %v5472 = vunpack.c.h.b16 %v5110
        %v5473 = vunpack.c.l.b16 %v5111
        %v5474 = vunpack.c.h.b16 %v5111
        %v5475 = vunpack.c.l.b16 %v5112
        %v5476 = vunpack.c.h.b16 %v5112
        %v5477 = vunpack.c.l.b16 %v5113
        %v5478 = vunpack.c.h.b16 %v5113
        %v5479 = vunpack.c.l.b16 %v5114
        %v5480 = vunpack.c.h.b16 %v5114
        %v5481 = vunpack.c.l.b16 %v5115
        %v5482 = vunpack.c.h.b16 %v5115
        %v5483 = vunpack.c.l.b16 %v5116
        %v5484 = vunpack.c.h.b16 %v5116
        %v5485 = vunpack.c.l.b16 %v5117
        %v5486 = vunpack.c.h.b16 %v5117
        %v5487 = vunpack.c.l.b16 %v5118
        %v5488 = vunpack.c.h.b16 %v5118
        %v5489 = vunpack.c.l.b16 %v5119
        %v5490 = vunpack.c.h.b16 %v5119
        %v5491 = vunpack.c.l.b16 %v5120
        %v5492 = vunpack.c.h.b16 %v5120
        %v5493 = vunpack.c.l.b16 %v5121
        %v5494 = vunpack.c.h.b16 %v5121
        %v5495 = vunpack.c.l.b16 %v5122
        %v5496 = vunpack.c.h.b16 %v5122
        %v5497 = vunpack.c.l.b16 %v5123
        %v5498 = vunpack.c.h.b16 %v5123
        %v5499 = vpack.c.b16 %v5437, %v5435
        %v5500 = vpack.c.b16 %v5438, %v5436
        %v5501 = vpack.c.b16 %v5441, %v5439
        %v5502 = vpack.c.b16 %v5442, %v5440
        %v5503 = vpack.c.b16 %v5445, %v5443
        %v5504 = vpack.c.b16 %v5446, %v5444
        %v5505 = vpack.c.b16 %v5449, %v5447
        %v5506 = vpack.c.b16 %v5450, %v5448
        %v5507 = vpack.c.b16 %v5453, %v5451
        %v5508 = vpack.c.b16 %v5454, %v5452
        %v5509 = vpack.c.b16 %v5457, %v5455
        %v5510 = vpack.c.b16 %v5458, %v5456
        %v5511 = vpack.c.b16 %v5461, %v5459
        %v5512 = vpack.c.b16 %v5462, %v5460
        %v5513 = vpack.c.b16 %v5465, %v5463
        %v5514 = vpack.c.b16 %v5466, %v5464
        %v5515 = vpack.c.b16 %v5469, %v5467
        %v5516 = vpack.c.b16 %v5470, %v5468
        %v5517 = vpack.c.b16 %v5473, %v5471
        %v5518 = vpack.c.b16 %v5474, %v5472
        %v5519 = vpack.c.b16 %v5477, %v5475
        %v5520 = vpack.c.b16 %v5478, %v5476
        %v5521 = vpack.c.b16 %v5481, %v5479
        %v5522 = vpack.c.b16 %v5482, %v5480
        %v5523 = vpack.c.b16 %v5485, %v5483
        %v5524 = vpack.c.b16 %v5486, %v5484
        %v5525 = vpack.c.b16 %v5489, %v5487
        %v5526 = vpack.c.b16 %v5490, %v5488
        %v5527 = vpack.c.b16 %v5493, %v5491
        %v5528 = vpack.c.b16 %v5494, %v5492
        %v5529 = vpack.c.b16 %v5497, %v5495
        %v5530 = vpack.c.b16 %v5498, %v5496
        %5563 = vmatprep.subr.bf16.mxu0 %v5514
        %5564 = vmatpush1.bf16.msra.mxu0 %v5513
        %5565 = vmatprep.subr.bf16.mxu0 %v5512
        %5566 = vmatpush1.bf16.msra.mxu0 %v5511
        %5567 = vmatprep.subr.bf16.mxu0 %v5510
        %5568 = vmatpush1.bf16.msra.mxu0 %v5509
        %5569 = vmatprep.subr.bf16.mxu0 %v5508
        %5570 = vmatpush1.bf16.msra.mxu0 %v5507
        %5571 = vmatprep.subr.bf16.mxu0 %v5506
        %5572 = vmatpush1.bf16.msra.mxu0 %v5505
        %5573 = vmatprep.subr.bf16.mxu0 %v5504
        %5574 = vmatpush1.bf16.msra.mxu0 %v5503
        %5575 = vmatprep.subr.bf16.mxu0 %v5502
        %5576 = vmatpush1.bf16.msra.mxu0 %v5501
        %5577 = vmatprep.subr.bf16.mxu0 %v5500
        %5578 = vmatpush1.bf16.msra.mxu0 %v5499
        %5579 = vmatprep.subr.bf16.mxu0 %v5530
        %5580 = vmatpush2.bf16.msra.mxu0 %v5529
        %5581 = vmatprep.subr.bf16.mxu0 %v5528
        %5582 = vmatpush2.bf16.msra.mxu0 %v5527
        %5583 = vmatprep.subr.bf16.mxu0 %v5526
        %5584 = vmatpush2.bf16.msra.mxu0 %v5525
        %5585 = vmatprep.subr.bf16.mxu0 %v5524
        %5586 = vmatpush2.bf16.msra.mxu0 %v5523
        %5587 = vmatprep.subr.bf16.mxu0 %v5522
        %5588 = vmatpush2.bf16.msra.mxu0 %v5521
        %5589 = vmatprep.subr.bf16.mxu0 %v5520
        %5590 = vmatpush2.bf16.msra.mxu0 %v5519
        %5591 = vmatprep.subr.bf16.mxu0 %v5518
        %5592 = vmatpush2.bf16.msra.mxu0 %v5517
        %5593 = vmatprep.subr.bf16.mxu0 %v5516
        %5594 = vmatpush2.bf16.msra.mxu0 %v5515
        %5595 = vmatprep.mubr.bf16.mxu0 %v5125
        %5596 = vmatmul.mubr.bf16.gmra.mxu0 %v5124
        %v5597 = vpop.f32.mrf.mxu0
        %v5598 = vadd.f32 %v5397, %v5597
        %v5599 = vpop.f32.mrf.mxu0
        %v5600 = vadd.f32 %v5399, %v5599
        %v5601 = vpop.f32.mrf.mxu0
        %v5602 = vpop.f32.mrf.mxu0
        %5603 = vdwg.mxu0
        %5604 = vmatprep.subr.bf16.mxu0 %v3455
        %5605 = vmatpush1.bf16.msra.mxu0 %v3454
        %5606 = vmatprep.subr.bf16.mxu0 %v3453
        %5607 = vmatpush1.bf16.msra.mxu0 %v3452
        %5608 = vmatprep.subr.bf16.mxu0 %v3451
        %5609 = vmatpush1.bf16.msra.mxu0 %v3450
        %5610 = vmatprep.subr.bf16.mxu0 %v3449
        %5611 = vmatpush1.bf16.msra.mxu0 %v3448
        %5612 = vmatprep.subr.bf16.mxu0 %v3447
        %5613 = vmatpush1.bf16.msra.mxu0 %v3446
        %5614 = vmatprep.subr.bf16.mxu0 %v3445
        %5615 = vmatpush1.bf16.msra.mxu0 %v3444
        %5616 = vmatprep.subr.bf16.mxu0 %v3443
        %5617 = vmatpush1.bf16.msra.mxu0 %v3442
        %5618 = vmatprep.subr.bf16.mxu0 %v3441
        %5619 = vmatpush1.bf16.msra.mxu0 %v3440
        %5620 = vmatprep.subr.bf16.mxu0 %v3471
        %5621 = vmatpush2.bf16.msra.mxu0 %v3470
        %5622 = vmatprep.subr.bf16.mxu0 %v3469
        %5623 = vmatpush2.bf16.msra.mxu0 %v3468
        %5624 = vmatprep.subr.bf16.mxu0 %v3467
        %5625 = vmatpush2.bf16.msra.mxu0 %v3466
        %5626 = vmatprep.subr.bf16.mxu0 %v3465
        %5627 = vmatpush2.bf16.msra.mxu0 %v3464
        %5628 = vmatprep.subr.bf16.mxu0 %v3463
        %5629 = vmatpush2.bf16.msra.mxu0 %v3462
        %5630 = vmatprep.subr.bf16.mxu0 %v3461
        %5631 = vmatpush2.bf16.msra.mxu0 %v3460
        %5632 = vmatprep.subr.bf16.mxu0 %v3459
        %5633 = vmatpush2.bf16.msra.mxu0 %v3458
        %5634 = vmatprep.subr.bf16.mxu0 %v3457
        %5635 = vmatpush2.bf16.msra.mxu0 %v3456
        %5636 = vmatprep.mubr.bf16.mxu0 %v5201
        %5637 = vmatmul.mubr.bf16.gmra.mxu0 %v5200
        %v5638 = vpop.f32.mrf.mxu0
        %v5639 = vadd.f32 0.0, %v5638
        %v5640 = vpop.f32.mrf.mxu0
        %v5641 = vadd.f32 0.0, %v5640
        %v5642 = vpop.f32.mrf.mxu0
        %v5643 = vpop.f32.mrf.mxu0
        %5644 = vdwg.mxu0
        %v5645 = vmul.f32 %v5639, 2.0
        %v5646 = vmul.f32 %v5641, 2.0
        %v5647 = vsub.f32 %v5645, %v5090
        %v5648 = vsub.f32 %v5646, %v5091
        %s5649 = scalar_lea.vmem [#allocation9], 512
        %v5650 = vld [vmem:[%s5649] sm:$0xff]
        %v5651 = vld [vmem:[%s5649 + $0x8] sm:$0xff]
        %v5652 = vld [vmem:[%s5649 + $0x10] sm:$0xff]
        %v5653 = vld [vmem:[%s5649 + $0x18] sm:$0xff]
        %v5654 = vld [vmem:[%s5649 + $0x20] sm:$0xff]
        %v5655 = vld [vmem:[%s5649 + $0x28] sm:$0xff]
        %v5656 = vld [vmem:[%s5649 + $0x30] sm:$0xff]
        %v5657 = vld [vmem:[%s5649 + $0x38] sm:$0xff]
        %v5658 = vld [vmem:[%s5649 + $0x40] sm:$0xff]
        %v5659 = vld [vmem:[%s5649 + $0x48] sm:$0xff]
        %v5660 = vld [vmem:[%s5649 + $0x50] sm:$0xff]
        %v5661 = vld [vmem:[%s5649 + $0x58] sm:$0xff]
        %v5662 = vld [vmem:[%s5649 + $0x60] sm:$0xff]
        %v5663 = vld [vmem:[%s5649 + $0x68] sm:$0xff]
        %v5664 = vld [vmem:[%s5649 + $0x70] sm:$0xff]
        %v5665 = vld [vmem:[%s5649 + $0x78] sm:$0xff]
        %v5666 = vld [vmem:[%s5649 + $0x80] sm:$0xff]
        %v5667 = vld [vmem:[%s5649 + $0x88] sm:$0xff]
        %v5668 = vld [vmem:[%s5649 + $0x90] sm:$0xff]
        %v5669 = vld [vmem:[%s5649 + $0x98] sm:$0xff]
        %v5670 = vld [vmem:[%s5649 + $0xa0] sm:$0xff]
        %v5671 = vld [vmem:[%s5649 + $0xa8] sm:$0xff]
        %v5672 = vld [vmem:[%s5649 + $0xb0] sm:$0xff]
        %v5673 = vld [vmem:[%s5649 + $0xb8] sm:$0xff]
        %v5674 = vld [vmem:[%s5649 + $0xc0] sm:$0xff]
        %v5675 = vld [vmem:[%s5649 + $0xc8] sm:$0xff]
        %v5676 = vld [vmem:[%s5649 + $0xd0] sm:$0xff]
        %v5677 = vld [vmem:[%s5649 + $0xd8] sm:$0xff]
        %v5678 = vld [vmem:[%s5649 + $0xe0] sm:$0xff]
        %v5679 = vld [vmem:[%s5649 + $0xe8] sm:$0xff]
        %v5680 = vld [vmem:[%s5649 + $0xf0] sm:$0xff]
        %v5681 = vld [vmem:[%s5649 + $0xf8] sm:$0xff]
        %v5682 = vpack.c.bf16 %v5647, %v5647
        %v5683 = vpack.c.bf16 %v5648, %v5648
        %v5716 = vunpack.c.l.b16 %v5650
        %v5717 = vunpack.c.h.b16 %v5650
        %v5718 = vunpack.c.l.b16 %v5651
        %v5719 = vunpack.c.h.b16 %v5651
        %v5720 = vunpack.c.l.b16 %v5652
        %v5721 = vunpack.c.h.b16 %v5652
        %v5722 = vunpack.c.l.b16 %v5653
        %v5723 = vunpack.c.h.b16 %v5653
        %v5724 = vunpack.c.l.b16 %v5654
        %v5725 = vunpack.c.h.b16 %v5654
        %v5726 = vunpack.c.l.b16 %v5655
        %v5727 = vunpack.c.h.b16 %v5655
        %v5728 = vunpack.c.l.b16 %v5656
        %v5729 = vunpack.c.h.b16 %v5656
        %v5730 = vunpack.c.l.b16 %v5657
        %v5731 = vunpack.c.h.b16 %v5657
        %v5732 = vunpack.c.l.b16 %v5658
        %v5733 = vunpack.c.h.b16 %v5658
        %v5734 = vunpack.c.l.b16 %v5659
        %v5735 = vunpack.c.h.b16 %v5659
        %v5736 = vunpack.c.l.b16 %v5660
        %v5737 = vunpack.c.h.b16 %v5660
        %v5738 = vunpack.c.l.b16 %v5661
        %v5739 = vunpack.c.h.b16 %v5661
        %v5740 = vunpack.c.l.b16 %v5662
        %v5741 = vunpack.c.h.b16 %v5662
        %v5742 = vunpack.c.l.b16 %v5663
        %v5743 = vunpack.c.h.b16 %v5663
        %v5744 = vunpack.c.l.b16 %v5664
        %v5745 = vunpack.c.h.b16 %v5664
        %v5746 = vunpack.c.l.b16 %v5665
        %v5747 = vunpack.c.h.b16 %v5665
        %v5748 = vunpack.c.l.b16 %v5666
        %v5749 = vunpack.c.h.b16 %v5666
        %v5750 = vunpack.c.l.b16 %v5667
        %v5751 = vunpack.c.h.b16 %v5667
        %v5752 = vunpack.c.l.b16 %v5668
        %v5753 = vunpack.c.h.b16 %v5668
        %v5754 = vunpack.c.l.b16 %v5669
        %v5755 = vunpack.c.h.b16 %v5669
        %v5756 = vunpack.c.l.b16 %v5670
        %v5757 = vunpack.c.h.b16 %v5670
        %v5758 = vunpack.c.l.b16 %v5671
        %v5759 = vunpack.c.h.b16 %v5671
        %v5760 = vunpack.c.l.b16 %v5672
        %v5761 = vunpack.c.h.b16 %v5672
        %v5762 = vunpack.c.l.b16 %v5673
        %v5763 = vunpack.c.h.b16 %v5673
        %v5764 = vunpack.c.l.b16 %v5674
        %v5765 = vunpack.c.h.b16 %v5674
        %v5766 = vunpack.c.l.b16 %v5675
        %v5767 = vunpack.c.h.b16 %v5675
        %v5768 = vunpack.c.l.b16 %v5676
        %v5769 = vunpack.c.h.b16 %v5676
        %v5770 = vunpack.c.l.b16 %v5677
        %v5771 = vunpack.c.h.b16 %v5677
        %v5772 = vunpack.c.l.b16 %v5678
        %v5773 = vunpack.c.h.b16 %v5678
        %v5774 = vunpack.c.l.b16 %v5679
        %v5775 = vunpack.c.h.b16 %v5679
        %v5776 = vunpack.c.l.b16 %v5680
        %v5777 = vunpack.c.h.b16 %v5680
        %v5778 = vunpack.c.l.b16 %v5681
        %v5779 = vunpack.c.h.b16 %v5681
        %v5780 = vpack.c.b16 %v5718, %v5716
        %v5781 = vpack.c.b16 %v5719, %v5717
        %v5782 = vpack.c.b16 %v5722, %v5720
        %v5783 = vpack.c.b16 %v5723, %v5721
        %v5784 = vpack.c.b16 %v5726, %v5724
        %v5785 = vpack.c.b16 %v5727, %v5725
        %v5786 = vpack.c.b16 %v5730, %v5728
        %v5787 = vpack.c.b16 %v5731, %v5729
        %v5788 = vpack.c.b16 %v5734, %v5732
        %v5789 = vpack.c.b16 %v5735, %v5733
        %v5790 = vpack.c.b16 %v5738, %v5736
        %v5791 = vpack.c.b16 %v5739, %v5737
        %v5792 = vpack.c.b16 %v5742, %v5740
        %v5793 = vpack.c.b16 %v5743, %v5741
        %v5794 = vpack.c.b16 %v5746, %v5744
        %v5795 = vpack.c.b16 %v5747, %v5745
        %v5796 = vpack.c.b16 %v5750, %v5748
        %v5797 = vpack.c.b16 %v5751, %v5749
        %v5798 = vpack.c.b16 %v5754, %v5752
        %v5799 = vpack.c.b16 %v5755, %v5753
        %v5800 = vpack.c.b16 %v5758, %v5756
        %v5801 = vpack.c.b16 %v5759, %v5757
        %v5802 = vpack.c.b16 %v5762, %v5760
        %v5803 = vpack.c.b16 %v5763, %v5761
        %v5804 = vpack.c.b16 %v5766, %v5764
        %v5805 = vpack.c.b16 %v5767, %v5765
        %v5806 = vpack.c.b16 %v5770, %v5768
        %v5807 = vpack.c.b16 %v5771, %v5769
        %v5808 = vpack.c.b16 %v5774, %v5772
        %v5809 = vpack.c.b16 %v5775, %v5773
        %v5810 = vpack.c.b16 %v5778, %v5776
        %v5811 = vpack.c.b16 %v5779, %v5777
        %5844 = vmatprep.subr.bf16.mxu0 %v5795
        %5845 = vmatpush1.bf16.msra.mxu0 %v5794
        %5846 = vmatprep.subr.bf16.mxu0 %v5793
        %5847 = vmatpush1.bf16.msra.mxu0 %v5792
        %5848 = vmatprep.subr.bf16.mxu0 %v5791
        %5849 = vmatpush1.bf16.msra.mxu0 %v5790
        %5850 = vmatprep.subr.bf16.mxu0 %v5789
        %5851 = vmatpush1.bf16.msra.mxu0 %v5788
        %5852 = vmatprep.subr.bf16.mxu0 %v5787
        %5853 = vmatpush1.bf16.msra.mxu0 %v5786
        %5854 = vmatprep.subr.bf16.mxu0 %v5785
        %5855 = vmatpush1.bf16.msra.mxu0 %v5784
        %5856 = vmatprep.subr.bf16.mxu0 %v5783
        %5857 = vmatpush1.bf16.msra.mxu0 %v5782
        %5858 = vmatprep.subr.bf16.mxu0 %v5781
        %5859 = vmatpush1.bf16.msra.mxu0 %v5780
        %5860 = vmatprep.subr.bf16.mxu0 %v5811
        %5861 = vmatpush2.bf16.msra.mxu0 %v5810
        %5862 = vmatprep.subr.bf16.mxu0 %v5809
        %5863 = vmatpush2.bf16.msra.mxu0 %v5808
        %5864 = vmatprep.subr.bf16.mxu0 %v5807
        %5865 = vmatpush2.bf16.msra.mxu0 %v5806
        %5866 = vmatprep.subr.bf16.mxu0 %v5805
        %5867 = vmatpush2.bf16.msra.mxu0 %v5804
        %5868 = vmatprep.subr.bf16.mxu0 %v5803
        %5869 = vmatpush2.bf16.msra.mxu0 %v5802
        %5870 = vmatprep.subr.bf16.mxu0 %v5801
        %5871 = vmatpush2.bf16.msra.mxu0 %v5800
        %5872 = vmatprep.subr.bf16.mxu0 %v5799
        %5873 = vmatpush2.bf16.msra.mxu0 %v5798
        %5874 = vmatprep.subr.bf16.mxu0 %v5797
        %5875 = vmatpush2.bf16.msra.mxu0 %v5796
        %5876 = vmatprep.mubr.bf16.mxu0 %v5683
        %5877 = vmatmul.mubr.bf16.gmra.mxu0 %v5682
        %v5878 = vpop.f32.mrf.mxu0
        %v5879 = vadd.f32 0.0, %v5878
        %v5880 = vpop.f32.mrf.mxu0
        %v5881 = vadd.f32 0.0, %v5880
        %v5882 = vpop.f32.mrf.mxu0
        %v5883 = vpop.f32.mrf.mxu0
        %5884 = vdwg.mxu0
        %v5885 = vadd.f32 %v5598, %v5879
        %v5886 = vadd.f32 %v5600, %v5881
        %v5887 = vld [vmem:[#allocation10] sm:$0x3]
        %v5889 = vlaneseq
        %v5890 = vshrl.u32 %v5889, 7
        %v5891 = vsub.s32 0, %v5890
        %v5892 = vrot.slane %v5887, %v5891
        %v5893 = vlaneseq
        %v5894 = vshrl.u32 %v5893, 7
        %v5895 = vsub.s32 1, %v5894
        %v5896 = vrot.slane %v5887, %v5895
        %v5899 = vadd.f32 %v5885, %v5892
        %v5900 = vadd.f32 %v5886, %v5896
        %v5901 = vmax.f32 %v5899, 0.0
        %v5902 = vmax.f32 %v5900, 0.0
        %v5903 = vld [vmem:[%s11] sm:$0xf]
        %v5904 = vld [vmem:[%s11 + $0x4] sm:$0xf]
        %v5905 = vld [vmem:[%s11 + $0x8] sm:$0xf]
        %v5906 = vld [vmem:[%s11 + $0xc] sm:$0xf]
        %v5907 = vld [vmem:[%s11 + $0x10] sm:$0xf]
        %v5908 = vld [vmem:[%s11 + $0x14] sm:$0xf]
        %v5909 = vld [vmem:[%s11 + $0x18] sm:$0xf]
        %v5910 = vld [vmem:[%s11 + $0x1c] sm:$0xf]
        %v5911 = vld [vmem:[%s11 + $0x20] sm:$0xf]
        %v5912 = vld [vmem:[%s11 + $0x24] sm:$0xf]
        %v5913 = vld [vmem:[%s11 + $0x28] sm:$0xf]
        %v5914 = vld [vmem:[%s11 + $0x2c] sm:$0xf]
        %v5915 = vld [vmem:[%s11 + $0x30] sm:$0xf]
        %v5916 = vld [vmem:[%s11 + $0x34] sm:$0xf]
        %v5917 = vld [vmem:[%s11 + $0x38] sm:$0xf]
        %v5918 = vld [vmem:[%s11 + $0x3c] sm:$0xf]
        %v5919 = vld [vmem:[%s11 + $0x40] sm:$0xf]
        %v5920 = vld [vmem:[%s11 + $0x44] sm:$0xf]
        %v5921 = vld [vmem:[%s11 + $0x48] sm:$0xf]
        %v5922 = vld [vmem:[%s11 + $0x4c] sm:$0xf]
        %v5923 = vld [vmem:[%s11 + $0x50] sm:$0xf]
        %v5924 = vld [vmem:[%s11 + $0x54] sm:$0xf]
        %v5925 = vld [vmem:[%s11 + $0x58] sm:$0xf]
        %v5926 = vld [vmem:[%s11 + $0x5c] sm:$0xf]
        %v5927 = vld [vmem:[%s11 + $0x60] sm:$0xf]
        %v5928 = vld [vmem:[%s11 + $0x64] sm:$0xf]
        %v5929 = vld [vmem:[%s11 + $0x68] sm:$0xf]
        %v5930 = vld [vmem:[%s11 + $0x6c] sm:$0xf]
        %v5931 = vld [vmem:[%s11 + $0x70] sm:$0xf]
        %v5932 = vld [vmem:[%s11 + $0x74] sm:$0xf]
        %v5933 = vld [vmem:[%s11 + $0x78] sm:$0xf]
        %v5934 = vld [vmem:[%s11 + $0x7c] sm:$0xf]
        %v5935 = vpack.c.bf16 %v5901, %v5901
        %v5936 = vpack.c.bf16 %v5902, %v5902
        %5937 = vmatprep.subr.bf16.mxu0 %v3455
        %5938 = vmatpush1.bf16.msra.mxu0 %v3454
        %5939 = vmatprep.subr.bf16.mxu0 %v3453
        %5940 = vmatpush1.bf16.msra.mxu0 %v3452
        %5941 = vmatprep.subr.bf16.mxu0 %v3451
        %5942 = vmatpush1.bf16.msra.mxu0 %v3450
        %5943 = vmatprep.subr.bf16.mxu0 %v3449
        %5944 = vmatpush1.bf16.msra.mxu0 %v3448
        %5945 = vmatprep.subr.bf16.mxu0 %v3447
        %5946 = vmatpush1.bf16.msra.mxu0 %v3446
        %5947 = vmatprep.subr.bf16.mxu0 %v3445
        %5948 = vmatpush1.bf16.msra.mxu0 %v3444
        %5949 = vmatprep.subr.bf16.mxu0 %v3443
        %5950 = vmatpush1.bf16.msra.mxu0 %v3442
        %5951 = vmatprep.subr.bf16.mxu0 %v3441
        %5952 = vmatpush1.bf16.msra.mxu0 %v3440
        %5953 = vmatprep.subr.bf16.mxu0 %v3471
        %5954 = vmatpush2.bf16.msra.mxu0 %v3470
        %5955 = vmatprep.subr.bf16.mxu0 %v3469
        %5956 = vmatpush2.bf16.msra.mxu0 %v3468
        %5957 = vmatprep.subr.bf16.mxu0 %v3467
        %5958 = vmatpush2.bf16.msra.mxu0 %v3466
        %5959 = vmatprep.subr.bf16.mxu0 %v3465
        %5960 = vmatpush2.bf16.msra.mxu0 %v3464
        %5961 = vmatprep.subr.bf16.mxu0 %v3463
        %5962 = vmatpush2.bf16.msra.mxu0 %v3462
        %5963 = vmatprep.subr.bf16.mxu0 %v3461
        %5964 = vmatpush2.bf16.msra.mxu0 %v3460
        %5965 = vmatprep.subr.bf16.mxu0 %v3459
        %5966 = vmatpush2.bf16.msra.mxu0 %v3458
        %5967 = vmatprep.subr.bf16.mxu0 %v3457
        %5968 = vmatpush2.bf16.msra.mxu0 %v3456
        %5969 = vmatprep.mubr.bf16.mxu0 %v5936
        %5970 = vmatmul.mubr.bf16.gmra.mxu0 %v5935
        %v5971 = vpop.f32.mrf.mxu0
        %v5972 = vadd.f32 0.0, %v5971
        %v5973 = vpop.f32.mrf.mxu0
        %v5974 = vadd.f32 0.0, %v5973
        %v5975 = vpop.f32.mrf.mxu0
        %v5976 = vpop.f32.mrf.mxu0
        %5977 = vdwg.mxu0
        %s5978 = scalar_lea.vmem %s11, 128
        %v5979 = vld [vmem:[%s5978] sm:$0xf]
        %v5980 = vld [vmem:[%s5978 + $0x4] sm:$0xf]
        %v5981 = vld [vmem:[%s5978 + $0x8] sm:$0xf]
        %v5982 = vld [vmem:[%s5978 + $0xc] sm:$0xf]
        %v5983 = vld [vmem:[%s5978 + $0x10] sm:$0xf]
        %v5984 = vld [vmem:[%s5978 + $0x14] sm:$0xf]
        %v5985 = vld [vmem:[%s5978 + $0x18] sm:$0xf]
        %v5986 = vld [vmem:[%s5978 + $0x1c] sm:$0xf]
        %v5987 = vld [vmem:[%s5978 + $0x20] sm:$0xf]
        %v5988 = vld [vmem:[%s5978 + $0x24] sm:$0xf]
        %v5989 = vld [vmem:[%s5978 + $0x28] sm:$0xf]
        %v5990 = vld [vmem:[%s5978 + $0x2c] sm:$0xf]
        %v5991 = vld [vmem:[%s5978 + $0x30] sm:$0xf]
        %v5992 = vld [vmem:[%s5978 + $0x34] sm:$0xf]
        %v5993 = vld [vmem:[%s5978 + $0x38] sm:$0xf]
        %v5994 = vld [vmem:[%s5978 + $0x3c] sm:$0xf]
        %v5995 = vld [vmem:[%s5978 + $0x40] sm:$0xf]
        %v5996 = vld [vmem:[%s5978 + $0x44] sm:$0xf]
        %v5997 = vld [vmem:[%s5978 + $0x48] sm:$0xf]
        %v5998 = vld [vmem:[%s5978 + $0x4c] sm:$0xf]
        %v5999 = vld [vmem:[%s5978 + $0x50] sm:$0xf]
        %v6000 = vld [vmem:[%s5978 + $0x54] sm:$0xf]
        %v6001 = vld [vmem:[%s5978 + $0x58] sm:$0xf]
        %v6002 = vld [vmem:[%s5978 + $0x5c] sm:$0xf]
        %v6003 = vld [vmem:[%s5978 + $0x60] sm:$0xf]
        %v6004 = vld [vmem:[%s5978 + $0x64] sm:$0xf]
        %v6005 = vld [vmem:[%s5978 + $0x68] sm:$0xf]
        %v6006 = vld [vmem:[%s5978 + $0x6c] sm:$0xf]
        %v6007 = vld [vmem:[%s5978 + $0x70] sm:$0xf]
        %v6008 = vld [vmem:[%s5978 + $0x74] sm:$0xf]
        %v6009 = vld [vmem:[%s5978 + $0x78] sm:$0xf]
        %v6010 = vld [vmem:[%s5978 + $0x7c] sm:$0xf]
        %v6011 = vpack.c.bf16 %v5972, %v5972
        %v6012 = vpack.c.bf16 %v5974, %v5974
        %v6045 = vunpack.c.l.b16 %v5979
        %v6046 = vunpack.c.l.b16 %v5980
        %v6047 = vunpack.c.l.b16 %v5981
        %v6048 = vunpack.c.l.b16 %v5982
        %v6049 = vunpack.c.l.b16 %v5983
        %v6050 = vunpack.c.l.b16 %v5984
        %v6051 = vunpack.c.l.b16 %v5985
        %v6052 = vunpack.c.l.b16 %v5986
        %v6053 = vunpack.c.l.b16 %v5987
        %v6054 = vunpack.c.l.b16 %v5988
        %v6055 = vunpack.c.l.b16 %v5989
        %v6056 = vunpack.c.l.b16 %v5990
        %v6057 = vunpack.c.l.b16 %v5991
        %v6058 = vunpack.c.l.b16 %v5992
        %v6059 = vunpack.c.l.b16 %v5993
        %v6060 = vunpack.c.l.b16 %v5994
        %v6061 = vunpack.c.l.b16 %v5995
        %v6062 = vunpack.c.l.b16 %v5996
        %v6063 = vunpack.c.l.b16 %v5997
        %v6064 = vunpack.c.l.b16 %v5998
        %v6065 = vunpack.c.l.b16 %v5999
        %v6066 = vunpack.c.l.b16 %v6000
        %v6067 = vunpack.c.l.b16 %v6001
        %v6068 = vunpack.c.l.b16 %v6002
        %v6069 = vunpack.c.l.b16 %v6003
        %v6070 = vunpack.c.l.b16 %v6004
        %v6071 = vunpack.c.l.b16 %v6005
        %v6072 = vunpack.c.l.b16 %v6006
        %v6073 = vunpack.c.l.b16 %v6007
        %v6074 = vunpack.c.l.b16 %v6008
        %v6075 = vunpack.c.l.b16 %v6009
        %v6076 = vunpack.c.l.b16 %v6010
        %v6077 = vpack.c.b16 %v6046, %v6045
        %v6078 = vpack.c.b16 %v6048, %v6047
        %v6079 = vpack.c.b16 %v6050, %v6049
        %v6080 = vpack.c.b16 %v6052, %v6051
        %v6081 = vpack.c.b16 %v6054, %v6053
        %v6082 = vpack.c.b16 %v6056, %v6055
        %v6083 = vpack.c.b16 %v6058, %v6057
        %v6084 = vpack.c.b16 %v6060, %v6059
        %v6085 = vpack.c.b16 %v6062, %v6061
        %v6086 = vpack.c.b16 %v6064, %v6063
        %v6087 = vpack.c.b16 %v6066, %v6065
        %v6088 = vpack.c.b16 %v6068, %v6067
        %v6089 = vpack.c.b16 %v6070, %v6069
        %v6090 = vpack.c.b16 %v6072, %v6071
        %v6091 = vpack.c.b16 %v6074, %v6073
        %v6092 = vpack.c.b16 %v6076, %v6075
        %6109 = vmatprep.subr.bf16.mxu0 0
        %6110 = vmatpush1.bf16.msra.mxu0 %v6084
        %6111 = vmatprep.subr.bf16.mxu0 0
        %6112 = vmatpush1.bf16.msra.mxu0 %v6083
        %6113 = vmatprep.subr.bf16.mxu0 0
        %6114 = vmatpush1.bf16.msra.mxu0 %v6082
        %6115 = vmatprep.subr.bf16.mxu0 0
        %6116 = vmatpush1.bf16.msra.mxu0 %v6081
        %6117 = vmatprep.subr.bf16.mxu0 0
        %6118 = vmatpush1.bf16.msra.mxu0 %v6080
        %6119 = vmatprep.subr.bf16.mxu0 0
        %6120 = vmatpush1.bf16.msra.mxu0 %v6079
        %6121 = vmatprep.subr.bf16.mxu0 0
        %6122 = vmatpush1.bf16.msra.mxu0 %v6078
        %6123 = vmatprep.subr.bf16.mxu0 0
        %6124 = vmatpush1.bf16.msra.mxu0 %v6077
        %6125 = vmatprep.subr.bf16.mxu0 0
        %6126 = vmatpush2.bf16.msra.mxu0 %v6092
        %6127 = vmatprep.subr.bf16.mxu0 0
        %6128 = vmatpush2.bf16.msra.mxu0 %v6091
        %6129 = vmatprep.subr.bf16.mxu0 0
        %6130 = vmatpush2.bf16.msra.mxu0 %v6090
        %6131 = vmatprep.subr.bf16.mxu0 0
        %6132 = vmatpush2.bf16.msra.mxu0 %v6089
        %6133 = vmatprep.subr.bf16.mxu0 0
        %6134 = vmatpush2.bf16.msra.mxu0 %v6088
        %6135 = vmatprep.subr.bf16.mxu0 0
        %6136 = vmatpush2.bf16.msra.mxu0 %v6087
        %6137 = vmatprep.subr.bf16.mxu0 0
        %6138 = vmatpush2.bf16.msra.mxu0 %v6086
        %6139 = vmatprep.subr.bf16.mxu0 0
        %6140 = vmatpush2.bf16.msra.mxu0 %v6085
        %6141 = vmatprep.mubr.bf16.mxu0 %v6012
        %6142 = vmatmul.mubr.bf16.gmra.mxu0 %v6011
        %v6143 = vpop.f32.mrf.mxu0
        %v6144 = vadd.f32 0.0, %v6143
        %v6145 = vpop.f32.mrf.mxu0
        %v6146 = vpop.f32.mrf.mxu0
        %v6147 = vpop.f32.mrf.mxu0
        %6148 = vdwg.mxu0
        %v6181 = vunpack.c.l.b16 %v5903
        %v6182 = vunpack.c.l.b16 %v5904
        %v6183 = vunpack.c.l.b16 %v5905
        %v6184 = vunpack.c.l.b16 %v5906
        %v6185 = vunpack.c.l.b16 %v5907
        %v6186 = vunpack.c.l.b16 %v5908
        %v6187 = vunpack.c.l.b16 %v5909
        %v6188 = vunpack.c.l.b16 %v5910
        %v6189 = vunpack.c.l.b16 %v5911
        %v6190 = vunpack.c.l.b16 %v5912
        %v6191 = vunpack.c.l.b16 %v5913
        %v6192 = vunpack.c.l.b16 %v5914
        %v6193 = vunpack.c.l.b16 %v5915
        %v6194 = vunpack.c.l.b16 %v5916
        %v6195 = vunpack.c.l.b16 %v5917
        %v6196 = vunpack.c.l.b16 %v5918
        %v6197 = vunpack.c.l.b16 %v5919
        %v6198 = vunpack.c.l.b16 %v5920
        %v6199 = vunpack.c.l.b16 %v5921
        %v6200 = vunpack.c.l.b16 %v5922
        %v6201 = vunpack.c.l.b16 %v5923
        %v6202 = vunpack.c.l.b16 %v5924
        %v6203 = vunpack.c.l.b16 %v5925
        %v6204 = vunpack.c.l.b16 %v5926
        %v6205 = vunpack.c.l.b16 %v5927
        %v6206 = vunpack.c.l.b16 %v5928
        %v6207 = vunpack.c.l.b16 %v5929
        %v6208 = vunpack.c.l.b16 %v5930
        %v6209 = vunpack.c.l.b16 %v5931
        %v6210 = vunpack.c.l.b16 %v5932
        %v6211 = vunpack.c.l.b16 %v5933
        %v6212 = vunpack.c.l.b16 %v5934
        %v6213 = vpack.c.b16 %v6182, %v6181
        %v6214 = vpack.c.b16 %v6184, %v6183
        %v6215 = vpack.c.b16 %v6186, %v6185
        %v6216 = vpack.c.b16 %v6188, %v6187
        %v6217 = vpack.c.b16 %v6190, %v6189
        %v6218 = vpack.c.b16 %v6192, %v6191
        %v6219 = vpack.c.b16 %v6194, %v6193
        %v6220 = vpack.c.b16 %v6196, %v6195
        %v6221 = vpack.c.b16 %v6198, %v6197
        %v6222 = vpack.c.b16 %v6200, %v6199
        %v6223 = vpack.c.b16 %v6202, %v6201
        %v6224 = vpack.c.b16 %v6204, %v6203
        %v6225 = vpack.c.b16 %v6206, %v6205
        %v6226 = vpack.c.b16 %v6208, %v6207
        %v6227 = vpack.c.b16 %v6210, %v6209
        %v6228 = vpack.c.b16 %v6212, %v6211
        %6245 = vmatprep.subr.bf16.mxu0 0
        %6246 = vmatpush1.bf16.msra.mxu0 %v6220
        %6247 = vmatprep.subr.bf16.mxu0 0
        %6248 = vmatpush1.bf16.msra.mxu0 %v6219
        %6249 = vmatprep.subr.bf16.mxu0 0
        %6250 = vmatpush1.bf16.msra.mxu0 %v6218
        %6251 = vmatprep.subr.bf16.mxu0 0
        %6252 = vmatpush1.bf16.msra.mxu0 %v6217
        %6253 = vmatprep.subr.bf16.mxu0 0
        %6254 = vmatpush1.bf16.msra.mxu0 %v6216
        %6255 = vmatprep.subr.bf16.mxu0 0
        %6256 = vmatpush1.bf16.msra.mxu0 %v6215
        %6257 = vmatprep.subr.bf16.mxu0 0
        %6258 = vmatpush1.bf16.msra.mxu0 %v6214
        %6259 = vmatprep.subr.bf16.mxu0 0
        %6260 = vmatpush1.bf16.msra.mxu0 %v6213
        %6261 = vmatprep.subr.bf16.mxu0 0
        %6262 = vmatpush2.bf16.msra.mxu0 %v6228
        %6263 = vmatprep.subr.bf16.mxu0 0
        %6264 = vmatpush2.bf16.msra.mxu0 %v6227
        %6265 = vmatprep.subr.bf16.mxu0 0
        %6266 = vmatpush2.bf16.msra.mxu0 %v6226
        %6267 = vmatprep.subr.bf16.mxu0 0
        %6268 = vmatpush2.bf16.msra.mxu0 %v6225
        %6269 = vmatprep.subr.bf16.mxu0 0
        %6270 = vmatpush2.bf16.msra.mxu0 %v6224
        %6271 = vmatprep.subr.bf16.mxu0 0
        %6272 = vmatpush2.bf16.msra.mxu0 %v6223
        %6273 = vmatprep.subr.bf16.mxu0 0
        %6274 = vmatpush2.bf16.msra.mxu0 %v6222
        %6275 = vmatprep.subr.bf16.mxu0 0
        %6276 = vmatpush2.bf16.msra.mxu0 %v6221
        %6277 = vmatprep.mubr.bf16.mxu0 %v5936
        %6278 = vmatmul.mubr.bf16.gmra.mxu0 %v5935
        %v6279 = vpop.f32.mrf.mxu0
        %v6280 = vadd.f32 %v6144, %v6279
        %v6281 = vpop.f32.mrf.mxu0
        %v6282 = vpop.f32.mrf.mxu0
        %v6283 = vpop.f32.mrf.mxu0
        %6284 = vdwg.mxu0
        %6285 = vmatprep.subr.bf16.mxu0 %v3455
        %6286 = vmatpush1.bf16.msra.mxu0 %v3454
        %6287 = vmatprep.subr.bf16.mxu0 %v3453
        %6288 = vmatpush1.bf16.msra.mxu0 %v3452
        %6289 = vmatprep.subr.bf16.mxu0 %v3451
        %6290 = vmatpush1.bf16.msra.mxu0 %v3450
        %6291 = vmatprep.subr.bf16.mxu0 %v3449
        %6292 = vmatpush1.bf16.msra.mxu0 %v3448
        %6293 = vmatprep.subr.bf16.mxu0 %v3447
        %6294 = vmatpush1.bf16.msra.mxu0 %v3446
        %6295 = vmatprep.subr.bf16.mxu0 %v3445
        %6296 = vmatpush1.bf16.msra.mxu0 %v3444
        %6297 = vmatprep.subr.bf16.mxu0 %v3443
        %6298 = vmatpush1.bf16.msra.mxu0 %v3442
        %6299 = vmatprep.subr.bf16.mxu0 %v3441
        %6300 = vmatpush1.bf16.msra.mxu0 %v3440
        %6301 = vmatprep.subr.bf16.mxu0 %v3471
        %6302 = vmatpush2.bf16.msra.mxu0 %v3470
        %6303 = vmatprep.subr.bf16.mxu0 %v3469
        %6304 = vmatpush2.bf16.msra.mxu0 %v3468
        %6305 = vmatprep.subr.bf16.mxu0 %v3467
        %6306 = vmatpush2.bf16.msra.mxu0 %v3466
        %6307 = vmatprep.subr.bf16.mxu0 %v3465
        %6308 = vmatpush2.bf16.msra.mxu0 %v3464
        %6309 = vmatprep.subr.bf16.mxu0 %v3463
        %6310 = vmatpush2.bf16.msra.mxu0 %v3462
        %6311 = vmatprep.subr.bf16.mxu0 %v3461
        %6312 = vmatpush2.bf16.msra.mxu0 %v3460
        %6313 = vmatprep.subr.bf16.mxu0 %v3459
        %6314 = vmatpush2.bf16.msra.mxu0 %v3458
        %6315 = vmatprep.subr.bf16.mxu0 %v3457
        %6316 = vmatpush2.bf16.msra.mxu0 %v3456
        %6317 = vmatprep.mubr.bf16.mxu0 %v6012
        %6318 = vmatmul.mubr.bf16.gmra.mxu0 %v6011
        %v6319 = vpop.f32.mrf.mxu0
        %v6320 = vadd.f32 0.0, %v6319
        %v6321 = vpop.f32.mrf.mxu0
        %v6322 = vadd.f32 0.0, %v6321
        %v6323 = vpop.f32.mrf.mxu0
        %v6324 = vpop.f32.mrf.mxu0
        %6325 = vdwg.mxu0
        %v6326 = vmul.f32 %v6320, 2.0
        %v6327 = vmul.f32 %v6322, 2.0
        %v6328 = vsub.f32 %v6326, %v5901
        %v6329 = vsub.f32 %v6327, %v5902
        %s6330 = scalar_lea.vmem %s11, 256
        %v6331 = vld [vmem:[%s6330] sm:$0xf]
        %v6332 = vld [vmem:[%s6330 + $0x4] sm:$0xf]
        %v6333 = vld [vmem:[%s6330 + $0x8] sm:$0xf]
        %v6334 = vld [vmem:[%s6330 + $0xc] sm:$0xf]
        %v6335 = vld [vmem:[%s6330 + $0x10] sm:$0xf]
        %v6336 = vld [vmem:[%s6330 + $0x14] sm:$0xf]
        %v6337 = vld [vmem:[%s6330 + $0x18] sm:$0xf]
        %v6338 = vld [vmem:[%s6330 + $0x1c] sm:$0xf]
        %v6339 = vld [vmem:[%s6330 + $0x20] sm:$0xf]
        %v6340 = vld [vmem:[%s6330 + $0x24] sm:$0xf]
        %v6341 = vld [vmem:[%s6330 + $0x28] sm:$0xf]
        %v6342 = vld [vmem:[%s6330 + $0x2c] sm:$0xf]
        %v6343 = vld [vmem:[%s6330 + $0x30] sm:$0xf]
        %v6344 = vld [vmem:[%s6330 + $0x34] sm:$0xf]
        %v6345 = vld [vmem:[%s6330 + $0x38] sm:$0xf]
        %v6346 = vld [vmem:[%s6330 + $0x3c] sm:$0xf]
        %v6347 = vld [vmem:[%s6330 + $0x40] sm:$0xf]
        %v6348 = vld [vmem:[%s6330 + $0x44] sm:$0xf]
        %v6349 = vld [vmem:[%s6330 + $0x48] sm:$0xf]
        %v6350 = vld [vmem:[%s6330 + $0x4c] sm:$0xf]
        %v6351 = vld [vmem:[%s6330 + $0x50] sm:$0xf]
        %v6352 = vld [vmem:[%s6330 + $0x54] sm:$0xf]
        %v6353 = vld [vmem:[%s6330 + $0x58] sm:$0xf]
        %v6354 = vld [vmem:[%s6330 + $0x5c] sm:$0xf]
        %v6355 = vld [vmem:[%s6330 + $0x60] sm:$0xf]
        %v6356 = vld [vmem:[%s6330 + $0x64] sm:$0xf]
        %v6357 = vld [vmem:[%s6330 + $0x68] sm:$0xf]
        %v6358 = vld [vmem:[%s6330 + $0x6c] sm:$0xf]
        %v6359 = vld [vmem:[%s6330 + $0x70] sm:$0xf]
        %v6360 = vld [vmem:[%s6330 + $0x74] sm:$0xf]
        %v6361 = vld [vmem:[%s6330 + $0x78] sm:$0xf]
        %v6362 = vld [vmem:[%s6330 + $0x7c] sm:$0xf]
        %v6363 = vpack.c.bf16 %v6328, %v6328
        %v6364 = vpack.c.bf16 %v6329, %v6329
        %v6397 = vunpack.c.l.b16 %v6331
        %v6398 = vunpack.c.l.b16 %v6332
        %v6399 = vunpack.c.l.b16 %v6333
        %v6400 = vunpack.c.l.b16 %v6334
        %v6401 = vunpack.c.l.b16 %v6335
        %v6402 = vunpack.c.l.b16 %v6336
        %v6403 = vunpack.c.l.b16 %v6337
        %v6404 = vunpack.c.l.b16 %v6338
        %v6405 = vunpack.c.l.b16 %v6339
        %v6406 = vunpack.c.l.b16 %v6340
        %v6407 = vunpack.c.l.b16 %v6341
        %v6408 = vunpack.c.l.b16 %v6342
        %v6409 = vunpack.c.l.b16 %v6343
        %v6410 = vunpack.c.l.b16 %v6344
        %v6411 = vunpack.c.l.b16 %v6345
        %v6412 = vunpack.c.l.b16 %v6346
        %v6413 = vunpack.c.l.b16 %v6347
        %v6414 = vunpack.c.l.b16 %v6348
        %v6415 = vunpack.c.l.b16 %v6349
        %v6416 = vunpack.c.l.b16 %v6350
        %v6417 = vunpack.c.l.b16 %v6351
        %v6418 = vunpack.c.l.b16 %v6352
        %v6419 = vunpack.c.l.b16 %v6353
        %v6420 = vunpack.c.l.b16 %v6354
        %v6421 = vunpack.c.l.b16 %v6355
        %v6422 = vunpack.c.l.b16 %v6356
        %v6423 = vunpack.c.l.b16 %v6357
        %v6424 = vunpack.c.l.b16 %v6358
        %v6425 = vunpack.c.l.b16 %v6359
        %v6426 = vunpack.c.l.b16 %v6360
        %v6427 = vunpack.c.l.b16 %v6361
        %v6428 = vunpack.c.l.b16 %v6362
        %v6429 = vpack.c.b16 %v6398, %v6397
        %v6430 = vpack.c.b16 %v6400, %v6399
        %v6431 = vpack.c.b16 %v6402, %v6401
        %v6432 = vpack.c.b16 %v6404, %v6403
        %v6433 = vpack.c.b16 %v6406, %v6405
        %v6434 = vpack.c.b16 %v6408, %v6407
        %v6435 = vpack.c.b16 %v6410, %v6409
        %v6436 = vpack.c.b16 %v6412, %v6411
        %v6437 = vpack.c.b16 %v6414, %v6413
        %v6438 = vpack.c.b16 %v6416, %v6415
        %v6439 = vpack.c.b16 %v6418, %v6417
        %v6440 = vpack.c.b16 %v6420, %v6419
        %v6441 = vpack.c.b16 %v6422, %v6421
        %v6442 = vpack.c.b16 %v6424, %v6423
        %v6443 = vpack.c.b16 %v6426, %v6425
        %v6444 = vpack.c.b16 %v6428, %v6427
        %6461 = vmatprep.subr.bf16.mxu0 0
        %6462 = vmatpush1.bf16.msra.mxu0 %v6436
        %6463 = vmatprep.subr.bf16.mxu0 0
        %6464 = vmatpush1.bf16.msra.mxu0 %v6435
        %6465 = vmatprep.subr.bf16.mxu0 0
        %6466 = vmatpush1.bf16.msra.mxu0 %v6434
        %6467 = vmatprep.subr.bf16.mxu0 0
        %6468 = vmatpush1.bf16.msra.mxu0 %v6433
        %6469 = vmatprep.subr.bf16.mxu0 0
        %6470 = vmatpush1.bf16.msra.mxu0 %v6432
        %6471 = vmatprep.subr.bf16.mxu0 0
        %6472 = vmatpush1.bf16.msra.mxu0 %v6431
        %6473 = vmatprep.subr.bf16.mxu0 0
        %6474 = vmatpush1.bf16.msra.mxu0 %v6430
        %6475 = vmatprep.subr.bf16.mxu0 0
        %6476 = vmatpush1.bf16.msra.mxu0 %v6429
        %6477 = vmatprep.subr.bf16.mxu0 0
        %6478 = vmatpush2.bf16.msra.mxu0 %v6444
        %6479 = vmatprep.subr.bf16.mxu0 0
        %6480 = vmatpush2.bf16.msra.mxu0 %v6443
        %6481 = vmatprep.subr.bf16.mxu0 0
        %6482 = vmatpush2.bf16.msra.mxu0 %v6442
        %6483 = vmatprep.subr.bf16.mxu0 0
        %6484 = vmatpush2.bf16.msra.mxu0 %v6441
        %6485 = vmatprep.subr.bf16.mxu0 0
        %6486 = vmatpush2.bf16.msra.mxu0 %v6440
        %6487 = vmatprep.subr.bf16.mxu0 0
        %6488 = vmatpush2.bf16.msra.mxu0 %v6439
        %6489 = vmatprep.subr.bf16.mxu0 0
        %6490 = vmatpush2.bf16.msra.mxu0 %v6438
        %6491 = vmatprep.subr.bf16.mxu0 0
        %6492 = vmatpush2.bf16.msra.mxu0 %v6437
        %6493 = vmatprep.mubr.bf16.mxu0 %v6364
        %6494 = vmatmul.mubr.bf16.gmra.mxu0 %v6363
        %v6495 = vpop.f32.mrf.mxu0
        %v6496 = vadd.f32 0.0, %v6495
        %v6497 = vpop.f32.mrf.mxu0
        %v6498 = vpop.f32.mrf.mxu0
        %v6499 = vpop.f32.mrf.mxu0
        %6500 = vdwg.mxu0
        %v6501 = vadd.f32 %v6280, %v6496
        %v6502 = vld [vmem:[%s12] sm:$0x1]
        %v6504 = vlaneseq
        %v6505 = vshrl.u32 %v6504, 7
        %v6506 = vsub.s32 0, %v6505
        %v6507 = vrot.slane %v6502, %v6506
        %v6509 = vadd.f32 %v6501, %v6507
        %v6510 = vmax.f32 %v6509, 0.0
        %v6511 = vld [vmem:[%s13] sm:$0xf]
        %v6512 = vld [vmem:[%s13 + $0x4] sm:$0xf]
        %v6513 = vld [vmem:[%s13 + $0x8] sm:$0xf]
        %v6514 = vld [vmem:[%s13 + $0xc] sm:$0xf]
        %v6515 = vld [vmem:[%s13 + $0x10] sm:$0xf]
        %v6516 = vld [vmem:[%s13 + $0x14] sm:$0xf]
        %v6517 = vld [vmem:[%s13 + $0x18] sm:$0xf]
        %v6518 = vld [vmem:[%s13 + $0x1c] sm:$0xf]
        %v6519 = vpack.c.bf16 %v6510, %v6510
        %v6520 = vld [vmem:[#allocation12] sm:$0x1]
        %v6522 = vlaneseq
        %v6523 = vshrl.u32 %v6522, 7
        %v6524 = vsub.s32 0, %v6523
        %v6525 = vrot.slane %v6520, %v6524
        %v6535 = vunpack.c.l.b16 %v6511
        %v6536 = vunpack.c.l.b16 %v6512
        %v6537 = vunpack.c.l.b16 %v6513
        %v6538 = vunpack.c.l.b16 %v6514
        %v6539 = vunpack.c.l.b16 %v6515
        %v6540 = vunpack.c.l.b16 %v6516
        %v6541 = vunpack.c.l.b16 %v6517
        %v6542 = vunpack.c.l.b16 %v6518
        %v6543 = vpack.c.b16 %v6536, %v6535
        %v6544 = vpack.c.b16 %v6538, %v6537
        %v6545 = vpack.c.b16 %v6540, %v6539
        %v6546 = vpack.c.b16 %v6542, %v6541
        %vm6551 = vcmask 523264
        %v6553 = vsel %vm6551, %v6519, 0
        %6555 = vmatprep.subr.bf16.mxu0 0
        %6556 = vmatpush1.bf16.msra.mxu0 0
        %6557 = vmatprep.subr.bf16.mxu0 0
        %6558 = vmatpush1.bf16.msra.mxu0 0
        %6559 = vmatprep.subr.bf16.mxu0 0
        %6560 = vmatpush1.bf16.msra.mxu0 0
        %6561 = vmatprep.subr.bf16.mxu0 0
        %6562 = vmatpush1.bf16.msra.mxu0 0
        %6563 = vmatprep.subr.bf16.mxu0 0
        %6564 = vmatpush1.bf16.msra.mxu0 %v6546
        %6565 = vmatprep.subr.bf16.mxu0 0
        %6566 = vmatpush1.bf16.msra.mxu0 %v6545
        %6567 = vmatprep.subr.bf16.mxu0 0
        %6568 = vmatpush1.bf16.msra.mxu0 %v6544
        %6569 = vmatprep.subr.bf16.mxu0 0
        %6570 = vmatpush1.bf16.msra.mxu0 %v6543
        %6571 = vmatprep.subr.bf16.mxu0 0
        %6572 = vmatpush2.bf16.msra.mxu0 0
        %6573 = vmatprep.subr.bf16.mxu0 0
        %6574 = vmatpush2.bf16.msra.mxu0 0
        %6575 = vmatprep.subr.bf16.mxu0 0
        %6576 = vmatpush2.bf16.msra.mxu0 0
        %6577 = vmatprep.subr.bf16.mxu0 0
        %6578 = vmatpush2.bf16.msra.mxu0 0
        %6579 = vmatprep.subr.bf16.mxu0 0
        %6580 = vmatpush2.bf16.msra.mxu0 0
        %6581 = vmatprep.subr.bf16.mxu0 0
        %6582 = vmatpush2.bf16.msra.mxu0 0
        %6583 = vmatprep.subr.bf16.mxu0 0
        %6584 = vmatpush2.bf16.msra.mxu0 0
        %6585 = vmatprep.subr.bf16.mxu0 0
        %6586 = vmatpush2.bf16.msra.mxu0 0
        %6587 = vmatprep.mubr.bf16.mxu0 0
        %6588 = vmatmul.mubr.bf16.gmra.mxu0 %v6553
        %v6589 = vpop.f32.mrf.mxu0
        %v6590 = vadd.f32 %v6525, %v6589
        %v6591 = vpop.f32.mrf.mxu0
        %v6592 = vpop.f32.mrf.mxu0
        %v6593 = vpop.f32.mrf.mxu0
        %6594 = vdwg.mxu0
        %v6595 = vld [vmem:[#allocation13] sm:$0xf]
        %v6596 = vld [vmem:[#allocation13 + $0x4] sm:$0xf]
        %v6597 = vld [vmem:[#allocation13 + $0x8] sm:$0xf]
        %v6598 = vld [vmem:[#allocation13 + $0xc] sm:$0xf]
        %v6599 = vpack.c.bf16 %v6590, %v6590
        %v6600 = vld [vmem:[#allocation15] sm:$0x1]
        %v6602 = vlaneseq
        %v6603 = vshrl.u32 %v6602, 7
        %v6604 = vsub.s32 0, %v6603
        %v6605 = vrot.slane %v6600, %v6604
        %v6611 = vunpack.c.l.b16 %v6595
        %v6612 = vunpack.c.l.b16 %v6596
        %v6613 = vunpack.c.l.b16 %v6597
        %v6614 = vunpack.c.l.b16 %v6598
        %v6615 = vpack.c.b16 %v6612, %v6611
        %v6616 = vpack.c.b16 %v6614, %v6613
        %vm6619 = vcmask 261120
        %v6621 = vsel %vm6619, %v6599, 0
        %6623 = vmatprep.subr.bf16.mxu0 0
        %6624 = vmatpush1.bf16.msra.mxu0 0
        %6625 = vmatprep.subr.bf16.mxu0 0
        %6626 = vmatpush1.bf16.msra.mxu0 0
        %6627 = vmatprep.subr.bf16.mxu0 0
        %6628 = vmatpush1.bf16.msra.mxu0 0
        %6629 = vmatprep.subr.bf16.mxu0 0
        %6630 = vmatpush1.bf16.msra.mxu0 0
        %6631 = vmatprep.subr.bf16.mxu0 0
        %6632 = vmatpush1.bf16.msra.mxu0 0
        %6633 = vmatprep.subr.bf16.mxu0 0
        %6634 = vmatpush1.bf16.msra.mxu0 0
        %6635 = vmatprep.subr.bf16.mxu0 0
        %6636 = vmatpush1.bf16.msra.mxu0 %v6616
        %6637 = vmatprep.subr.bf16.mxu0 0
        %6638 = vmatpush1.bf16.msra.mxu0 %v6615
        %6639 = vmatprep.subr.bf16.mxu0 0
        %6640 = vmatpush2.bf16.msra.mxu0 0
        %6641 = vmatprep.subr.bf16.mxu0 0
        %6642 = vmatpush2.bf16.msra.mxu0 0
        %6643 = vmatprep.subr.bf16.mxu0 0
        %6644 = vmatpush2.bf16.msra.mxu0 0
        %6645 = vmatprep.subr.bf16.mxu0 0
        %6646 = vmatpush2.bf16.msra.mxu0 0
        %6647 = vmatprep.subr.bf16.mxu0 0
        %6648 = vmatpush2.bf16.msra.mxu0 0
        %6649 = vmatprep.subr.bf16.mxu0 0
        %6650 = vmatpush2.bf16.msra.mxu0 0
        %6651 = vmatprep.subr.bf16.mxu0 0
        %6652 = vmatpush2.bf16.msra.mxu0 0
        %6653 = vmatprep.subr.bf16.mxu0 0
        %6654 = vmatpush2.bf16.msra.mxu0 0
        %6655 = vmatprep.mubr.bf16.mxu0 0
        %6656 = vmatmul.mubr.bf16.gmra.mxu0 %v6621
        %v6657 = vpop.f32.mrf.mxu0
        %v6658 = vadd.f32 %v6605, %v6657
        %v6659 = vpop.f32.mrf.mxu0
        %v6660 = vpop.f32.mrf.mxu0
        %v6661 = vpop.f32.mrf.mxu0
        %6662 = vdwg.mxu0
        %v6663 = vld [vmem:[%s17] sm:$0xf]
        %v6664 = vld [vmem:[%s17 + $0x4] sm:$0xf]
        %v6665 = vld [vmem:[%s17 + $0x8] sm:$0xf]
        %v6666 = vld [vmem:[%s17 + $0xc] sm:$0xf]
        %v6667 = vpack.c.bf16 %v6658, %v6658
        %v6668 = vld [vmem:[#allocation16] sm:$0x1]
        %v6670 = vlaneseq
        %v6671 = vshrl.u32 %v6670, 7
        %v6672 = vsub.s32 0, %v6671
        %v6673 = vrot.slane %v6668, %v6672
        %v6679 = vunpack.c.l.b16 %v6663
        %v6680 = vunpack.c.l.b16 %v6664
        %v6681 = vunpack.c.l.b16 %v6665
        %v6682 = vunpack.c.l.b16 %v6666
        %v6683 = vpack.c.b16 %v6680, %v6679
        %v6684 = vpack.c.b16 %v6682, %v6681
        %v6688 = vsel %vm6619, %v6667, 0
        %6690 = vmatprep.subr.bf16.mxu0 0
        %6691 = vmatpush1.bf16.msra.mxu0 0
        %6692 = vmatprep.subr.bf16.mxu0 0
        %6693 = vmatpush1.bf16.msra.mxu0 0
        %6694 = vmatprep.subr.bf16.mxu0 0
        %6695 = vmatpush1.bf16.msra.mxu0 0
        %6696 = vmatprep.subr.bf16.mxu0 0
        %6697 = vmatpush1.bf16.msra.mxu0 0
        %6698 = vmatprep.subr.bf16.mxu0 0
        %6699 = vmatpush1.bf16.msra.mxu0 0
        %6700 = vmatprep.subr.bf16.mxu0 0
        %6701 = vmatpush1.bf16.msra.mxu0 0
        %6702 = vmatprep.subr.bf16.mxu0 0
        %6703 = vmatpush1.bf16.msra.mxu0 %v6684
        %6704 = vmatprep.subr.bf16.mxu0 0
        %6705 = vmatpush1.bf16.msra.mxu0 %v6683
        %6706 = vmatprep.subr.bf16.mxu0 0
        %6707 = vmatpush2.bf16.msra.mxu0 0
        %6708 = vmatprep.subr.bf16.mxu0 0
        %6709 = vmatpush2.bf16.msra.mxu0 0
        %6710 = vmatprep.subr.bf16.mxu0 0
        %6711 = vmatpush2.bf16.msra.mxu0 0
        %6712 = vmatprep.subr.bf16.mxu0 0
        %6713 = vmatpush2.bf16.msra.mxu0 0
        %6714 = vmatprep.subr.bf16.mxu0 0
        %6715 = vmatpush2.bf16.msra.mxu0 0
        %6716 = vmatprep.subr.bf16.mxu0 0
        %6717 = vmatpush2.bf16.msra.mxu0 0
        %6718 = vmatprep.subr.bf16.mxu0 0
        %6719 = vmatpush2.bf16.msra.mxu0 0
        %6720 = vmatprep.subr.bf16.mxu0 0
        %6721 = vmatpush2.bf16.msra.mxu0 0
        %6722 = vmatprep.mubr.bf16.mxu0 0
        %6723 = vmatmul.mubr.bf16.gmra.mxu0 %v6688
        %v6724 = vpop.f32.mrf.mxu0
        %v6725 = vadd.f32 %v6673, %v6724
        %v6726 = vpop.f32.mrf.mxu0
        %v6727 = vpop.f32.mrf.mxu0
        %v6728 = vpop.f32.mrf.mxu0
        %6729 = vdwg.mxu0
        %vm6730 = vcmask 31744
        %6731 = vst.msk [vmem:[%s738] sm:$0xff] %vm6730, %v6725
        %p6732 = scmp.lt.s32.totalorder %s36, 1
        %s6733 = scalar_select %p6732, %s36, 1
        %s6734 = smul.addr %s6733, 8
        %s6735 = scalar_lea.vmem %s19, %s6734
        // Predicated region
        $region137: #{gcn_forward.1} parent=95 // pred_check
          %p6736 = pneg %p458
        $region138: #{gcn_forward.1} parent=95 // pred_check_branch
          %6738 = sbr.rel (%p6736) target = $region140
        $region139: #{gcn_forward.1} parent=95 // pred_region
          _
        $region140: #{gcn_forward.1} parent=95 // pred_fallthru
          _
      $region96: #{gcn_forward.1} parent=5 // pred_fallthru
        _
      %p6739 = scmp.le.s32.totalorder 2, %s31
      // Predicated region
      $region141: #{gcn_forward.1} parent=5 // pred_check
        %p6740 = pneg %p6739
      $region142: #{gcn_forward.1} parent=5 // pred_check_branch
        %6742 = sbr.rel (%p6740) target = $region144
      $region143: #{gcn_forward.1} parent=5 // pred_region
        %s6743 = ssub.s32 %s31, 2
        // Predicated region
        $region145: #{gcn_forward.1} parent=143 // pred_check
          %p6744 = pneg %p464
        $region146: #{gcn_forward.1} parent=143 // pred_check_branch
          %6746 = sbr.rel (%p6744) target = $region148
        $region147: #{gcn_forward.1} parent=143 // pred_region
          %p6747 = scmp.lt.s32.totalorder %s37, 1
          %s6748 = scalar_select %p6747, %s37, 1
          %s6749 = smul.addr %s6748, 8
          %s6750 = scalar_lea.vmem %s19, %s6749
        $region148: #{gcn_forward.1} parent=143 // pred_fallthru
          _
      $region144: #{gcn_forward.1} parent=5 // pred_fallthru
        _
    $region6: #{gcn_forward.1} parent=1 // loop_footer
      %s35 = sadd.s32 1, %s31
    $region7: #{gcn_forward.1} parent=1 // loop_footer_branch
      %30 = sbr.rel target = $region3
    $region8: #{gcn_forward.1} parent=1 // loop_exit
      _
    %6751 = vsyncpa [#allocation3], 1
    %s6752 = scalar_lea.sflag [#allocation3], 1
    %6753 = vsyncpa %s6752, 1
    %6754 = vsyncpa [#allocation5], 1
    %6755 = vsyncpa [#allocation8], 1
    %6756 = vsyncpa [#allocation11], 1
    %6757 = vsyncpa [#allocation14], 1
    %6758 = vsyncpa [#allocation17], 1

</llo_original>
